<compile_context>
chip_gen: v7x
topology: tpu7x:2x2x1
jax: 0.10.0
libtpu: 0.0.40
codegen_flags: <defaults>
</compile_context>

<pallas_src>
import math

import jax
import jax.numpy as jnp
from jax.experimental import pallas as pl
from jax.experimental.pallas import tpu as pltpu

EPS = 1e-5
LANE = 128                       # pad channel dims to multiples of this (lane-dense)
TM = 256                         # M-tile rows for the 1x1-conv kernels (v7x-safe)
VMEM_LIMIT = 32 * 1024 * 1024    # explicit scoped-VMEM limit (fits v5e/v6e/v7x)


def _round_up(x, m):
    return (x + m - 1) // m * m


def _compiler_params():
    return pltpu.CompilerParams(
        dimension_semantics=("parallel",),   # megacore sharding on v7x; harmless on v5e/v6e
        vmem_limit_bytes=VMEM_LIMIT,
    )


# --------------------------------------------------------------------------------------
# Pallas kernels
# --------------------------------------------------------------------------------------
def _stats_kernel(x_ref, st_ref):
    # Per-channel sum / sum-of-squares of one M-tile (row 0 = sum, row 1 = sumsq).
    x = x_ref[...]
    st_ref[0] = jnp.concatenate(
        [jnp.sum(x, axis=0, keepdims=True),
         jnp.sum(x * x, axis=0, keepdims=True)], axis=0)


def _make_affine_relu_matmul_stats_kernel(tm, m_real, m_padded):
    # relu(x*scale + shift) @ w, plus per-channel partial stats of the *output*
    # (feeds the next BN).  Rows >= m_real (M padding) are masked so stats stay exact.
    needs_mask = m_padded != m_real

    def kernel(x_ref, s_ref, b_ref, w_ref, o_ref, st_ref):
        a = jnp.maximum(x_ref[...] * s_ref[...] + b_ref[...], 0.0)
        if needs_mask:
            rows = (jax.lax.broadcasted_iota(jnp.int32, (tm, 1), 0)
                    + pl.program_id(0) * tm)
            a = jnp.where(rows < m_real, a, 0.0)
        out = jnp.dot(a.astype(jnp.bfloat16), w_ref[...],
                      preferred_element_type=jnp.float32)
        o_ref[...] = out
        st_ref[0] = jnp.concatenate(
            [jnp.sum(out, axis=0, keepdims=True),
             jnp.sum(out * out, axis=0, keepdims=True)], axis=0)

    return kernel


def _affine_relu_matmul_add_kernel(x_ref, s_ref, b_ref, w_ref, r_ref, o_ref):
    # relu(x*scale + shift) @ w + residual   (bn3 + relu + conv3 + skip add)
    a = jnp.maximum(x_ref[...] * s_ref[...] + b_ref[...], 0.0)
    o_ref[...] = (jnp.dot(a.astype(jnp.bfloat16), w_ref[...],
                          preferred_element_type=jnp.float32)
                  + r_ref[...])


def _make_conv2_kernel(height, width, cin, cout):
    # Fused bn2-affine + ReLU + 3x3 conv (stride 1, pad 1) for one image, plus bn3
    # partial stats.  The 3x3 conv is 9 shifted [HW,C]@[C,C] matmuls: a tap (dy,dx)
    # sources flat row m + (dy-1)*W + (dx-1); rows shifted past the image are zero
    # filled, and taps sampling column w-1 / w+1 are masked at the width border.
    hw = height * width

    def kernel(x_ref, s_ref, b_ref, w_ref, o_ref, st_ref):
        act = jnp.maximum(x_ref[...] * s_ref[...] + b_ref[...], 0.0)   # [hw, cin] f32

        col = jax.lax.broadcasted_iota(jnp.int32, (hw, 1), 0) % width
        keep_left = col > 0             # valid when the tap samples column w-1 (dx == 0)
        keep_right = col < width - 1    # valid when the tap samples column w+1 (dx == 2)

        acc = jnp.zeros((hw, cout), jnp.float32)
        for dy in range(3):
            for dx in range(3):
                shift = (dy - 1) * width + (dx - 1)
                if shift > 0:
                    a = jnp.concatenate(
                        [act[shift:, :],
                         jnp.zeros((shift, cin), jnp.float32)], axis=0)
                elif shift < 0:
                    a = jnp.concatenate(
                        [jnp.zeros((-shift, cin), jnp.float32),
                         act[: hw + shift, :]], axis=0)
                else:
                    a = act
                if dx == 0:
                    a = jnp.where(keep_left, a, 0.0)
                elif dx == 2:
                    a = jnp.where(keep_right, a, 0.0)
                acc = acc + jnp.dot(a.astype(jnp.bfloat16), w_ref[dy, dx],
                                    preferred_element_type=jnp.float32)

        o_ref[...] = acc
        st_ref[0] = jnp.concatenate(
            [jnp.sum(acc, axis=0, keepdims=True),
             jnp.sum(acc * acc, axis=0, keepdims=True)], axis=0)

    return kernel


# --------------------------------------------------------------------------------------
# pallas_call wrappers
# --------------------------------------------------------------------------------------
def channel_stats(x, tm):
    # One tiled pass over x -> per-channel (sum, sumsq).  Padded rows of x are zero.
    mp, c = x.shape
    nt = mp // tm
    st = pl.pallas_call(
        _stats_kernel,
        grid=(nt,),
        in_specs=(pl.BlockSpec((tm, c), lambda i: (i, 0)),),
        out_specs=pl.BlockSpec((1, 2, c), lambda i: (i, 0, 0)),
        out_shape=jax.ShapeDtypeStruct((nt, 2, c), jnp.float32),
        compiler_params=_compiler_params(),
        cost_estimate=pl.CostEstimate(
            flops=2 * mp * c, transcendentals=0,
            bytes_accessed=4 * (mp * c + nt * 2 * c)),
    )(x)
    tot = jnp.sum(st, axis=0)
    return tot[0], tot[1]


def affine_relu_matmul_stats(x, scale, shift, w, tm, m_real):
    mp, cin = x.shape
    cout = w.shape[1]
    nt = mp // tm
    kernel = _make_affine_relu_matmul_stats_kernel(tm, m_real, mp)
    out, st = pl.pallas_call(
        kernel,
        grid=(nt,),
        in_specs=(
            pl.BlockSpec((tm, cin), lambda i: (i, 0)),
            pl.BlockSpec((1, cin), lambda i: (0, 0)),
            pl.BlockSpec((1, cin), lambda i: (0, 0)),
            pl.BlockSpec((cin, cout), lambda i: (0, 0)),   # weights resident across tiles
        ),
        out_specs=(
            pl.BlockSpec((tm, cout), lambda i: (i, 0)),
            pl.BlockSpec((1, 2, cout), lambda i: (i, 0, 0)),
        ),
        out_shape=(
            jax.ShapeDtypeStruct((mp, cout), jnp.float32),
            jax.ShapeDtypeStruct((nt, 2, cout), jnp.float32),
        ),
        compiler_params=_compiler_params(),
        cost_estimate=pl.CostEstimate(
            flops=2 * mp * cin * cout, transcendentals=0,
            bytes_accessed=4 * mp * (cin + cout) + 2 * cin * cout),
    )(x, scale, shift, w)
    tot = jnp.sum(st, axis=0)
    return out, tot[0], tot[1]


def conv2_3x3(x_flat, scale, shift, w2, n, height, width):
    cin = x_flat.shape[1]
    cout = w2.shape[-1]
    hw = height * width
    kernel = _make_conv2_kernel(height, width, cin, cout)
    out, st = pl.pallas_call(
        kernel,
        grid=(n,),
        in_specs=(
            pl.BlockSpec((hw, cin), lambda i: (i, 0)),
            pl.BlockSpec((1, cin), lambda i: (0, 0)),
            pl.BlockSpec((1, cin), lambda i: (0, 0)),
            pl.BlockSpec((3, 3, cin, cout), lambda i: (0, 0, 0, 0)),
        ),
        out_specs=(
            pl.BlockSpec((hw, cout), lambda i: (i, 0)),
            pl.BlockSpec((1, 2, cout), lambda i: (i, 0, 0)),
        ),
        out_shape=(
            jax.ShapeDtypeStruct((n * hw, cout), jnp.float32),
            jax.ShapeDtypeStruct((n, 2, cout), jnp.float32),
        ),
        compiler_params=_compiler_params(),
        cost_estimate=pl.CostEstimate(
            flops=2 * 9 * n * hw * cin * cout, transcendentals=0,
            bytes_accessed=4 * n * hw * (cin + cout) + 2 * 9 * cin * cout),
    )(x_flat, scale, shift, w2)
    tot = jnp.sum(st, axis=0)
    return out, tot[0], tot[1]


def affine_relu_matmul_add(x, scale, shift, w, res, tm):
    mp, cin = x.shape
    cout = w.shape[1]
    nt = mp // tm
    return pl.pallas_call(
        _affine_relu_matmul_add_kernel,
        grid=(nt,),
        in_specs=(
            pl.BlockSpec((tm, cin), lambda i: (i, 0)),
            pl.BlockSpec((1, cin), lambda i: (0, 0)),
            pl.BlockSpec((1, cin), lambda i: (0, 0)),
            pl.BlockSpec((cin, cout), lambda i: (0, 0)),
            pl.BlockSpec((tm, cout), lambda i: (i, 0)),
        ),
        out_specs=pl.BlockSpec((tm, cout), lambda i: (i, 0)),
        out_shape=jax.ShapeDtypeStruct((mp, cout), jnp.float32),
        compiler_params=_compiler_params(),
        cost_estimate=pl.CostEstimate(
            flops=2 * mp * cin * cout, transcendentals=0,
            bytes_accessed=4 * mp * (cin + 2 * cout) + 2 * cin * cout),
    )(x, scale, shift, w, res)


# --------------------------------------------------------------------------------------
# Glue: BN scale/shift from fused sums, parameter prep, forward pass
# --------------------------------------------------------------------------------------
def _scale_shift(ch_sum, ch_sumsq, m_real, gamma, beta):
    # training-mode BatchNorm2d: batch mean / biased variance (from fused sums)
    mean = ch_sum / m_real
    var = ch_sumsq / m_real - mean * mean
    scale = gamma / jnp.sqrt(var + EPS)
    shift = beta - mean * scale
    return scale[None, :], shift[None, :]          # (1, C) for lane-dense broadcast


def preact_bottleneck_forward(x_nchw, params):
    n, c_in, height, width = x_nchw.shape
    planes = params["w1"].shape[1]
    c_out = params["w3"].shape[1]                  # 4 * planes
    assert c_in == c_out                           # downsample=None path

    cin_p = _round_up(c_in, LANE)
    cp = _round_up(planes, LANE)
    cout_p = _round_up(c_out, LANE)

    m = n * height * width
    tm = min(TM, _round_up(m, 8))
    mp = _round_up(m, tm)

    # NCHW -> NHWC -> [M, C]; zero-pad to lane-dense channels and TM-aligned rows.
    x_flat = jnp.transpose(x_nchw, (0, 2, 3, 1)).reshape(m, c_in)
    x_flat = jnp.pad(x_flat, ((0, mp - m), (0, cin_p - c_in)))

    # Lane-padded bf16 weights (MXU inputs) and f32 BN affine parameters.
    w1 = jnp.pad(params["w1"], ((0, cin_p - c_in), (0, cp - planes))).astype(jnp.bfloat16)
    w2 = jnp.transpose(params["w2"], (2, 3, 1, 0))                 # OIHW -> [3,3,ci,co]
    w2 = jnp.pad(w2, ((0, 0), (0, 0), (0, cp - planes), (0, cp - planes))).astype(jnp.bfloat16)
    w3 = jnp.pad(params["w3"], ((0, cp - planes), (0, cout_p - c_out))).astype(jnp.bfloat16)
    g1 = jnp.pad(params["g1"], (0, cin_p - c_in)); b1 = jnp.pad(params["b1"], (0, cin_p - c_in))
    g2 = jnp.pad(params["g2"], (0, cp - planes));  b2 = jnp.pad(params["b2"], (0, cp - planes))
    g3 = jnp.pad(params["g3"], (0, cp - planes));  b3 = jnp.pad(params["b3"], (0, cp - planes))

    # bn1 statistics: single fused pass over x (tiny [C] finalization in JAX).
    s_x, q_x = channel_stats(x_flat, tm)
    sc1, sh1 = _scale_shift(s_x, q_x, m, g1, b1)

    # bn1-affine + relu + conv1 (1x1), with bn2 partial stats fused out.
    out1, s_o1, q_o1 = affine_relu_matmul_stats(x_flat, sc1, sh1, w1, tm, m)
    sc2, sh2 = _scale_shift(s_o1, q_o1, m, g2, b2)

    # bn2-affine + relu + conv2 (3x3, stride 1, pad 1), with bn3 partial stats fused out.
    out1_m = out1 if mp == m else out1[:m]
    out2, s_o2, q_o2 = conv2_3x3(out1_m, sc2, sh2, w2, n, height, width)
    sc3, sh3 = _scale_shift(s_o2, q_o2, m, g3, b3)

    # bn3-affine + relu + conv3 (1x1) + residual add, fused.
    out2_p = out2 if mp == m else jnp.pad(out2, ((0, mp - m), (0, 0)))
    out3 = affine_relu_matmul_add(out2_p, sc3, sh3, w3, x_flat, tm)

    out3 = out3[:m, :c_out].reshape(n, height, width, c_out)
    return jnp.transpose(out3, (0, 3, 1, 2))


def init_params(key, inplanes, planes):
    ks = jax.random.split(key, 9)

    def conv_init(k, shape, fan_in):
        return jax.random.normal(k, shape, jnp.float32) * (1.0 / math.sqrt(fan_in))

    # conv1: torch [planes, inplanes, 1, 1]  -> matmul weight [inplanes, planes]
    w1 = conv_init(ks[0], (inplanes, planes), inplanes)
    # conv2: torch [planes, planes, 3, 3]    (kept in torch OIHW layout)
    w2 = conv_init(ks[1], (planes, planes, 3, 3), planes * 9)
    # conv3: torch [4*planes, planes, 1, 1]  -> matmul weight [planes, 4*planes]
    w3 = conv_init(ks[2], (planes, 4 * planes), planes)

    return {
        "w1": w1, "w2": w2, "w3": w3,
        "g1": 1.0 + 0.1 * jax.random.normal(ks[3], (inplanes,), jnp.float32),
        "b1": 0.1 * jax.random.normal(ks[4], (inplanes,), jnp.float32),
        "g2": 1.0 + 0.1 * jax.random.normal(ks[5], (planes,), jnp.float32),
        "b2": 0.1 * jax.random.normal(ks[6], (planes,), jnp.float32),
        "g3": 1.0 + 0.1 * jax.random.normal(ks[7], (planes,), jnp.float32),
        "b3": 0.1 * jax.random.normal(ks[8], (planes,), jnp.float32),
    }


# --------------------------------------------------------------------------------------
# Pure-JAX reference (for correctness check)
# --------------------------------------------------------------------------------------
def reference_forward(x, p):
    def bn(z, g, b):
        mean = jnp.mean(z, axis=(0, 2, 3), keepdims=True)
        var = jnp.mean((z - mean) ** 2, axis=(0, 2, 3), keepdims=True)
        return (z - mean) / jnp.sqrt(var + EPS) * g[None, :, None, None] + b[None, :, None, None]

    relu = lambda z: jnp.maximum(z, 0.0)
    dn = ("NCHW", "OIHW", "NCHW")
    out = relu(bn(x, p["g1"], p["b1"]))
    out = jax.lax.conv_general_dilated(out, p["w1"].T[:, :, None, None], (1, 1), "VALID",
                                       dimension_numbers=dn)
    out = relu(bn(out, p["g2"], p["b2"]))
    out = jax.lax.conv_general_dilated(out, p["w2"], (1, 1), ((1, 1), (1, 1)),
                                       dimension_numbers=dn)
    out = relu(bn(out, p["g3"], p["b3"]))
    out = jax.lax.conv_general_dilated(out, p["w3"].T[:, :, None, None], (1, 1), "VALID",
                                       dimension_numbers=dn)
    return out + x


if __name__ == "__main__":
    key = jax.random.PRNGKey(0)
    k_x, k_p = jax.random.split(key)

    planes = 4
    inplanes = planes * 4      # expansion=4, downsample=None => inplanes == 4*planes
    N, H, W = 2, 16, 16

    x = jax.random.normal(k_x, (N, inplanes, H, W), jnp.float32)
    params = init_params(k_p, inplanes, planes)

    fwd = jax.jit(preact_bottleneck_forward)
    out = jax.block_until_ready(fwd(x, params))

    ref = jax.block_until_ready(reference_forward(x, params))
    assert out.shape == (N, 4 * planes, H, W), out.shape
    max_err = float(jnp.max(jnp.abs(out - ref)))
    assert jnp.allclose(out, ref, rtol=5e-2, atol=5e-2), max_err

    print("KERNEL_OK")
</pallas_src>

<mosaic_0001>
module attributes {stable_mosaic.version = 11 : i64} {
  func.func @_stats_kernel(%arg0: i32, %arg1: memref<256x128xf32, #tpu.memory_space<vmem>>, %arg2: memref<1x2x128xf32, #tpu.memory_space<vmem>>) attributes {dimension_semantics = [#tpu.dimension_semantics<parallel>], iteration_bounds = array<i64: 2>, scalar_prefetch = 0 : i64, scratch_operands = 0 : i64, tpu.core_type = #tpu.core_type<tc>, window_params = [{transform_indices = @transform_0, window_bounds = array<i64: 256, 128>}, {transform_indices = @transform_1, window_bounds = array<i64: 1, 2, 128>}]} {
    %c0 = arith.constant 0 : index
    %c0_0 = arith.constant 0 : index
    %0 = vector.load %arg1[%c0, %c0_0] : memref<256x128xf32, #tpu.memory_space<vmem>>, vector<256x128xf32>
    %cst = arith.constant dense<0.000000e+00> : vector<128xf32>
    %1 = vector.multi_reduction <add>, %0, %cst [0] : vector<256x128xf32> to vector<128xf32>
    %2 = vector.shape_cast %1 : vector<128xf32> to vector<1x128xf32>
    %3 = arith.mulf %0, %0 : vector<256x128xf32>
    %cst_1 = arith.constant dense<0.000000e+00> : vector<128xf32>
    %4 = vector.multi_reduction <add>, %3, %cst_1 [0] : vector<256x128xf32> to vector<128xf32>
    %5 = vector.shape_cast %4 : vector<128xf32> to vector<1x128xf32>
    %6 = tpu.concatenate %2, %5 in 0 : vector<1x128xf32>, vector<1x128xf32> -> vector<2x128xf32>
    %c0_2 = arith.constant 0 : index
    %c0_3 = arith.constant 0 : index
    %c0_4 = arith.constant 0 : index
    %7 = vector.load %arg2[%c0_2, %c0_3, %c0_4] : memref<1x2x128xf32, #tpu.memory_space<vmem>>, vector<1x2x128xf32>
    %8 = vector.shape_cast %7 : vector<1x2x128xf32> to vector<2x128xf32>
    %9 = vector.shape_cast %6 : vector<2x128xf32> to vector<1x2x128xf32>
    tpu.vector_store %arg2[%c0_2, %c0_3, %c0_4], %9 {strides = array<i32>} : memref<1x2x128xf32, #tpu.memory_space<vmem>>, vector<1x2x128xf32>,
    return
  }
  func.func @transform_0(%arg0: i32) -> (i32, i32) {
    %c0_i32 = arith.constant 0 : i32
    %c0_i32_0 = arith.constant 0 : i32
    return %arg0, %c0_i32 : i32, i32
  }
  func.func @transform_1(%arg0: i32) -> (i32, i32, i32) {
    %c0_i32 = arith.constant 0 : i32
    %c0_i32_0 = arith.constant 0 : i32
    %c0_i32_1 = arith.constant 0 : i32
    return %arg0, %c0_i32, %c0_i32_0 : i32, i32, i32
  }
}

module attributes {stable_mosaic.version = 11 : i64} {
  func.func @kernel(%arg0: i32, %arg1: memref<256x128xf32, #tpu.memory_space<vmem>>, %arg2: memref<1x128xf32, #tpu.memory_space<vmem>>, %arg3: memref<1x128xf32, #tpu.memory_space<vmem>>, %arg4: memref<128x128xbf16, #tpu.memory_space<vmem>>, %arg5: memref<256x128xf32, #tpu.memory_space<vmem>>, %arg6: memref<1x2x128xf32, #tpu.memory_space<vmem>>) attributes {dimension_semantics = [#tpu.dimension_semantics<parallel>], iteration_bounds = array<i64: 2>, scalar_prefetch = 0 : i64, scratch_operands = 0 : i64, tpu.core_type = #tpu.core_type<tc>, window_params = [{transform_indices = @transform_0, window_bounds = array<i64: 256, 128>}, {pipeline_mode = #tpu.pipeline_mode<synchronous>, transform_indices = @transform_1, window_bounds = array<i64: 1, 128>}, {pipeline_mode = #tpu.pipeline_mode<synchronous>, transform_indices = @transform_2, window_bounds = array<i64: 1, 128>}, {pipeline_mode = #tpu.pipeline_mode<synchronous>, transform_indices = @transform_3, window_bounds = array<i64: 128, 128>}, {transform_indices = @transform_4, window_bounds = array<i64: 256, 128>}, {transform_indices = @transform_5, window_bounds = array<i64: 1, 2, 128>}]} {
    %c0 = arith.constant 0 : index
    %c0_0 = arith.constant 0 : index
    %0 = vector.load %arg1[%c0, %c0_0] : memref<256x128xf32, #tpu.memory_space<vmem>>, vector<256x128xf32>
    %c0_1 = arith.constant 0 : index
    %c0_2 = arith.constant 0 : index
    %1 = vector.load %arg2[%c0_1, %c0_2] : memref<1x128xf32, #tpu.memory_space<vmem>>, vector<1x128xf32>
    %2 = vector.broadcast %1 : vector<1x128xf32> to vector<256x128xf32>
    %3 = arith.mulf %0, %2 : vector<256x128xf32>
    %c0_3 = arith.constant 0 : index
    %c0_4 = arith.constant 0 : index
    %4 = vector.load %arg3[%c0_3, %c0_4] : memref<1x128xf32, #tpu.memory_space<vmem>>, vector<1x128xf32>
    %5 = vector.broadcast %4 : vector<1x128xf32> to vector<256x128xf32>
    %6 = arith.addf %3, %5 : vector<256x128xf32>
    %cst = arith.constant 0.000000e+00 : f32
    %7 = vector.broadcast %cst : f32 to vector<256x128xf32>
    %8 = arith.maximumf %6, %7 : vector<256x128xf32>
    %9 = arith.truncf %8 : vector<256x128xf32> to vector<256x128xbf16>
    %c0_5 = arith.constant 0 : index
    %c0_6 = arith.constant 0 : index
    %10 = vector.load %arg4[%c0_5, %c0_6] : memref<128x128xbf16, #tpu.memory_space<vmem>>, vector<128x128xbf16>
    %cst_7 = arith.constant dense<0.000000e+00> : vector<256x128xf32>
    %11 = tpu.matmul %9, %10, %cst_7 {dimension_numbers = #tpu.dot_dimension_numbers<[1], [0], [0], [1], [0, 0, 1, 1], [], []>} : vector<256x128xbf16>, vector<128x128xbf16>, vector<256x128xf32> -> vector<256x128xf32>
    %c0_8 = arith.constant 0 : index
    %c0_9 = arith.constant 0 : index
    %12 = vector.load %arg5[%c0_8, %c0_9] : memref<256x128xf32, #tpu.memory_space<vmem>>, vector<256x128xf32>
    tpu.vector_store %arg5[%c0_8, %c0_9], %11 {strides = array<i32>} : memref<256x128xf32, #tpu.memory_space<vmem>>, vector<256x128xf32>,
    %cst_10 = arith.constant dense<0.000000e+00> : vector<128xf32>
    %13 = vector.multi_reduction <add>, %11, %cst_10 [0] : vector<256x128xf32> to vector<128xf32>
    %14 = vector.shape_cast %13 : vector<128xf32> to vector<1x128xf32>
    %15 = arith.mulf %11, %11 : vector<256x128xf32>
    %cst_11 = arith.constant dense<0.000000e+00> : vector<128xf32>
    %16 = vector.multi_reduction <add>, %15, %cst_11 [0] : vector<256x128xf32> to vector<128xf32>
    %17 = vector.shape_cast %16 : vector<128xf32> to vector<1x128xf32>
    %18 = tpu.concatenate %14, %17 in 0 : vector<1x128xf32>, vector<1x128xf32> -> vector<2x128xf32>
    %c0_12 = arith.constant 0 : index
    %c0_13 = arith.constant 0 : index
    %c0_14 = arith.constant 0 : index
    %19 = vector.load %arg6[%c0_12, %c0_13, %c0_14] : memref<1x2x128xf32, #tpu.memory_space<vmem>>, vector<1x2x128xf32>
    %20 = vector.shape_cast %19 : vector<1x2x128xf32> to vector<2x128xf32>
    %21 = vector.shape_cast %18 : vector<2x128xf32> to vector<1x2x128xf32>
    tpu.vector_store %arg6[%c0_12, %c0_13, %c0_14], %21 {strides = array<i32>} : memref<1x2x128xf32, #tpu.memory_space<vmem>>, vector<1x2x128xf32>,
    return
  }
  func.func @transform_0(%arg0: i32) -> (i32, i32) {
    %c0_i32 = arith.constant 0 : i32
    %c0_i32_0 = arith.constant 0 : i32
    return %arg0, %c0_i32 : i32, i32
  }
  func.func @transform_1(%arg0: i32) -> (i32, i32) {
    %c0_i32 = arith.constant 0 : i32
    %c0_i32_0 = arith.constant 0 : i32
    %c0_i32_1 = arith.constant 0 : i32
    return %c0_i32, %c0_i32_0 : i32, i32
  }
  func.func @transform_2(%arg0: i32) -> (i32, i32) {
    %c0_i32 = arith.constant 0 : i32
    %c0_i32_0 = arith.constant 0 : i32
    %c0_i32_1 = arith.constant 0 : i32
    return %c0_i32, %c0_i32_0 : i32, i32
  }
  func.func @transform_3(%arg0: i32) -> (i32, i32) {
    %c0_i32 = arith.constant 0 : i32
    %c0_i32_0 = arith.constant 0 : i32
    %c0_i32_1 = arith.constant 0 : i32
    return %c0_i32, %c0_i32_0 : i32, i32
  }
  func.func @transform_4(%arg0: i32) -> (i32, i32) {
    %c0_i32 = arith.constant 0 : i32
    %c0_i32_0 = arith.constant 0 : i32
    return %arg0, %c0_i32 : i32, i32
  }
  func.func @transform_5(%arg0: i32) -> (i32, i32, i32) {
    %c0_i32 = arith.constant 0 : i32
    %c0_i32_0 = arith.constant 0 : i32
    %c0_i32_1 = arith.constant 0 : i32
    return %arg0, %c0_i32, %c0_i32_0 : i32, i32, i32
  }
}

module attributes {stable_mosaic.version = 11 : i64} {
  func.func @kernel(%arg0: i32, %arg1: memref<256x128xf32, #tpu.memory_space<vmem>>, %arg2: memref<1x128xf32, #tpu.memory_space<vmem>>, %arg3: memref<1x128xf32, #tpu.memory_space<vmem>>, %arg4: memref<3x3x128x128xbf16, #tpu.memory_space<vmem>>, %arg5: memref<256x128xf32, #tpu.memory_space<vmem>>, %arg6: memref<1x2x128xf32, #tpu.memory_space<vmem>>) attributes {dimension_semantics = [#tpu.dimension_semantics<parallel>], iteration_bounds = array<i64: 2>, scalar_prefetch = 0 : i64, scratch_operands = 0 : i64, tpu.core_type = #tpu.core_type<tc>, window_params = [{transform_indices = @transform_0, window_bounds = array<i64: 256, 128>}, {pipeline_mode = #tpu.pipeline_mode<synchronous>, transform_indices = @transform_1, window_bounds = array<i64: 1, 128>}, {pipeline_mode = #tpu.pipeline_mode<synchronous>, transform_indices = @transform_2, window_bounds = array<i64: 1, 128>}, {pipeline_mode = #tpu.pipeline_mode<synchronous>, transform_indices = @transform_3, window_bounds = array<i64: 3, 3, 128, 128>}, {transform_indices = @transform_4, window_bounds = array<i64: 256, 128>}, {transform_indices = @transform_5, window_bounds = array<i64: 1, 2, 128>}]} {
    %c0 = arith.constant 0 : index
    %c0_0 = arith.constant 0 : index
    %0 = vector.load %arg1[%c0, %c0_0] : memref<256x128xf32, #tpu.memory_space<vmem>>, vector<256x128xf32>
    %c0_1 = arith.constant 0 : index
    %c0_2 = arith.constant 0 : index
    %1 = vector.load %arg2[%c0_1, %c0_2] : memref<1x128xf32, #tpu.memory_space<vmem>>, vector<1x128xf32>
    %2 = vector.broadcast %1 : vector<1x128xf32> to vector<256x128xf32>
    %3 = arith.mulf %0, %2 : vector<256x128xf32>
    %c0_3 = arith.constant 0 : index
    %c0_4 = arith.constant 0 : index
    %4 = vector.load %arg3[%c0_3, %c0_4] : memref<1x128xf32, #tpu.memory_space<vmem>>, vector<1x128xf32>
    %5 = vector.broadcast %4 : vector<1x128xf32> to vector<256x128xf32>
    %6 = arith.addf %3, %5 : vector<256x128xf32>
    %cst = arith.constant 0.000000e+00 : f32
    %7 = vector.broadcast %cst : f32 to vector<256x128xf32>
    %8 = arith.maximumf %6, %7 : vector<256x128xf32>
    %9 = tpu.iota {dimensions = array<i32: 0>} : vector<256x1xi32>
    %c16_i32 = arith.constant 16 : i32
    %c0_i32 = arith.constant 0 : i32
    %10 = arith.cmpi eq, %c16_i32, %c0_i32 : i32
    %c1_i32 = arith.constant 1 : i32
    %11 = arith.select %10, %c1_i32, %c16_i32 : i32
    %12 = vector.broadcast %11 : i32 to vector<256x1xi32>
    %13 = arith.remsi %9, %12 : vector<256x1xi32>
    %c0_i32_5 = arith.constant 0 : i32
    %14 = vector.broadcast %c0_i32_5 : i32 to vector<256x1xi32>
    %15 = arith.cmpi ne, %13, %14 : vector<256x1xi32>
    %c0_i32_6 = arith.constant 0 : i32
    %16 = vector.broadcast %c0_i32_6 : i32 to vector<256x1xi32>
    %17 = arith.cmpi slt, %13, %16 : vector<256x1xi32>
    %c0_i32_7 = arith.constant 0 : i32
    %18 = arith.cmpi slt, %11, %c0_i32_7 : i32
    %19 = vector.broadcast %18 : i1 to vector<256x1xi1>
    %20 = vector.broadcast %19 : vector<256x1xi1> to vector<256x1xi1>
    %21 = arith.xori %17, %20 : vector<256x1xi1>
    %22 = arith.andi %21, %15 : vector<256x1xi1>
    %23 = vector.broadcast %11 : i32 to vector<256x1xi32>
    %24 = arith.addi %13, %23 : vector<256x1xi32>
    %25 = arith.select %22, %24, %13 : vector<256x1xi1>, vector<256x1xi32>
    %c0_i32_8 = arith.constant 0 : i32
    %26 = vector.broadcast %c0_i32_8 : i32 to vector<256x1xi32>
    %27 = arith.cmpi sgt, %25, %26 : vector<256x1xi32>
    %c15_i32 = arith.constant 15 : i32
    %28 = vector.broadcast %c15_i32 : i32 to vector<256x1xi32>
    %29 = arith.cmpi slt, %25, %28 : vector<256x1xi32>
    %cst_9 = arith.constant 0.000000e+00 : f32
    %30 = vector.broadcast %cst_9 : f32 to vector<256x128xf32>
    %cst_10 = arith.constant 0.000000e+00 : f32
    %31 = vector.broadcast %cst_10 : f32 to vector<17x128xf32>
    %32 = vector.extract_strided_slice %8 {offsets = [0, 0], sizes = [239, 128], strides = [1, 1]} : vector<256x128xf32> to vector<239x128xf32>
    %33 = tpu.concatenate %31, %32 in 0 : vector<17x128xf32>, vector<239x128xf32> -> vector<256x128xf32>
    %cst_11 = arith.constant 0.000000e+00 : f32
    %34 = vector.shape_cast %27 : vector<256x1xi1> to vector<256x1xi1>
    %35 = vector.broadcast %34 : vector<256x1xi1> to vector<256x128xi1>
    %36 = vector.broadcast %cst_11 : f32 to vector<256x128xf32>
    %37 = arith.select %35, %33, %36 : vector<256x128xi1>, vector<256x128xf32>
    %38 = arith.truncf %37 : vector<256x128xf32> to vector<256x128xbf16>
    %c0_12 = arith.constant 0 : index
    %c0_13 = arith.constant 0 : index
    %c0_14 = arith.constant 0 : index
    %c0_15 = arith.constant 0 : index
    %39 = vector.load %arg4[%c0_12, %c0_13, %c0_14, %c0_15] : memref<3x3x128x128xbf16, #tpu.memory_space<vmem>>, vector<1x1x128x128xbf16>
    %40 = vector.shape_cast %39 : vector<1x1x128x128xbf16> to vector<128x128xbf16>
    %cst_16 = arith.constant dense<0.000000e+00> : vector<256x128xf32>
    %41 = tpu.matmul %38, %40, %cst_16 {dimension_numbers = #tpu.dot_dimension_numbers<[1], [0], [0], [1], [0, 0, 1, 1], [], []>} : vector<256x128xbf16>, vector<128x128xbf16>, vector<256x128xf32> -> vector<256x128xf32>
    %42 = arith.addf %30, %41 : vector<256x128xf32>
    %cst_17 = arith.constant 0.000000e+00 : f32
    %43 = vector.broadcast %cst_17 : f32 to vector<16x128xf32>
    %44 = vector.extract_strided_slice %8 {offsets = [0, 0], sizes = [240, 128], strides = [1, 1]} : vector<256x128xf32> to vector<240x128xf32>
    %45 = tpu.concatenate %43, %44 in 0 : vector<16x128xf32>, vector<240x128xf32> -> vector<256x128xf32>
    %46 = arith.truncf %45 : vector<256x128xf32> to vector<256x128xbf16>
    %c0_18 = arith.constant 0 : index
    %c1 = arith.constant 1 : index
    %c0_19 = arith.constant 0 : index
    %c0_20 = arith.constant 0 : index
    %47 = vector.load %arg4[%c0_18, %c1, %c0_19, %c0_20] : memref<3x3x128x128xbf16, #tpu.memory_space<vmem>>, vector<1x1x128x128xbf16>
    %48 = vector.shape_cast %47 : vector<1x1x128x128xbf16> to vector<128x128xbf16>
    %cst_21 = arith.constant dense<0.000000e+00> : vector<256x128xf32>
    %49 = tpu.matmul %46, %48, %cst_21 {dimension_numbers = #tpu.dot_dimension_numbers<[1], [0], [0], [1], [0, 0, 1, 1], [], []>} : vector<256x128xbf16>, vector<128x128xbf16>, vector<256x128xf32> -> vector<256x128xf32>
    %50 = arith.addf %42, %49 : vector<256x128xf32>
    %cst_22 = arith.constant 0.000000e+00 : f32
    %51 = vector.broadcast %cst_22 : f32 to vector<15x128xf32>
    %52 = vector.extract_strided_slice %8 {offsets = [0, 0], sizes = [241, 128], strides = [1, 1]} : vector<256x128xf32> to vector<241x128xf32>
    %53 = tpu.concatenate %51, %52 in 0 : vector<15x128xf32>, vector<241x128xf32> -> vector<256x128xf32>
    %cst_23 = arith.constant 0.000000e+00 : f32
    %54 = vector.shape_cast %29 : vector<256x1xi1> to vector<256x1xi1>
    %55 = vector.broadcast %54 : vector<256x1xi1> to vector<256x128xi1>
    %56 = vector.broadcast %cst_23 : f32 to vector<256x128xf32>
    %57 = arith.select %55, %53, %56 : vector<256x128xi1>, vector<256x128xf32>
    %58 = arith.truncf %57 : vector<256x128xf32> to vector<256x128xbf16>
    %c0_24 = arith.constant 0 : index
    %c2 = arith.constant 2 : index
    %c0_25 = arith.constant 0 : index
    %c0_26 = arith.constant 0 : index
    %59 = vector.load %arg4[%c0_24, %c2, %c0_25, %c0_26] : memref<3x3x128x128xbf16, #tpu.memory_space<vmem>>, vector<1x1x128x128xbf16>
    %60 = vector.shape_cast %59 : vector<1x1x128x128xbf16> to vector<128x128xbf16>
    %cst_27 = arith.constant dense<0.000000e+00> : vector<256x128xf32>
    %61 = tpu.matmul %58, %60, %cst_27 {dimension_numbers = #tpu.dot_dimension_numbers<[1], [0], [0], [1], [0, 0, 1, 1], [], []>} : vector<256x128xbf16>, vector<128x128xbf16>, vector<256x128xf32> -> vector<256x128xf32>
    %62 = arith.addf %50, %61 : vector<256x128xf32>
    %cst_28 = arith.constant 0.000000e+00 : f32
    %63 = vector.broadcast %cst_28 : f32 to vector<1x128xf32>
    %64 = vector.extract_strided_slice %8 {offsets = [0, 0], sizes = [255, 128], strides = [1, 1]} : vector<256x128xf32> to vector<255x128xf32>
    %65 = tpu.concatenate %63, %64 in 0 : vector<1x128xf32>, vector<255x128xf32> -> vector<256x128xf32>
    %cst_29 = arith.constant 0.000000e+00 : f32
    %66 = vector.shape_cast %27 : vector<256x1xi1> to vector<256x1xi1>
    %67 = vector.broadcast %66 : vector<256x1xi1> to vector<256x128xi1>
    %68 = vector.broadcast %cst_29 : f32 to vector<256x128xf32>
    %69 = arith.select %67, %65, %68 : vector<256x128xi1>, vector<256x128xf32>
    %70 = arith.truncf %69 : vector<256x128xf32> to vector<256x128xbf16>
    %c1_30 = arith.constant 1 : index
    %c0_31 = arith.constant 0 : index
    %c0_32 = arith.constant 0 : index
    %c0_33 = arith.constant 0 : index
    %71 = vector.load %arg4[%c1_30, %c0_31, %c0_32, %c0_33] : memref<3x3x128x128xbf16, #tpu.memory_space<vmem>>, vector<1x1x128x128xbf16>
    %72 = vector.shape_cast %71 : vector<1x1x128x128xbf16> to vector<128x128xbf16>
    %cst_34 = arith.constant dense<0.000000e+00> : vector<256x128xf32>
    %73 = tpu.matmul %70, %72, %cst_34 {dimension_numbers = #tpu.dot_dimension_numbers<[1], [0], [0], [1], [0, 0, 1, 1], [], []>} : vector<256x128xbf16>, vector<128x128xbf16>, vector<256x128xf32> -> vector<256x128xf32>
    %74 = arith.addf %62, %73 : vector<256x128xf32>
    %75 = arith.truncf %8 : vector<256x128xf32> to vector<256x128xbf16>
    %c1_35 = arith.constant 1 : index
    %c1_36 = arith.constant 1 : index
    %c0_37 = arith.constant 0 : index
    %c0_38 = arith.constant 0 : index
    %76 = vector.load %arg4[%c1_35, %c1_36, %c0_37, %c0_38] : memref<3x3x128x128xbf16, #tpu.memory_space<vmem>>, vector<1x1x128x128xbf16>
    %77 = vector.shape_cast %76 : vector<1x1x128x128xbf16> to vector<128x128xbf16>
    %cst_39 = arith.constant dense<0.000000e+00> : vector<256x128xf32>
    %78 = tpu.matmul %75, %77, %cst_39 {dimension_numbers = #tpu.dot_dimension_numbers<[1], [0], [0], [1], [0, 0, 1, 1], [], []>} : vector<256x128xbf16>, vector<128x128xbf16>, vector<256x128xf32> -> vector<256x128xf32>
    %79 = arith.addf %74, %78 : vector<256x128xf32>
    %80 = vector.extract_strided_slice %8 {offsets = [1, 0], sizes = [255, 128], strides = [1, 1]} : vector<256x128xf32> to vector<255x128xf32>
    %cst_40 = arith.constant 0.000000e+00 : f32
    %81 = vector.broadcast %cst_40 : f32 to vector<1x128xf32>
    %82 = tpu.concatenate %80, %81 in 0 : vector<255x128xf32>, vector<1x128xf32> -> vector<256x128xf32>
    %cst_41 = arith.constant 0.000000e+00 : f32
    %83 = vector.shape_cast %29 : vector<256x1xi1> to vector<256x1xi1>
    %84 = vector.broadcast %83 : vector<256x1xi1> to vector<256x128xi1>
    %85 = vector.broadcast %cst_41 : f32 to vector<256x128xf32>
    %86 = arith.select %84, %82, %85 : vector<256x128xi1>, vector<256x128xf32>
    %87 = arith.truncf %86 : vector<256x128xf32> to vector<256x128xbf16>
    %c1_42 = arith.constant 1 : index
    %c2_43 = arith.constant 2 : index
    %c0_44 = arith.constant 0 : index
    %c0_45 = arith.constant 0 : index
    %88 = vector.load %arg4[%c1_42, %c2_43, %c0_44, %c0_45] : memref<3x3x128x128xbf16, #tpu.memory_space<vmem>>, vector<1x1x128x128xbf16>
    %89 = vector.shape_cast %88 : vector<1x1x128x128xbf16> to vector<128x128xbf16>
    %cst_46 = arith.constant dense<0.000000e+00> : vector<256x128xf32>
    %90 = tpu.matmul %87, %89, %cst_46 {dimension_numbers = #tpu.dot_dimension_numbers<[1], [0], [0], [1], [0, 0, 1, 1], [], []>} : vector<256x128xbf16>, vector<128x128xbf16>, vector<256x128xf32> -> vector<256x128xf32>
    %91 = arith.addf %79, %90 : vector<256x128xf32>
    %92 = vector.extract_strided_slice %8 {offsets = [15, 0], sizes = [241, 128], strides = [1, 1]} : vector<256x128xf32> to vector<241x128xf32>
    %cst_47 = arith.constant 0.000000e+00 : f32
    %93 = vector.broadcast %cst_47 : f32 to vector<15x128xf32>
    %94 = tpu.concatenate %92, %93 in 0 : vector<241x128xf32>, vector<15x128xf32> -> vector<256x128xf32>
    %cst_48 = arith.constant 0.000000e+00 : f32
    %95 = vector.shape_cast %27 : vector<256x1xi1> to vector<256x1xi1>
    %96 = vector.broadcast %95 : vector<256x1xi1> to vector<256x128xi1>
    %97 = vector.broadcast %cst_48 : f32 to vector<256x128xf32>
    %98 = arith.select %96, %94, %97 : vector<256x128xi1>, vector<256x128xf32>
    %99 = arith.truncf %98 : vector<256x128xf32> to vector<256x128xbf16>
    %c2_49 = arith.constant 2 : index
    %c0_50 = arith.constant 0 : index
    %c0_51 = arith.constant 0 : index
    %c0_52 = arith.constant 0 : index
    %100 = vector.load %arg4[%c2_49, %c0_50, %c0_51, %c0_52] : memref<3x3x128x128xbf16, #tpu.memory_space<vmem>>, vector<1x1x128x128xbf16>
    %101 = vector.shape_cast %100 : vector<1x1x128x128xbf16> to vector<128x128xbf16>
    %cst_53 = arith.constant dense<0.000000e+00> : vector<256x128xf32>
    %102 = tpu.matmul %99, %101, %cst_53 {dimension_numbers = #tpu.dot_dimension_numbers<[1], [0], [0], [1], [0, 0, 1, 1], [], []>} : vector<256x128xbf16>, vector<128x128xbf16>, vector<256x128xf32> -> vector<256x128xf32>
    %103 = arith.addf %91, %102 : vector<256x128xf32>
    %104 = vector.extract_strided_slice %8 {offsets = [16, 0], sizes = [240, 128], strides = [1, 1]} : vector<256x128xf32> to vector<240x128xf32>
    %cst_54 = arith.constant 0.000000e+00 : f32
    %105 = vector.broadcast %cst_54 : f32 to vector<16x128xf32>
    %106 = tpu.concatenate %104, %105 in 0 : vector<240x128xf32>, vector<16x128xf32> -> vector<256x128xf32>
    %107 = arith.truncf %106 : vector<256x128xf32> to vector<256x128xbf16>
    %c2_55 = arith.constant 2 : index
    %c1_56 = arith.constant 1 : index
    %c0_57 = arith.constant 0 : index
    %c0_58 = arith.constant 0 : index
    %108 = vector.load %arg4[%c2_55, %c1_56, %c0_57, %c0_58] : memref<3x3x128x128xbf16, #tpu.memory_space<vmem>>, vector<1x1x128x128xbf16>
    %109 = vector.shape_cast %108 : vector<1x1x128x128xbf16> to vector<128x128xbf16>
    %cst_59 = arith.constant dense<0.000000e+00> : vector<256x128xf32>
    %110 = tpu.matmul %107, %109, %cst_59 {dimension_numbers = #tpu.dot_dimension_numbers<[1], [0], [0], [1], [0, 0, 1, 1], [], []>} : vector<256x128xbf16>, vector<128x128xbf16>, vector<256x128xf32> -> vector<256x128xf32>
    %111 = arith.addf %103, %110 : vector<256x128xf32>
    %112 = vector.extract_strided_slice %8 {offsets = [17, 0], sizes = [239, 128], strides = [1, 1]} : vector<256x128xf32> to vector<239x128xf32>
    %cst_60 = arith.constant 0.000000e+00 : f32
    %113 = vector.broadcast %cst_60 : f32 to vector<17x128xf32>
    %114 = tpu.concatenate %112, %113 in 0 : vector<239x128xf32>, vector<17x128xf32> -> vector<256x128xf32>
    %cst_61 = arith.constant 0.000000e+00 : f32
    %115 = vector.shape_cast %29 : vector<256x1xi1> to vector<256x1xi1>
    %116 = vector.broadcast %115 : vector<256x1xi1> to vector<256x128xi1>
    %117 = vector.broadcast %cst_61 : f32 to vector<256x128xf32>
    %118 = arith.select %116, %114, %117 : vector<256x128xi1>, vector<256x128xf32>
    %119 = arith.truncf %118 : vector<256x128xf32> to vector<256x128xbf16>
    %c2_62 = arith.constant 2 : index
    %c2_63 = arith.constant 2 : index
    %c0_64 = arith.constant 0 : index
    %c0_65 = arith.constant 0 : index
    %120 = vector.load %arg4[%c2_62, %c2_63, %c0_64, %c0_65] : memref<3x3x128x128xbf16, #tpu.memory_space<vmem>>, vector<1x1x128x128xbf16>
    %121 = vector.shape_cast %120 : vector<1x1x128x128xbf16> to vector<128x128xbf16>
    %cst_66 = arith.constant dense<0.000000e+00> : vector<256x128xf32>
    %122 = tpu.matmul %119, %121, %cst_66 {dimension_numbers = #tpu.dot_dimension_numbers<[1], [0], [0], [1], [0, 0, 1, 1], [], []>} : vector<256x128xbf16>, vector<128x128xbf16>, vector<256x128xf32> -> vector<256x128xf32>
    %123 = arith.addf %111, %122 : vector<256x128xf32>
    %c0_67 = arith.constant 0 : index
    %c0_68 = arith.constant 0 : index
    %124 = vector.load %arg5[%c0_67, %c0_68] : memref<256x128xf32, #tpu.memory_space<vmem>>, vector<256x128xf32>
    tpu.vector_store %arg5[%c0_67, %c0_68], %123 {strides = array<i32>} : memref<256x128xf32, #tpu.memory_space<vmem>>, vector<256x128xf32>,
    %cst_69 = arith.constant dense<0.000000e+00> : vector<128xf32>
    %125 = vector.multi_reduction <add>, %123, %cst_69 [0] : vector<256x128xf32> to vector<128xf32>
    %126 = vector.shape_cast %125 : vector<128xf32> to vector<1x128xf32>
    %127 = arith.mulf %123, %123 : vector<256x128xf32>
    %cst_70 = arith.constant dense<0.000000e+00> : vector<128xf32>
    %128 = vector.multi_reduction <add>, %127, %cst_70 [0] : vector<256x128xf32> to vector<128xf32>
    %129 = vector.shape_cast %128 : vector<128xf32> to vector<1x128xf32>
    %130 = tpu.concatenate %126, %129 in 0 : vector<1x128xf32>, vector<1x128xf32> -> vector<2x128xf32>
    %c0_71 = arith.constant 0 : index
    %c0_72 = arith.constant 0 : index
    %c0_73 = arith.constant 0 : index
    %131 = vector.load %arg6[%c0_71, %c0_72, %c0_73] : memref<1x2x128xf32, #tpu.memory_space<vmem>>, vector<1x2x128xf32>
    %132 = vector.shape_cast %131 : vector<1x2x128xf32> to vector<2x128xf32>
    %133 = vector.shape_cast %130 : vector<2x128xf32> to vector<1x2x128xf32>
    tpu.vector_store %arg6[%c0_71, %c0_72, %c0_73], %133 {strides = array<i32>} : memref<1x2x128xf32, #tpu.memory_space<vmem>>, vector<1x2x128xf32>,
    return
  }
  func.func @transform_0(%arg0: i32) -> (i32, i32) {
    %c0_i32 = arith.constant 0 : i32
    %c0_i32_0 = arith.constant 0 : i32
    return %arg0, %c0_i32 : i32, i32
  }
  func.func @transform_1(%arg0: i32) -> (i32, i32) {
    %c0_i32 = arith.constant 0 : i32
    %c0_i32_0 = arith.constant 0 : i32
    %c0_i32_1 = arith.constant 0 : i32
    return %c0_i32, %c0_i32_0 : i32, i32
  }
  func.func @transform_2(%arg0: i32) -> (i32, i32) {
    %c0_i32 = arith.constant 0 : i32
    %c0_i32_0 = arith.constant 0 : i32
    %c0_i32_1 = arith.constant 0 : i32
    return %c0_i32, %c0_i32_0 : i32, i32
  }
  func.func @transform_3(%arg0: i32) -> (i32, i32, i32, i32) {
    %c0_i32 = arith.constant 0 : i32
    %c0_i32_0 = arith.constant 0 : i32
    %c0_i32_1 = arith.constant 0 : i32
    %c0_i32_2 = arith.constant 0 : i32
    %c0_i32_3 = arith.constant 0 : i32
    return %c0_i32, %c0_i32_0, %c0_i32_1, %c0_i32_2 : i32, i32, i32, i32
  }
  func.func @transform_4(%arg0: i32) -> (i32, i32) {
    %c0_i32 = arith.constant 0 : i32
    %c0_i32_0 = arith.constant 0 : i32
    return %arg0, %c0_i32 : i32, i32
  }
  func.func @transform_5(%arg0: i32) -> (i32, i32, i32) {
    %c0_i32 = arith.constant 0 : i32
    %c0_i32_0 = arith.constant 0 : i32
    %c0_i32_1 = arith.constant 0 : i32
    return %arg0, %c0_i32, %c0_i32_0 : i32, i32, i32
  }
}

module attributes {stable_mosaic.version = 11 : i64} {
  func.func @_affine_relu_matmul_add_kernel(%arg0: i32, %arg1: memref<256x128xf32, #tpu.memory_space<vmem>>, %arg2: memref<1x128xf32, #tpu.memory_space<vmem>>, %arg3: memref<1x128xf32, #tpu.memory_space<vmem>>, %arg4: memref<128x128xbf16, #tpu.memory_space<vmem>>, %arg5: memref<256x128xf32, #tpu.memory_space<vmem>>, %arg6: memref<256x128xf32, #tpu.memory_space<vmem>>) attributes {dimension_semantics = [#tpu.dimension_semantics<parallel>], iteration_bounds = array<i64: 2>, scalar_prefetch = 0 : i64, scratch_operands = 0 : i64, tpu.core_type = #tpu.core_type<tc>, window_params = [{transform_indices = @transform_0, window_bounds = array<i64: 256, 128>}, {pipeline_mode = #tpu.pipeline_mode<synchronous>, transform_indices = @transform_1, window_bounds = array<i64: 1, 128>}, {pipeline_mode = #tpu.pipeline_mode<synchronous>, transform_indices = @transform_2, window_bounds = array<i64: 1, 128>}, {pipeline_mode = #tpu.pipeline_mode<synchronous>, transform_indices = @transform_3, window_bounds = array<i64: 128, 128>}, {transform_indices = @transform_4, window_bounds = array<i64: 256, 128>}, {transform_indices = @transform_5, window_bounds = array<i64: 256, 128>}]} {
    %c0 = arith.constant 0 : index
    %c0_0 = arith.constant 0 : index
    %0 = vector.load %arg1[%c0, %c0_0] : memref<256x128xf32, #tpu.memory_space<vmem>>, vector<256x128xf32>
    %c0_1 = arith.constant 0 : index
    %c0_2 = arith.constant 0 : index
    %1 = vector.load %arg2[%c0_1, %c0_2] : memref<1x128xf32, #tpu.memory_space<vmem>>, vector<1x128xf32>
    %2 = vector.broadcast %1 : vector<1x128xf32> to vector<256x128xf32>
    %3 = arith.mulf %0, %2 : vector<256x128xf32>
    %c0_3 = arith.constant 0 : index
    %c0_4 = arith.constant 0 : index
    %4 = vector.load %arg3[%c0_3, %c0_4] : memref<1x128xf32, #tpu.memory_space<vmem>>, vector<1x128xf32>
    %5 = vector.broadcast %4 : vector<1x128xf32> to vector<256x128xf32>
    %6 = arith.addf %3, %5 : vector<256x128xf32>
    %cst = arith.constant 0.000000e+00 : f32
    %7 = vector.broadcast %cst : f32 to vector<256x128xf32>
    %8 = arith.maximumf %6, %7 : vector<256x128xf32>
    %9 = arith.truncf %8 : vector<256x128xf32> to vector<256x128xbf16>
    %c0_5 = arith.constant 0 : index
    %c0_6 = arith.constant 0 : index
    %10 = vector.load %arg4[%c0_5, %c0_6] : memref<128x128xbf16, #tpu.memory_space<vmem>>, vector<128x128xbf16>
    %cst_7 = arith.constant dense<0.000000e+00> : vector<256x128xf32>
    %11 = tpu.matmul %9, %10, %cst_7 {dimension_numbers = #tpu.dot_dimension_numbers<[1], [0], [0], [1], [0, 0, 1, 1], [], []>} : vector<256x128xbf16>, vector<128x128xbf16>, vector<256x128xf32> -> vector<256x128xf32>
    %c0_8 = arith.constant 0 : index
    %c0_9 = arith.constant 0 : index
    %12 = vector.load %arg5[%c0_8, %c0_9] : memref<256x128xf32, #tpu.memory_space<vmem>>, vector<256x128xf32>
    %13 = arith.addf %11, %12 : vector<256x128xf32>
    %c0_10 = arith.constant 0 : index
    %c0_11 = arith.constant 0 : index
    %14 = vector.load %arg6[%c0_10, %c0_11] : memref<256x128xf32, #tpu.memory_space<vmem>>, vector<256x128xf32>
    tpu.vector_store %arg6[%c0_10, %c0_11], %13 {strides = array<i32>} : memref<256x128xf32, #tpu.memory_space<vmem>>, vector<256x128xf32>,
    return
  }
  func.func @transform_0(%arg0: i32) -> (i32, i32) {
    %c0_i32 = arith.constant 0 : i32
    %c0_i32_0 = arith.constant 0 : i32
    return %arg0, %c0_i32 : i32, i32
  }
  func.func @transform_1(%arg0: i32) -> (i32, i32) {
    %c0_i32 = arith.constant 0 : i32
    %c0_i32_0 = arith.constant 0 : i32
    %c0_i32_1 = arith.constant 0 : i32
    return %c0_i32, %c0_i32_0 : i32, i32
  }
  func.func @transform_2(%arg0: i32) -> (i32, i32) {
    %c0_i32 = arith.constant 0 : i32
    %c0_i32_0 = arith.constant 0 : i32
    %c0_i32_1 = arith.constant 0 : i32
    return %c0_i32, %c0_i32_0 : i32, i32
  }
  func.func @transform_3(%arg0: i32) -> (i32, i32) {
    %c0_i32 = arith.constant 0 : i32
    %c0_i32_0 = arith.constant 0 : i32
    %c0_i32_1 = arith.constant 0 : i32
    return %c0_i32, %c0_i32_0 : i32, i32
  }
  func.func @transform_4(%arg0: i32) -> (i32, i32) {
    %c0_i32 = arith.constant 0 : i32
    %c0_i32_0 = arith.constant 0 : i32
    return %arg0, %c0_i32 : i32, i32
  }
  func.func @transform_5(%arg0: i32) -> (i32, i32) {
    %c0_i32 = arith.constant 0 : i32
    %c0_i32_0 = arith.constant 0 : i32
    return %arg0, %c0_i32 : i32, i32
  }
}

</mosaic_0001>

<llo_original>
// kernel: preact_bottleneck_forward.4
$region0: #{preact_bottleneck_forward.4}
  #allocation0 [shape = 'u32[]', space=smem, size = 0x4, offset = 0x4, fixed_abs, tag = 'smem constant byte address 0x4 - core index']
  #allocation1 [shape = 'u32[144,128]{1,0:T(1,128)}', space=vmem, size = 0x12000, scoped, tag = 'internal scratch']
  %s0 = inlined_call_operand.vmem [shape: f32[512,128], index: 0, kind: input, shape index: {}]
  %s1 = inlined_call_operand.vmem [shape: f32[2,2,128], index: 1, kind: output, shape index: {}]
  %s2 = sld [smem:[#allocation0]]
  $region37: #{preact_bottleneck_forward.4} parent=0
    _
  %s4 = ssub.s32 1, %s2
  %s5 = scalar_select 0, %s4, %s2
  loop: start=0, step=1, limit=4
  $region2: #{preact_bottleneck_forward.4} parent=0 // loop_pre_header
    _
  $region3: #{preact_bottleneck_forward.4} parent=0 // loop_header
    %s7 = sphi 0, %s11
    %p8 = scmp.ge.s32.totalorder %s7, 4
    %s17 = sphi 0, %s19
    %s20 = sphi 0, %s17
    %s21 = sphi 0, %s20
    %s37 = sphi 0, %s21
    %s43 = sphi 0, %s45
    %s46 = sphi 0, %s43
    %s47 = sphi 0, %s46
    %s63 = sphi 0, %s47
  $region4: #{preact_bottleneck_forward.4} parent=0 // loop_header_branch
    %10 = sbr.rel (%p8) target = $region8
  $region5: #{preact_bottleneck_forward.4} parent=0 // loop_body
    %s12 = ssub.s32 %s7, 1
    %s13 = ssub.s32 %s7, 2
    %s14 = sadd.s32 %s7, 1
    %s15 = ssub.s32 %s7, %s14
    %p16 = scmp.eq.s32.totalorder %s15, 0
    %s18 = sadd.s32 %s17, 1
    %s19 = scalar_select %p16, %s17, %s18
    %p22 = pneg %p16
    %p23 = scmp.eq.s32.totalorder %s7, 1
    %p24 = por %p22, %p23
    %p25 = scmp.ne.s32.totalorder %s17, %s20
    %p26 = scmp.eq.s32.totalorder %s7, 0
    %p27 = por %p25, %p26
    %p28 = scmp.ne.s32.totalorder %s17, %s20
    %p29 = scmp.eq.s32.totalorder %s12, 1
    %p30 = por %p28, %p29
    %p31 = scmp.ne.s32.totalorder %s20, %s21
    %p32 = scmp.eq.s32.totalorder %s12, 0
    %p33 = por %p31, %p32
    %p34 = scmp.ne.s32.totalorder %s20, %s21
    %p35 = scmp.eq.s32.totalorder %s13, 1
    %p36 = por %p34, %p35
    %p38 = scmp.ne.s32.totalorder %s21, %s37
    %p39 = scmp.eq.s32.totalorder %s13, 0
    %p40 = por %p38, %p39
    %s41 = ssub.s32 %s7, %s14
    %p42 = scmp.eq.s32.totalorder %s41, 0
    %s44 = sadd.s32 %s43, 1
    %s45 = scalar_select %p42, %s43, %s44
    %p48 = pneg %p42
    %p49 = scmp.eq.s32.totalorder %s7, 1
    %p50 = por %p48, %p49
    %p51 = scmp.ne.s32.totalorder %s43, %s46
    %p52 = scmp.eq.s32.totalorder %s7, 0
    %p53 = por %p51, %p52
    %p54 = scmp.ne.s32.totalorder %s43, %s46
    %p55 = scmp.eq.s32.totalorder %s12, 1
    %p56 = por %p54, %p55
    %p57 = scmp.ne.s32.totalorder %s46, %s47
    %p58 = scmp.eq.s32.totalorder %s12, 0
    %p59 = por %p57, %p58
    %p60 = scmp.ne.s32.totalorder %s46, %s47
    %p61 = scmp.eq.s32.totalorder %s13, 1
    %p62 = por %p60, %p61
    %p64 = scmp.ne.s32.totalorder %s47, %s63
    %p65 = scmp.eq.s32.totalorder %s13, 0
    %p66 = por %p64, %p65
    %p67 = scmp.le.s32.totalorder 1, %s7
    %p68 = scmp.lt.s32.totalorder %s7, 3
    %p69 = pnand %p67, %p68
    %p70 = pneg %p69
    // Predicated region
    $region9: #{preact_bottleneck_forward.4} parent=5 // pred_check
      _
    $region10: #{preact_bottleneck_forward.4} parent=5 // pred_check_branch
      %72 = sbr.rel (%p69) target = $region12
    $region11: #{preact_bottleneck_forward.4} parent=5 // pred_region
      %s73 = ssub.s32 %s7, 1
    $region12: #{preact_bottleneck_forward.4} parent=5 // pred_fallthru
      _
    %p74 = scmp.lt.s32.totalorder %s7, 2
    // Predicated region
    $region13: #{preact_bottleneck_forward.4} parent=5 // pred_check
      %p75 = pneg %p74
    $region14: #{preact_bottleneck_forward.4} parent=5 // pred_check_branch
      %77 = sbr.rel (%p75) target = $region16
    $region15: #{preact_bottleneck_forward.4} parent=5 // pred_region
      // Predicated region
      $region17: #{preact_bottleneck_forward.4} parent=15 // pred_check
        %p78 = pneg %p27
      $region18: #{preact_bottleneck_forward.4} parent=15 // pred_check_branch
        %80 = sbr.rel (%p78) target = $region20
      $region19: #{preact_bottleneck_forward.4} parent=15 // pred_region
        %s81 = smul.u32 32, %s7
        %p82 = scmp.lt.s32.totalorder %s81, 63
        %s83 = scalar_select %p82, %s81, 63
        %s84 = smul.addr %s83, 8
        %s85 = scalar_lea.vmem %s0, %s84
        %s86 = smul.u32 32, %s7
      $region20: #{preact_bottleneck_forward.4} parent=15 // pred_fallthru
        _
    $region16: #{preact_bottleneck_forward.4} parent=5 // pred_fallthru
      _
    %p87 = scmp.le.s32.totalorder 1, %s7
    %p88 = scmp.lt.s32.totalorder %s7, 3
    %p89 = pnand %p87, %p88
    %p90 = pneg %p89
    // Predicated region
    $region21: #{preact_bottleneck_forward.4} parent=5 // pred_check
      _
    $region22: #{preact_bottleneck_forward.4} parent=5 // pred_check_branch
      %92 = sbr.rel (%p89) target = $region24
    $region23: #{preact_bottleneck_forward.4} parent=5 // pred_region
      %s93 = ssub.s32 %s7, 1
      %s94 = smul.u32 32, %s12
      %p95 = scmp.lt.s32.totalorder %s94, 63
      %s96 = scalar_select %p95, %s94, 63
      %s97 = smul.addr %s96, 8
      %s98 = scalar_lea.vmem %s0, %s97
      %p99 = pneg %p33
      %p100 = pneg %p30
      %p101 = pneg %p59
      %p102 = pneg %p56
      %p103 = scmp.lt.s32.totalorder %s12, 1
      %s104 = scalar_select %p103, %s12, 1
      %s105 = smul.addr %s104, 2
      %s106 = scalar_lea.vmem %s1, %s105
      %s107 = smul.u32 32, %s12
      %p108 = scmp.lt.s32.totalorder %s107, 63
      %s109 = scalar_select %p108, %s107, 63
      %s110 = smul.addr %s109, 8
      %s111 = scalar_lea.vmem %s0, %s110
      %s112 = smul.u32 32, %s12
      %p113 = scmp.lt.s32.totalorder %s12, 1
      %s114 = scalar_select %p113, %s12, 1
      %s115 = smul.addr %s114, 2
      %s116 = scalar_lea.vmem %s1, %s115
      %v117 = vld [vmem:[%s111] sm:$0xff]
      %v118 = vld [vmem:[%s111 + $0x8] sm:$0xff]
      %v119 = vld [vmem:[%s111 + $0x10] sm:$0xff]
      %v120 = vld [vmem:[%s111 + $0x18] sm:$0xff]
      %v121 = vld [vmem:[%s111 + $0x20] sm:$0xff]
      %v122 = vld [vmem:[%s111 + $0x28] sm:$0xff]
      %v123 = vld [vmem:[%s111 + $0x30] sm:$0xff]
      %v124 = vld [vmem:[%s111 + $0x38] sm:$0xff]
      %v125 = vld [vmem:[%s111 + $0x40] sm:$0xff]
      %v126 = vld [vmem:[%s111 + $0x48] sm:$0xff]
      %v127 = vld [vmem:[%s111 + $0x50] sm:$0xff]
      %v128 = vld [vmem:[%s111 + $0x58] sm:$0xff]
      %v129 = vld [vmem:[%s111 + $0x60] sm:$0xff]
      %v130 = vld [vmem:[%s111 + $0x68] sm:$0xff]
      %v131 = vld [vmem:[%s111 + $0x70] sm:$0xff]
      %v132 = vld [vmem:[%s111 + $0x78] sm:$0xff]
      %v133 = vld [vmem:[%s111 + $0x80] sm:$0xff]
      %v134 = vld [vmem:[%s111 + $0x88] sm:$0xff]
      %v135 = vld [vmem:[%s111 + $0x90] sm:$0xff]
      %v136 = vld [vmem:[%s111 + $0x98] sm:$0xff]
      %v137 = vld [vmem:[%s111 + $0xa0] sm:$0xff]
      %v138 = vld [vmem:[%s111 + $0xa8] sm:$0xff]
      %v139 = vld [vmem:[%s111 + $0xb0] sm:$0xff]
      %v140 = vld [vmem:[%s111 + $0xb8] sm:$0xff]
      %v141 = vld [vmem:[%s111 + $0xc0] sm:$0xff]
      %v142 = vld [vmem:[%s111 + $0xc8] sm:$0xff]
      %v143 = vld [vmem:[%s111 + $0xd0] sm:$0xff]
      %v144 = vld [vmem:[%s111 + $0xd8] sm:$0xff]
      %v145 = vld [vmem:[%s111 + $0xe0] sm:$0xff]
      %v146 = vld [vmem:[%s111 + $0xe8] sm:$0xff]
      %v147 = vld [vmem:[%s111 + $0xf0] sm:$0xff]
      %v148 = vld [vmem:[%s111 + $0xf8] sm:$0xff]
      %v149 = vadd.f32 %v117, %v118
      %v150 = vadd.f32 %v149, %v119
      %v151 = vadd.f32 %v150, %v120
      %v152 = vadd.f32 %v151, %v121
      %v153 = vadd.f32 %v152, %v122
      %v154 = vadd.f32 %v153, %v123
      %v155 = vadd.f32 %v154, %v124
      %v156 = vadd.f32 %v155, %v125
      %v157 = vadd.f32 %v156, %v126
      %v158 = vadd.f32 %v157, %v127
      %v159 = vadd.f32 %v158, %v128
      %v160 = vadd.f32 %v159, %v129
      %v161 = vadd.f32 %v160, %v130
      %v162 = vadd.f32 %v161, %v131
      %v163 = vadd.f32 %v162, %v132
      %v164 = vadd.f32 %v163, %v133
      %v165 = vadd.f32 %v164, %v134
      %v166 = vadd.f32 %v165, %v135
      %v167 = vadd.f32 %v166, %v136
      %v168 = vadd.f32 %v167, %v137
      %v169 = vadd.f32 %v168, %v138
      %v170 = vadd.f32 %v169, %v139
      %v171 = vadd.f32 %v170, %v140
      %v172 = vadd.f32 %v171, %v141
      %v173 = vadd.f32 %v172, %v142
      %v174 = vadd.f32 %v173, %v143
      %v175 = vadd.f32 %v174, %v144
      %v176 = vadd.f32 %v175, %v145
      %v177 = vadd.f32 %v176, %v146
      %v178 = vadd.f32 %v177, %v147
      %v179 = vadd.f32 %v178, %v148
      %v180 = vrot.slane %v179, 4
      %v181 = vadd.f32 %v179, %v180
      %v182 = vrot.slane %v181, 2
      %v183 = vadd.f32 %v181, %v182
      %v184 = vrot.slane %v183, 1
      %v185 = vadd.f32 %v183, %v184
      %v186 = vmul.f32 %v117, %v117
      %v187 = vmul.f32 %v118, %v118
      %v188 = vmul.f32 %v119, %v119
      %v189 = vmul.f32 %v120, %v120
      %v190 = vmul.f32 %v121, %v121
      %v191 = vmul.f32 %v122, %v122
      %v192 = vmul.f32 %v123, %v123
      %v193 = vmul.f32 %v124, %v124
      %v194 = vmul.f32 %v125, %v125
      %v195 = vmul.f32 %v126, %v126
      %v196 = vmul.f32 %v127, %v127
      %v197 = vmul.f32 %v128, %v128
      %v198 = vmul.f32 %v129, %v129
      %v199 = vmul.f32 %v130, %v130
      %v200 = vmul.f32 %v131, %v131
      %v201 = vmul.f32 %v132, %v132
      %v202 = vmul.f32 %v133, %v133
      %v203 = vmul.f32 %v134, %v134
      %v204 = vmul.f32 %v135, %v135
      %v205 = vmul.f32 %v136, %v136
      %v206 = vmul.f32 %v137, %v137
      %v207 = vmul.f32 %v138, %v138
      %v208 = vmul.f32 %v139, %v139
      %v209 = vmul.f32 %v140, %v140
      %v210 = vmul.f32 %v141, %v141
      %v211 = vmul.f32 %v142, %v142
      %v212 = vmul.f32 %v143, %v143
      %v213 = vmul.f32 %v144, %v144
      %v214 = vmul.f32 %v145, %v145
      %v215 = vmul.f32 %v146, %v146
      %v216 = vmul.f32 %v147, %v147
      %v217 = vmul.f32 %v148, %v148
      %v218 = vadd.f32 %v186, %v187
      %v219 = vadd.f32 %v218, %v188
      %v220 = vadd.f32 %v219, %v189
      %v221 = vadd.f32 %v220, %v190
      %v222 = vadd.f32 %v221, %v191
      %v223 = vadd.f32 %v222, %v192
      %v224 = vadd.f32 %v223, %v193
      %v225 = vadd.f32 %v224, %v194
      %v226 = vadd.f32 %v225, %v195
      %v227 = vadd.f32 %v226, %v196
      %v228 = vadd.f32 %v227, %v197
      %v229 = vadd.f32 %v228, %v198
      %v230 = vadd.f32 %v229, %v199
      %v231 = vadd.f32 %v230, %v200
      %v232 = vadd.f32 %v231, %v201
      %v233 = vadd.f32 %v232, %v202
      %v234 = vadd.f32 %v233, %v203
      %v235 = vadd.f32 %v234, %v204
      %v236 = vadd.f32 %v235, %v205
      %v237 = vadd.f32 %v236, %v206
      %v238 = vadd.f32 %v237, %v207
      %v239 = vadd.f32 %v238, %v208
      %v240 = vadd.f32 %v239, %v209
      %v241 = vadd.f32 %v240, %v210
      %v242 = vadd.f32 %v241, %v211
      %v243 = vadd.f32 %v242, %v212
      %v244 = vadd.f32 %v243, %v213
      %v245 = vadd.f32 %v244, %v214
      %v246 = vadd.f32 %v245, %v215
      %v247 = vadd.f32 %v246, %v216
      %v248 = vadd.f32 %v247, %v217
      %v249 = vrot.slane %v248, 4
      %v250 = vadd.f32 %v248, %v249
      %v251 = vrot.slane %v250, 2
      %v252 = vadd.f32 %v250, %v251
      %v253 = vrot.slane %v252, 1
      %v254 = vadd.f32 %v252, %v253
      %vm255 = vcmask 1040384
      %v256 = vsel %vm255, %v185, %v254
      %257 = vst [vmem:[%s116] sm:$0x3] %v256
      %p258 = scmp.lt.s32.totalorder %s12, 1
      %s259 = scalar_select %p258, %s12, 1
      %s260 = smul.addr %s259, 2
      %s261 = scalar_lea.vmem %s1, %s260
      // Predicated region
      $region25: #{preact_bottleneck_forward.4} parent=23 // pred_check
        %p262 = pneg %p56
      $region26: #{preact_bottleneck_forward.4} parent=23 // pred_check_branch
        %264 = sbr.rel (%p262) target = $region28
      $region27: #{preact_bottleneck_forward.4} parent=23 // pred_region
        _
      $region28: #{preact_bottleneck_forward.4} parent=23 // pred_fallthru
        _
    $region24: #{preact_bottleneck_forward.4} parent=5 // pred_fallthru
      _
    %p265 = scmp.le.s32.totalorder 2, %s7
    // Predicated region
    $region29: #{preact_bottleneck_forward.4} parent=5 // pred_check
      %p266 = pneg %p265
    $region30: #{preact_bottleneck_forward.4} parent=5 // pred_check_branch
      %268 = sbr.rel (%p266) target = $region32
    $region31: #{preact_bottleneck_forward.4} parent=5 // pred_region
      %s269 = ssub.s32 %s7, 2
      // Predicated region
      $region33: #{preact_bottleneck_forward.4} parent=31 // pred_check
        %p270 = pneg %p62
      $region34: #{preact_bottleneck_forward.4} parent=31 // pred_check_branch
        %272 = sbr.rel (%p270) target = $region36
      $region35: #{preact_bottleneck_forward.4} parent=31 // pred_region
        %p273 = scmp.lt.s32.totalorder %s13, 1
        %s274 = scalar_select %p273, %s13, 1
        %s275 = smul.addr %s274, 2
        %s276 = scalar_lea.vmem %s1, %s275
      $region36: #{preact_bottleneck_forward.4} parent=31 // pred_fallthru
        _
    $region32: #{preact_bottleneck_forward.4} parent=5 // pred_fallthru
      _
  $region6: #{preact_bottleneck_forward.4} parent=0 // loop_footer
    %s11 = sadd.s32 1, %s7
  $region7: #{preact_bottleneck_forward.4} parent=0 // loop_footer_branch
    %6 = sbr.rel target = $region3
  $region8: #{preact_bottleneck_forward.4} parent=0 // loop_exit
    _

// kernel: preact_bottleneck_forward.5
$region0: #{preact_bottleneck_forward.5}
  #allocation0 [shape = 'u32[]', space=smem, size = 0x4, offset = 0x4, fixed_abs, tag = 'smem constant byte address 0x4 - core index']
  #allocation1 [shape = 'u32[144,128]{1,0:T(1,128)}', space=vmem, size = 0x12000, scoped, tag = 'internal scratch']
  %s0 = inlined_call_operand.vmem [shape: f32[512,128], index: 0, kind: input, shape index: {}]
  %s1 = inlined_call_operand.vmem [shape: f32[1,128], index: 1, kind: input, shape index: {}]
  %s2 = inlined_call_operand.vmem [shape: f32[1,128], index: 2, kind: input, shape index: {}]
  %s3 = inlined_call_operand.vmem [shape: bf16[128,128], index: 3, kind: input, shape index: {}]
  %s4 = inlined_call_operand.vmem [shape: f32[512,128], index: 4, kind: output, shape index: {0}]
  %s5 = inlined_call_operand.vmem [shape: f32[2,2,128], index: 5, kind: output, shape index: {1}]
  %6 = xla_tuple %s4, %s5
  %s7 = sld [smem:[#allocation0]]
  $region57: #{preact_bottleneck_forward.5} parent=0
    _
  %s9 = ssub.s32 1, %s7
  %s10 = scalar_select 0, %s9, %s7
  loop: start=0, step=1, limit=4
  $region2: #{preact_bottleneck_forward.5} parent=0 // loop_pre_header
    _
  $region3: #{preact_bottleneck_forward.5} parent=0 // loop_header
    %s12 = sphi 0, %s16
    %p13 = scmp.ge.s32.totalorder %s12, 4
    %s22 = sphi 0, %s24
    %s25 = sphi 0, %s22
    %s26 = sphi 0, %s25
    %s42 = sphi 0, %s26
    %s46 = sphi 0, %s46
    %s48 = sphi 0, %s46
    %s49 = sphi 0, %s48
    %s63 = sphi 0, %s49
    %s67 = sphi 0, %s67
    %s69 = sphi 0, %s67
    %s70 = sphi 0, %s69
    %s84 = sphi 0, %s70
    %s88 = sphi 0, %s88
    %s90 = sphi 0, %s88
    %s91 = sphi 0, %s90
    %s105 = sphi 0, %s91
    %s111 = sphi 0, %s113
    %s114 = sphi 0, %s111
    %s115 = sphi 0, %s114
    %s131 = sphi 0, %s115
    %s137 = sphi 0, %s139
    %s140 = sphi 0, %s137
    %s141 = sphi 0, %s140
    %s157 = sphi 0, %s141
  $region4: #{preact_bottleneck_forward.5} parent=0 // loop_header_branch
    %15 = sbr.rel (%p13) target = $region8
  $region5: #{preact_bottleneck_forward.5} parent=0 // loop_body
    %s17 = ssub.s32 %s12, 1
    %s18 = ssub.s32 %s12, 2
    %s19 = sadd.s32 %s12, 1
    %s20 = ssub.s32 %s12, %s19
    %p21 = scmp.eq.s32.totalorder %s20, 0
    %s23 = sadd.s32 %s22, 1
    %s24 = scalar_select %p21, %s22, %s23
    %p27 = pneg %p21
    %p28 = scmp.eq.s32.totalorder %s12, 1
    %p29 = por %p27, %p28
    %p30 = scmp.ne.s32.totalorder %s22, %s25
    %p31 = scmp.eq.s32.totalorder %s12, 0
    %p32 = por %p30, %p31
    %p33 = scmp.ne.s32.totalorder %s22, %s25
    %p34 = scmp.eq.s32.totalorder %s17, 1
    %p35 = por %p33, %p34
    %p36 = scmp.ne.s32.totalorder %s25, %s26
    %p37 = scmp.eq.s32.totalorder %s17, 0
    %p38 = por %p36, %p37
    %p39 = scmp.ne.s32.totalorder %s25, %s26
    %p40 = scmp.eq.s32.totalorder %s18, 1
    %p41 = por %p39, %p40
    %p43 = scmp.ne.s32.totalorder %s26, %s42
    %p44 = scmp.eq.s32.totalorder %s18, 0
    %p45 = por %p43, %p44
    %s47 = sadd.s32 %s46, 1
    %p50 = scmp.eq.s32.totalorder %s12, 1
    %p51 = scmp.ne.s32.totalorder %s46, %s48
    %p52 = scmp.eq.s32.totalorder %s12, 0
    %p53 = por %p51, %p52
    %p54 = scmp.ne.s32.totalorder %s46, %s48
    %p55 = scmp.eq.s32.totalorder %s17, 1
    %p56 = por %p54, %p55
    %p57 = scmp.ne.s32.totalorder %s48, %s49
    %p58 = scmp.eq.s32.totalorder %s17, 0
    %p59 = por %p57, %p58
    %p60 = scmp.ne.s32.totalorder %s48, %s49
    %p61 = scmp.eq.s32.totalorder %s18, 1
    %p62 = por %p60, %p61
    %p64 = scmp.ne.s32.totalorder %s49, %s63
    %p65 = scmp.eq.s32.totalorder %s18, 0
    %p66 = por %p64, %p65
    %s68 = sadd.s32 %s67, 1
    %p71 = scmp.eq.s32.totalorder %s12, 1
    %p72 = scmp.ne.s32.totalorder %s67, %s69
    %p73 = scmp.eq.s32.totalorder %s12, 0
    %p74 = por %p72, %p73
    %p75 = scmp.ne.s32.totalorder %s67, %s69
    %p76 = scmp.eq.s32.totalorder %s17, 1
    %p77 = por %p75, %p76
    %p78 = scmp.ne.s32.totalorder %s69, %s70
    %p79 = scmp.eq.s32.totalorder %s17, 0
    %p80 = por %p78, %p79
    %p81 = scmp.ne.s32.totalorder %s69, %s70
    %p82 = scmp.eq.s32.totalorder %s18, 1
    %p83 = por %p81, %p82
    %p85 = scmp.ne.s32.totalorder %s70, %s84
    %p86 = scmp.eq.s32.totalorder %s18, 0
    %p87 = por %p85, %p86
    %s89 = sadd.s32 %s88, 1
    %p92 = scmp.eq.s32.totalorder %s12, 1
    %p93 = scmp.ne.s32.totalorder %s88, %s90
    %p94 = scmp.eq.s32.totalorder %s12, 0
    %p95 = por %p93, %p94
    %p96 = scmp.ne.s32.totalorder %s88, %s90
    %p97 = scmp.eq.s32.totalorder %s17, 1
    %p98 = por %p96, %p97
    %p99 = scmp.ne.s32.totalorder %s90, %s91
    %p100 = scmp.eq.s32.totalorder %s17, 0
    %p101 = por %p99, %p100
    %p102 = scmp.ne.s32.totalorder %s90, %s91
    %p103 = scmp.eq.s32.totalorder %s18, 1
    %p104 = por %p102, %p103
    %p106 = scmp.ne.s32.totalorder %s91, %s105
    %p107 = scmp.eq.s32.totalorder %s18, 0
    %p108 = por %p106, %p107
    %s109 = ssub.s32 %s12, %s19
    %p110 = scmp.eq.s32.totalorder %s109, 0
    %s112 = sadd.s32 %s111, 1
    %s113 = scalar_select %p110, %s111, %s112
    %p116 = pneg %p110
    %p117 = scmp.eq.s32.totalorder %s12, 1
    %p118 = por %p116, %p117
    %p119 = scmp.ne.s32.totalorder %s111, %s114
    %p120 = scmp.eq.s32.totalorder %s12, 0
    %p121 = por %p119, %p120
    %p122 = scmp.ne.s32.totalorder %s111, %s114
    %p123 = scmp.eq.s32.totalorder %s17, 1
    %p124 = por %p122, %p123
    %p125 = scmp.ne.s32.totalorder %s114, %s115
    %p126 = scmp.eq.s32.totalorder %s17, 0
    %p127 = por %p125, %p126
    %p128 = scmp.ne.s32.totalorder %s114, %s115
    %p129 = scmp.eq.s32.totalorder %s18, 1
    %p130 = por %p128, %p129
    %p132 = scmp.ne.s32.totalorder %s115, %s131
    %p133 = scmp.eq.s32.totalorder %s18, 0
    %p134 = por %p132, %p133
    %s135 = ssub.s32 %s12, %s19
    %p136 = scmp.eq.s32.totalorder %s135, 0
    %s138 = sadd.s32 %s137, 1
    %s139 = scalar_select %p136, %s137, %s138
    %p142 = pneg %p136
    %p143 = scmp.eq.s32.totalorder %s12, 1
    %p144 = por %p142, %p143
    %p145 = scmp.ne.s32.totalorder %s137, %s140
    %p146 = scmp.eq.s32.totalorder %s12, 0
    %p147 = por %p145, %p146
    %p148 = scmp.ne.s32.totalorder %s137, %s140
    %p149 = scmp.eq.s32.totalorder %s17, 1
    %p150 = por %p148, %p149
    %p151 = scmp.ne.s32.totalorder %s140, %s141
    %p152 = scmp.eq.s32.totalorder %s17, 0
    %p153 = por %p151, %p152
    %p154 = scmp.ne.s32.totalorder %s140, %s141
    %p155 = scmp.eq.s32.totalorder %s18, 1
    %p156 = por %p154, %p155
    %p158 = scmp.ne.s32.totalorder %s141, %s157
    %p159 = scmp.eq.s32.totalorder %s18, 0
    %p160 = por %p158, %p159
    %p161 = scmp.le.s32.totalorder 1, %s12
    %p162 = scmp.lt.s32.totalorder %s12, 3
    %p163 = pnand %p161, %p162
    %p164 = pneg %p163
    // Predicated region
    $region9: #{preact_bottleneck_forward.5} parent=5 // pred_check
      _
    $region10: #{preact_bottleneck_forward.5} parent=5 // pred_check_branch
      %166 = sbr.rel (%p163) target = $region12
    $region11: #{preact_bottleneck_forward.5} parent=5 // pred_region
      %s167 = ssub.s32 %s12, 1
      // Predicated region
      $region13: #{preact_bottleneck_forward.5} parent=11 // pred_check
        %p168 = pneg %p59
      $region14: #{preact_bottleneck_forward.5} parent=11 // pred_check_branch
        %170 = sbr.rel (%p168) target = $region16
      $region15: #{preact_bottleneck_forward.5} parent=11 // pred_region
        _
      $region16: #{preact_bottleneck_forward.5} parent=11 // pred_fallthru
        _
      // Predicated region
      $region17: #{preact_bottleneck_forward.5} parent=11 // pred_check
        %p171 = pneg %p80
      $region18: #{preact_bottleneck_forward.5} parent=11 // pred_check_branch
        %173 = sbr.rel (%p171) target = $region20
      $region19: #{preact_bottleneck_forward.5} parent=11 // pred_region
        _
      $region20: #{preact_bottleneck_forward.5} parent=11 // pred_fallthru
        _
      // Predicated region
      $region21: #{preact_bottleneck_forward.5} parent=11 // pred_check
        %p174 = pneg %p101
      $region22: #{preact_bottleneck_forward.5} parent=11 // pred_check_branch
        %176 = sbr.rel (%p174) target = $region24
      $region23: #{preact_bottleneck_forward.5} parent=11 // pred_region
        _
      $region24: #{preact_bottleneck_forward.5} parent=11 // pred_fallthru
        _
    $region12: #{preact_bottleneck_forward.5} parent=5 // pred_fallthru
      _
    %p177 = scmp.lt.s32.totalorder %s12, 2
    // Predicated region
    $region25: #{preact_bottleneck_forward.5} parent=5 // pred_check
      %p178 = pneg %p177
    $region26: #{preact_bottleneck_forward.5} parent=5 // pred_check_branch
      %180 = sbr.rel (%p178) target = $region28
    $region27: #{preact_bottleneck_forward.5} parent=5 // pred_region
      // Predicated region
      $region29: #{preact_bottleneck_forward.5} parent=27 // pred_check
        %p181 = pneg %p32
      $region30: #{preact_bottleneck_forward.5} parent=27 // pred_check_branch
        %183 = sbr.rel (%p181) target = $region32
      $region31: #{preact_bottleneck_forward.5} parent=27 // pred_region
        %s184 = smul.u32 32, %s12
        %p185 = scmp.lt.s32.totalorder %s184, 63
        %s186 = scalar_select %p185, %s184, 63
        %s187 = smul.addr %s186, 8
        %s188 = scalar_lea.vmem %s0, %s187
        %s189 = smul.u32 32, %s12
      $region32: #{preact_bottleneck_forward.5} parent=27 // pred_fallthru
        _
    $region28: #{preact_bottleneck_forward.5} parent=5 // pred_fallthru
      _
    %p190 = scmp.le.s32.totalorder 1, %s12
    %p191 = scmp.lt.s32.totalorder %s12, 3
    %p192 = pnand %p190, %p191
    %p193 = pneg %p192
    // Predicated region
    $region33: #{preact_bottleneck_forward.5} parent=5 // pred_check
      _
    $region34: #{preact_bottleneck_forward.5} parent=5 // pred_check_branch
      %195 = sbr.rel (%p192) target = $region36
    $region35: #{preact_bottleneck_forward.5} parent=5 // pred_region
      %s196 = ssub.s32 %s12, 1
      %s197 = smul.u32 32, %s17
      %p198 = scmp.lt.s32.totalorder %s197, 63
      %s199 = scalar_select %p198, %s197, 63
      %s200 = smul.addr %s199, 8
      %s201 = scalar_lea.vmem %s0, %s200
      %p202 = pneg %p38
      %p203 = pneg %p35
      %p204 = pneg %p59
      %p205 = pneg %p56
      %p206 = pneg %p80
      %p207 = pneg %p77
      %p208 = pneg %p101
      %p209 = pneg %p98
      %p210 = pneg %p127
      %p211 = pneg %p124
      %s212 = smul.u32 32, %s17
      %p213 = scmp.lt.s32.totalorder %s212, 63
      %s214 = scalar_select %p213, %s212, 63
      %s215 = smul.addr %s214, 8
      %s216 = scalar_lea.vmem %s4, %s215
      %p217 = pneg %p153
      %p218 = pneg %p150
      %p219 = scmp.lt.s32.totalorder %s17, 1
      %s220 = scalar_select %p219, %s17, 1
      %s221 = smul.addr %s220, 2
      %s222 = scalar_lea.vmem %s5, %s221
      %s223 = smul.u32 32, %s17
      %p224 = scmp.lt.s32.totalorder %s223, 63
      %s225 = scalar_select %p224, %s223, 63
      %s226 = smul.addr %s225, 8
      %s227 = scalar_lea.vmem %s0, %s226
      %s228 = smul.u32 32, %s17
      %s229 = smul.u32 32, %s17
      %p230 = scmp.lt.s32.totalorder %s229, 63
      %s231 = scalar_select %p230, %s229, 63
      %s232 = smul.addr %s231, 8
      %s233 = scalar_lea.vmem %s4, %s232
      %s234 = smul.u32 32, %s17
      %p235 = scmp.lt.s32.totalorder %s17, 1
      %s236 = scalar_select %p235, %s17, 1
      %s237 = smul.addr %s236, 2
      %s238 = scalar_lea.vmem %s5, %s237
      %v240 = vld [vmem:[%s227] sm:$0xff]
      %v241 = vld [vmem:[%s227 + $0x8] sm:$0xff]
      %v242 = vld [vmem:[%s227 + $0x10] sm:$0xff]
      %v243 = vld [vmem:[%s227 + $0x18] sm:$0xff]
      %v244 = vld [vmem:[%s227 + $0x20] sm:$0xff]
      %v245 = vld [vmem:[%s227 + $0x28] sm:$0xff]
      %v246 = vld [vmem:[%s227 + $0x30] sm:$0xff]
      %v247 = vld [vmem:[%s227 + $0x38] sm:$0xff]
      %v248 = vld [vmem:[%s227 + $0x40] sm:$0xff]
      %v249 = vld [vmem:[%s227 + $0x48] sm:$0xff]
      %v250 = vld [vmem:[%s227 + $0x50] sm:$0xff]
      %v251 = vld [vmem:[%s227 + $0x58] sm:$0xff]
      %v252 = vld [vmem:[%s227 + $0x60] sm:$0xff]
      %v253 = vld [vmem:[%s227 + $0x68] sm:$0xff]
      %v254 = vld [vmem:[%s227 + $0x70] sm:$0xff]
      %v255 = vld [vmem:[%s227 + $0x78] sm:$0xff]
      %v256 = vld [vmem:[%s227 + $0x80] sm:$0xff]
      %v257 = vld [vmem:[%s227 + $0x88] sm:$0xff]
      %v258 = vld [vmem:[%s227 + $0x90] sm:$0xff]
      %v259 = vld [vmem:[%s227 + $0x98] sm:$0xff]
      %v260 = vld [vmem:[%s227 + $0xa0] sm:$0xff]
      %v261 = vld [vmem:[%s227 + $0xa8] sm:$0xff]
      %v262 = vld [vmem:[%s227 + $0xb0] sm:$0xff]
      %v263 = vld [vmem:[%s227 + $0xb8] sm:$0xff]
      %v264 = vld [vmem:[%s227 + $0xc0] sm:$0xff]
      %v265 = vld [vmem:[%s227 + $0xc8] sm:$0xff]
      %v266 = vld [vmem:[%s227 + $0xd0] sm:$0xff]
      %v267 = vld [vmem:[%s227 + $0xd8] sm:$0xff]
      %v268 = vld [vmem:[%s227 + $0xe0] sm:$0xff]
      %v269 = vld [vmem:[%s227 + $0xe8] sm:$0xff]
      %v270 = vld [vmem:[%s227 + $0xf0] sm:$0xff]
      %v271 = vld [vmem:[%s227 + $0xf8] sm:$0xff]
      %v272 = vld [vmem:[%s1] sm:$0x1]
      %v274 = vlaneseq
      %v275 = vshrl.u32 %v274, 7
      %v276 = vsub.s32 0, %v275
      %v277 = vrot.slane %v272, %v276
      %v279 = vmul.f32 %v240, %v277
      %v280 = vmul.f32 %v241, %v277
      %v281 = vmul.f32 %v242, %v277
      %v282 = vmul.f32 %v243, %v277
      %v283 = vmul.f32 %v244, %v277
      %v284 = vmul.f32 %v245, %v277
      %v285 = vmul.f32 %v246, %v277
      %v286 = vmul.f32 %v247, %v277
      %v287 = vmul.f32 %v248, %v277
      %v288 = vmul.f32 %v249, %v277
      %v289 = vmul.f32 %v250, %v277
      %v290 = vmul.f32 %v251, %v277
      %v291 = vmul.f32 %v252, %v277
      %v292 = vmul.f32 %v253, %v277
      %v293 = vmul.f32 %v254, %v277
      %v294 = vmul.f32 %v255, %v277
      %v295 = vmul.f32 %v256, %v277
      %v296 = vmul.f32 %v257, %v277
      %v297 = vmul.f32 %v258, %v277
      %v298 = vmul.f32 %v259, %v277
      %v299 = vmul.f32 %v260, %v277
      %v300 = vmul.f32 %v261, %v277
      %v301 = vmul.f32 %v262, %v277
      %v302 = vmul.f32 %v263, %v277
      %v303 = vmul.f32 %v264, %v277
      %v304 = vmul.f32 %v265, %v277
      %v305 = vmul.f32 %v266, %v277
      %v306 = vmul.f32 %v267, %v277
      %v307 = vmul.f32 %v268, %v277
      %v308 = vmul.f32 %v269, %v277
      %v309 = vmul.f32 %v270, %v277
      %v310 = vmul.f32 %v271, %v277
      %v311 = vld [vmem:[%s2] sm:$0x1]
      %v313 = vlaneseq
      %v314 = vshrl.u32 %v313, 7
      %v315 = vsub.s32 0, %v314
      %v316 = vrot.slane %v311, %v315
      %v318 = vadd.f32 %v279, %v316
      %v319 = vadd.f32 %v280, %v316
      %v320 = vadd.f32 %v281, %v316
      %v321 = vadd.f32 %v282, %v316
      %v322 = vadd.f32 %v283, %v316
      %v323 = vadd.f32 %v284, %v316
      %v324 = vadd.f32 %v285, %v316
      %v325 = vadd.f32 %v286, %v316
      %v326 = vadd.f32 %v287, %v316
      %v327 = vadd.f32 %v288, %v316
      %v328 = vadd.f32 %v289, %v316
      %v329 = vadd.f32 %v290, %v316
      %v330 = vadd.f32 %v291, %v316
      %v331 = vadd.f32 %v292, %v316
      %v332 = vadd.f32 %v293, %v316
      %v333 = vadd.f32 %v294, %v316
      %v334 = vadd.f32 %v295, %v316
      %v335 = vadd.f32 %v296, %v316
      %v336 = vadd.f32 %v297, %v316
      %v337 = vadd.f32 %v298, %v316
      %v338 = vadd.f32 %v299, %v316
      %v339 = vadd.f32 %v300, %v316
      %v340 = vadd.f32 %v301, %v316
      %v341 = vadd.f32 %v302, %v316
      %v342 = vadd.f32 %v303, %v316
      %v343 = vadd.f32 %v304, %v316
      %v344 = vadd.f32 %v305, %v316
      %v345 = vadd.f32 %v306, %v316
      %v346 = vadd.f32 %v307, %v316
      %v347 = vadd.f32 %v308, %v316
      %v348 = vadd.f32 %v309, %v316
      %v349 = vadd.f32 %v310, %v316
      %v350 = vmax.f32 %v318, 0.0
      %v351 = vmax.f32 %v319, 0.0
      %v352 = vmax.f32 %v320, 0.0
      %v353 = vmax.f32 %v321, 0.0
      %v354 = vmax.f32 %v322, 0.0
      %v355 = vmax.f32 %v323, 0.0
      %v356 = vmax.f32 %v324, 0.0
      %v357 = vmax.f32 %v325, 0.0
      %v358 = vmax.f32 %v326, 0.0
      %v359 = vmax.f32 %v327, 0.0
      %v360 = vmax.f32 %v328, 0.0
      %v361 = vmax.f32 %v329, 0.0
      %v362 = vmax.f32 %v330, 0.0
      %v363 = vmax.f32 %v331, 0.0
      %v364 = vmax.f32 %v332, 0.0
      %v365 = vmax.f32 %v333, 0.0
      %v366 = vmax.f32 %v334, 0.0
      %v367 = vmax.f32 %v335, 0.0
      %v368 = vmax.f32 %v336, 0.0
      %v369 = vmax.f32 %v337, 0.0
      %v370 = vmax.f32 %v338, 0.0
      %v371 = vmax.f32 %v339, 0.0
      %v372 = vmax.f32 %v340, 0.0
      %v373 = vmax.f32 %v341, 0.0
      %v374 = vmax.f32 %v342, 0.0
      %v375 = vmax.f32 %v343, 0.0
      %v376 = vmax.f32 %v344, 0.0
      %v377 = vmax.f32 %v345, 0.0
      %v378 = vmax.f32 %v346, 0.0
      %v379 = vmax.f32 %v347, 0.0
      %v380 = vmax.f32 %v348, 0.0
      %v381 = vmax.f32 %v349, 0.0
      %v382 = vpack.c.bf16 %v351, %v350
      %v383 = vpack.c.bf16 %v353, %v352
      %v384 = vpack.c.bf16 %v355, %v354
      %v385 = vpack.c.bf16 %v357, %v356
      %v386 = vpack.c.bf16 %v359, %v358
      %v387 = vpack.c.bf16 %v361, %v360
      %v388 = vpack.c.bf16 %v363, %v362
      %v389 = vpack.c.bf16 %v365, %v364
      %v390 = vpack.c.bf16 %v367, %v366
      %v391 = vpack.c.bf16 %v369, %v368
      %v392 = vpack.c.bf16 %v371, %v370
      %v393 = vpack.c.bf16 %v373, %v372
      %v394 = vpack.c.bf16 %v375, %v374
      %v395 = vpack.c.bf16 %v377, %v376
      %v396 = vpack.c.bf16 %v379, %v378
      %v397 = vpack.c.bf16 %v381, %v380
      %v398 = vld [vmem:[%s3] sm:$0xf]
      %v399 = vld [vmem:[%s3 + $0x4] sm:$0xf]
      %v400 = vld [vmem:[%s3 + $0x8] sm:$0xf]
      %v401 = vld [vmem:[%s3 + $0xc] sm:$0xf]
      %v402 = vld [vmem:[%s3 + $0x10] sm:$0xf]
      %v403 = vld [vmem:[%s3 + $0x14] sm:$0xf]
      %v404 = vld [vmem:[%s3 + $0x18] sm:$0xf]
      %v405 = vld [vmem:[%s3 + $0x1c] sm:$0xf]
      %v406 = vld [vmem:[%s3 + $0x20] sm:$0xf]
      %v407 = vld [vmem:[%s3 + $0x24] sm:$0xf]
      %v408 = vld [vmem:[%s3 + $0x28] sm:$0xf]
      %v409 = vld [vmem:[%s3 + $0x2c] sm:$0xf]
      %v410 = vld [vmem:[%s3 + $0x30] sm:$0xf]
      %v411 = vld [vmem:[%s3 + $0x34] sm:$0xf]
      %v412 = vld [vmem:[%s3 + $0x38] sm:$0xf]
      %v413 = vld [vmem:[%s3 + $0x3c] sm:$0xf]
      %v430 = vunpack.c.l.b16 %v398
      %v431 = vunpack.c.l.b16 %v399
      %v432 = vunpack.c.l.b16 %v400
      %v433 = vunpack.c.l.b16 %v401
      %v434 = vunpack.c.l.b16 %v402
      %v435 = vunpack.c.l.b16 %v403
      %v436 = vunpack.c.l.b16 %v404
      %v437 = vunpack.c.l.b16 %v405
      %v438 = vunpack.c.l.b16 %v406
      %v439 = vunpack.c.l.b16 %v407
      %v440 = vunpack.c.l.b16 %v408
      %v441 = vunpack.c.l.b16 %v409
      %v442 = vunpack.c.l.b16 %v410
      %v443 = vunpack.c.l.b16 %v411
      %v444 = vunpack.c.l.b16 %v412
      %v445 = vunpack.c.l.b16 %v413
      %v446 = vpack.c.b16 %v431, %v430
      %v447 = vpack.c.b16 %v433, %v432
      %v448 = vpack.c.b16 %v435, %v434
      %v449 = vpack.c.b16 %v437, %v436
      %v450 = vpack.c.b16 %v439, %v438
      %v451 = vpack.c.b16 %v441, %v440
      %v452 = vpack.c.b16 %v443, %v442
      %v453 = vpack.c.b16 %v445, %v444
      %462 = vmatprep.subr.bf16.mxu0 0
      %463 = vmatpush1.bf16.msra.mxu0 %v446
      %464 = vmatprep.subr.bf16.mxu0 0
      %465 = vmatpush1.bf16.msra.mxu0 %v447
      %466 = vmatprep.subr.bf16.mxu0 0
      %467 = vmatpush1.bf16.msra.mxu0 %v448
      %468 = vmatprep.subr.bf16.mxu0 0
      %469 = vmatpush1.bf16.msra.mxu0 %v449
      %470 = vmatprep.subr.bf16.mxu0 0
      %471 = vmatpush1.bf16.msra.mxu0 %v450
      %472 = vmatprep.subr.bf16.mxu0 0
      %473 = vmatpush1.bf16.msra.mxu0 %v451
      %474 = vmatprep.subr.bf16.mxu0 0
      %475 = vmatpush1.bf16.msra.mxu0 %v452
      %476 = vmatprep.subr.bf16.mxu0 0
      %477 = vmatpush1.bf16.msra.mxu0 %v453
      %478 = vmatprep.subr.bf16.mxu0 0
      %479 = vmatpush1.bf16.msra.mxu0 0
      %480 = vmatprep.subr.bf16.mxu0 0
      %481 = vmatpush1.bf16.msra.mxu0 0
      %482 = vmatprep.subr.bf16.mxu0 0
      %483 = vmatpush1.bf16.msra.mxu0 0
      %484 = vmatprep.subr.bf16.mxu0 0
      %485 = vmatpush1.bf16.msra.mxu0 0
      %486 = vmatprep.subr.bf16.mxu0 0
      %487 = vmatpush1.bf16.msra.mxu0 0
      %488 = vmatprep.subr.bf16.mxu0 0
      %489 = vmatpush1.bf16.msra.mxu0 0
      %490 = vmatprep.subr.bf16.mxu0 0
      %491 = vmatpush1.bf16.msra.mxu0 0
      %492 = vmatprep.subr.bf16.mxu0 0
      %493 = vmatpush1.bf16.msra.mxu0 0
      %494 = vmatprep.mubr.bf16.mxu0 0
      %495 = vmatmul.mubr.bf16.gmra.mrb[0].mxu0 %v382
      %v496 = vpop.f32.mrb[0].mxu0
      %v497 = vadd.f32 0.0, %v496
      %v498 = vpop.f32.mrb[0].mxu0
      %v499 = vpop.f32.mrb[0].mxu0
      %v500 = vadd.f32 0.0, %v499
      %v501 = vpop.f32.mrb[0].mxu0
      %502 = vmatprep.mubr.bf16.mxu0 0
      %503 = vmatmul.mubr.bf16.gmra.mrb[0].mxu0 %v383
      %v504 = vpop.f32.mrb[0].mxu0
      %v505 = vadd.f32 0.0, %v504
      %v506 = vpop.f32.mrb[0].mxu0
      %v507 = vpop.f32.mrb[0].mxu0
      %v508 = vadd.f32 0.0, %v507
      %v509 = vpop.f32.mrb[0].mxu0
      %510 = vmatprep.mubr.bf16.mxu0 0
      %511 = vmatmul.mubr.bf16.gmra.mrb[0].mxu0 %v384
      %v512 = vpop.f32.mrb[0].mxu0
      %v513 = vadd.f32 0.0, %v512
      %v514 = vpop.f32.mrb[0].mxu0
      %v515 = vpop.f32.mrb[0].mxu0
      %v516 = vadd.f32 0.0, %v515
      %v517 = vpop.f32.mrb[0].mxu0
      %518 = vmatprep.mubr.bf16.mxu0 0
      %519 = vmatmul.mubr.bf16.gmra.mrb[0].mxu0 %v385
      %v520 = vpop.f32.mrb[0].mxu0
      %v521 = vadd.f32 0.0, %v520
      %v522 = vpop.f32.mrb[0].mxu0
      %v523 = vpop.f32.mrb[0].mxu0
      %v524 = vadd.f32 0.0, %v523
      %v525 = vpop.f32.mrb[0].mxu0
      %526 = vmatprep.mubr.bf16.mxu0 0
      %527 = vmatmul.mubr.bf16.gmra.mrb[0].mxu0 %v386
      %v528 = vpop.f32.mrb[0].mxu0
      %v529 = vadd.f32 0.0, %v528
      %v530 = vpop.f32.mrb[0].mxu0
      %v531 = vpop.f32.mrb[0].mxu0
      %v532 = vadd.f32 0.0, %v531
      %v533 = vpop.f32.mrb[0].mxu0
      %534 = vmatprep.mubr.bf16.mxu0 0
      %535 = vmatmul.mubr.bf16.gmra.mrb[0].mxu0 %v387
      %v536 = vpop.f32.mrb[0].mxu0
      %v537 = vadd.f32 0.0, %v536
      %v538 = vpop.f32.mrb[0].mxu0
      %v539 = vpop.f32.mrb[0].mxu0
      %v540 = vadd.f32 0.0, %v539
      %v541 = vpop.f32.mrb[0].mxu0
      %542 = vmatprep.mubr.bf16.mxu0 0
      %543 = vmatmul.mubr.bf16.gmra.mrb[0].mxu0 %v388
      %v544 = vpop.f32.mrb[0].mxu0
      %v545 = vadd.f32 0.0, %v544
      %v546 = vpop.f32.mrb[0].mxu0
      %v547 = vpop.f32.mrb[0].mxu0
      %v548 = vadd.f32 0.0, %v547
      %v549 = vpop.f32.mrb[0].mxu0
      %550 = vmatprep.mubr.bf16.mxu0 0
      %551 = vmatmul.mubr.bf16.gmra.mrb[0].mxu0 %v389
      %v552 = vpop.f32.mrb[0].mxu0
      %v553 = vadd.f32 0.0, %v552
      %v554 = vpop.f32.mrb[0].mxu0
      %v555 = vpop.f32.mrb[0].mxu0
      %v556 = vadd.f32 0.0, %v555
      %v557 = vpop.f32.mrb[0].mxu0
      %558 = vmatprep.mubr.bf16.mxu0 0
      %559 = vmatmul.mubr.bf16.gmra.mrb[0].mxu0 %v390
      %v560 = vpop.f32.mrb[0].mxu0
      %v561 = vadd.f32 0.0, %v560
      %v562 = vpop.f32.mrb[0].mxu0
      %v563 = vpop.f32.mrb[0].mxu0
      %v564 = vadd.f32 0.0, %v563
      %v565 = vpop.f32.mrb[0].mxu0
      %566 = vmatprep.mubr.bf16.mxu0 0
      %567 = vmatmul.mubr.bf16.gmra.mrb[0].mxu0 %v391
      %v568 = vpop.f32.mrb[0].mxu0
      %v569 = vadd.f32 0.0, %v568
      %v570 = vpop.f32.mrb[0].mxu0
      %v571 = vpop.f32.mrb[0].mxu0
      %v572 = vadd.f32 0.0, %v571
      %v573 = vpop.f32.mrb[0].mxu0
      %574 = vmatprep.mubr.bf16.mxu0 0
      %575 = vmatmul.mubr.bf16.gmra.mrb[0].mxu0 %v392
      %v576 = vpop.f32.mrb[0].mxu0
      %v577 = vadd.f32 0.0, %v576
      %v578 = vpop.f32.mrb[0].mxu0
      %v579 = vpop.f32.mrb[0].mxu0
      %v580 = vadd.f32 0.0, %v579
      %v581 = vpop.f32.mrb[0].mxu0
      %582 = vmatprep.mubr.bf16.mxu0 0
      %583 = vmatmul.mubr.bf16.gmra.mrb[0].mxu0 %v393
      %v584 = vpop.f32.mrb[0].mxu0
      %v585 = vadd.f32 0.0, %v584
      %v586 = vpop.f32.mrb[0].mxu0
      %v587 = vpop.f32.mrb[0].mxu0
      %v588 = vadd.f32 0.0, %v587
      %v589 = vpop.f32.mrb[0].mxu0
      %590 = vmatprep.mubr.bf16.mxu0 0
      %591 = vmatmul.mubr.bf16.gmra.mrb[0].mxu0 %v394
      %v592 = vpop.f32.mrb[0].mxu0
      %v593 = vadd.f32 0.0, %v592
      %v594 = vpop.f32.mrb[0].mxu0
      %v595 = vpop.f32.mrb[0].mxu0
      %v596 = vadd.f32 0.0, %v595
      %v597 = vpop.f32.mrb[0].mxu0
      %598 = vmatprep.mubr.bf16.mxu0 0
      %599 = vmatmul.mubr.bf16.gmra.mrb[0].mxu0 %v395
      %v600 = vpop.f32.mrb[0].mxu0
      %v601 = vadd.f32 0.0, %v600
      %v602 = vpop.f32.mrb[0].mxu0
      %v603 = vpop.f32.mrb[0].mxu0
      %v604 = vadd.f32 0.0, %v603
      %v605 = vpop.f32.mrb[0].mxu0
      %606 = vmatprep.mubr.bf16.mxu0 0
      %607 = vmatmul.mubr.bf16.gmra.mrb[0].mxu0 %v396
      %v608 = vpop.f32.mrb[0].mxu0
      %v609 = vadd.f32 0.0, %v608
      %v610 = vpop.f32.mrb[0].mxu0
      %v611 = vpop.f32.mrb[0].mxu0
      %v612 = vadd.f32 0.0, %v611
      %v613 = vpop.f32.mrb[0].mxu0
      %614 = vmatprep.mubr.bf16.mxu0 0
      %615 = vmatmul.mubr.bf16.gmra.mrb[0].mxu0 %v397
      %v616 = vpop.f32.mrb[0].mxu0
      %v617 = vadd.f32 0.0, %v616
      %v618 = vpop.f32.mrb[0].mxu0
      %v619 = vpop.f32.mrb[0].mxu0
      %v620 = vadd.f32 0.0, %v619
      %v621 = vpop.f32.mrb[0].mxu0
      %622 = vdwg.mxu0
      %623 = vst [vmem:[%s233] sm:$0xff] %v497
      %624 = vst [vmem:[%s233 + $0x8] sm:$0xff] %v500
      %625 = vst [vmem:[%s233 + $0x10] sm:$0xff] %v505
      %626 = vst [vmem:[%s233 + $0x18] sm:$0xff] %v508
      %627 = vst [vmem:[%s233 + $0x20] sm:$0xff] %v513
      %628 = vst [vmem:[%s233 + $0x28] sm:$0xff] %v516
      %629 = vst [vmem:[%s233 + $0x30] sm:$0xff] %v521
      %630 = vst [vmem:[%s233 + $0x38] sm:$0xff] %v524
      %631 = vst [vmem:[%s233 + $0x40] sm:$0xff] %v529
      %632 = vst [vmem:[%s233 + $0x48] sm:$0xff] %v532
      %633 = vst [vmem:[%s233 + $0x50] sm:$0xff] %v537
      %634 = vst [vmem:[%s233 + $0x58] sm:$0xff] %v540
      %635 = vst [vmem:[%s233 + $0x60] sm:$0xff] %v545
      %636 = vst [vmem:[%s233 + $0x68] sm:$0xff] %v548
      %637 = vst [vmem:[%s233 + $0x70] sm:$0xff] %v553
      %638 = vst [vmem:[%s233 + $0x78] sm:$0xff] %v556
      %639 = vst [vmem:[%s233 + $0x80] sm:$0xff] %v561
      %640 = vst [vmem:[%s233 + $0x88] sm:$0xff] %v564
      %641 = vst [vmem:[%s233 + $0x90] sm:$0xff] %v569
      %642 = vst [vmem:[%s233 + $0x98] sm:$0xff] %v572
      %643 = vst [vmem:[%s233 + $0xa0] sm:$0xff] %v577
      %644 = vst [vmem:[%s233 + $0xa8] sm:$0xff] %v580
      %645 = vst [vmem:[%s233 + $0xb0] sm:$0xff] %v585
      %646 = vst [vmem:[%s233 + $0xb8] sm:$0xff] %v588
      %647 = vst [vmem:[%s233 + $0xc0] sm:$0xff] %v593
      %648 = vst [vmem:[%s233 + $0xc8] sm:$0xff] %v596
      %649 = vst [vmem:[%s233 + $0xd0] sm:$0xff] %v601
      %650 = vst [vmem:[%s233 + $0xd8] sm:$0xff] %v604
      %651 = vst [vmem:[%s233 + $0xe0] sm:$0xff] %v609
      %652 = vst [vmem:[%s233 + $0xe8] sm:$0xff] %v612
      %653 = vst [vmem:[%s233 + $0xf0] sm:$0xff] %v617
      %654 = vst [vmem:[%s233 + $0xf8] sm:$0xff] %v620
      %v655 = vadd.f32 %v497, %v500
      %v656 = vadd.f32 %v655, %v505
      %v657 = vadd.f32 %v656, %v508
      %v658 = vadd.f32 %v657, %v513
      %v659 = vadd.f32 %v658, %v516
      %v660 = vadd.f32 %v659, %v521
      %v661 = vadd.f32 %v660, %v524
      %v662 = vadd.f32 %v661, %v529
      %v663 = vadd.f32 %v662, %v532
      %v664 = vadd.f32 %v663, %v537
      %v665 = vadd.f32 %v664, %v540
      %v666 = vadd.f32 %v665, %v545
      %v667 = vadd.f32 %v666, %v548
      %v668 = vadd.f32 %v667, %v553
      %v669 = vadd.f32 %v668, %v556
      %v670 = vadd.f32 %v669, %v561
      %v671 = vadd.f32 %v670, %v564
      %v672 = vadd.f32 %v671, %v569
      %v673 = vadd.f32 %v672, %v572
      %v674 = vadd.f32 %v673, %v577
      %v675 = vadd.f32 %v674, %v580
      %v676 = vadd.f32 %v675, %v585
      %v677 = vadd.f32 %v676, %v588
      %v678 = vadd.f32 %v677, %v593
      %v679 = vadd.f32 %v678, %v596
      %v680 = vadd.f32 %v679, %v601
      %v681 = vadd.f32 %v680, %v604
      %v682 = vadd.f32 %v681, %v609
      %v683 = vadd.f32 %v682, %v612
      %v684 = vadd.f32 %v683, %v617
      %v685 = vadd.f32 %v684, %v620
      %v686 = vrot.slane %v685, 4
      %v687 = vadd.f32 %v685, %v686
      %v688 = vrot.slane %v687, 2
      %v689 = vadd.f32 %v687, %v688
      %v690 = vrot.slane %v689, 1
      %v691 = vadd.f32 %v689, %v690
      %v692 = vmul.f32 %v497, %v497
      %v693 = vmul.f32 %v500, %v500
      %v694 = vmul.f32 %v505, %v505
      %v695 = vmul.f32 %v508, %v508
      %v696 = vmul.f32 %v513, %v513
      %v697 = vmul.f32 %v516, %v516
      %v698 = vmul.f32 %v521, %v521
      %v699 = vmul.f32 %v524, %v524
      %v700 = vmul.f32 %v529, %v529
      %v701 = vmul.f32 %v532, %v532
      %v702 = vmul.f32 %v537, %v537
      %v703 = vmul.f32 %v540, %v540
      %v704 = vmul.f32 %v545, %v545
      %v705 = vmul.f32 %v548, %v548
      %v706 = vmul.f32 %v553, %v553
      %v707 = vmul.f32 %v556, %v556
      %v708 = vmul.f32 %v561, %v561
      %v709 = vmul.f32 %v564, %v564
      %v710 = vmul.f32 %v569, %v569
      %v711 = vmul.f32 %v572, %v572
      %v712 = vmul.f32 %v577, %v577
      %v713 = vmul.f32 %v580, %v580
      %v714 = vmul.f32 %v585, %v585
      %v715 = vmul.f32 %v588, %v588
      %v716 = vmul.f32 %v593, %v593
      %v717 = vmul.f32 %v596, %v596
      %v718 = vmul.f32 %v601, %v601
      %v719 = vmul.f32 %v604, %v604
      %v720 = vmul.f32 %v609, %v609
      %v721 = vmul.f32 %v612, %v612
      %v722 = vmul.f32 %v617, %v617
      %v723 = vmul.f32 %v620, %v620
      %v724 = vadd.f32 %v692, %v693
      %v725 = vadd.f32 %v724, %v694
      %v726 = vadd.f32 %v725, %v695
      %v727 = vadd.f32 %v726, %v696
      %v728 = vadd.f32 %v727, %v697
      %v729 = vadd.f32 %v728, %v698
      %v730 = vadd.f32 %v729, %v699
      %v731 = vadd.f32 %v730, %v700
      %v732 = vadd.f32 %v731, %v701
      %v733 = vadd.f32 %v732, %v702
      %v734 = vadd.f32 %v733, %v703
      %v735 = vadd.f32 %v734, %v704
      %v736 = vadd.f32 %v735, %v705
      %v737 = vadd.f32 %v736, %v706
      %v738 = vadd.f32 %v737, %v707
      %v739 = vadd.f32 %v738, %v708
      %v740 = vadd.f32 %v739, %v709
      %v741 = vadd.f32 %v740, %v710
      %v742 = vadd.f32 %v741, %v711
      %v743 = vadd.f32 %v742, %v712
      %v744 = vadd.f32 %v743, %v713
      %v745 = vadd.f32 %v744, %v714
      %v746 = vadd.f32 %v745, %v715
      %v747 = vadd.f32 %v746, %v716
      %v748 = vadd.f32 %v747, %v717
      %v749 = vadd.f32 %v748, %v718
      %v750 = vadd.f32 %v749, %v719
      %v751 = vadd.f32 %v750, %v720
      %v752 = vadd.f32 %v751, %v721
      %v753 = vadd.f32 %v752, %v722
      %v754 = vadd.f32 %v753, %v723
      %v755 = vrot.slane %v754, 4
      %v756 = vadd.f32 %v754, %v755
      %v757 = vrot.slane %v756, 2
      %v758 = vadd.f32 %v756, %v757
      %v759 = vrot.slane %v758, 1
      %v760 = vadd.f32 %v758, %v759
      %vm761 = vcmask 1040384
      %v762 = vsel %vm761, %v691, %v760
      %763 = vst [vmem:[%s238] sm:$0x3] %v762
      %s764 = smul.u32 32, %s17
      %p765 = scmp.lt.s32.totalorder %s764, 63
      %s766 = scalar_select %p765, %s764, 63
      %s767 = smul.addr %s766, 8
      %s768 = scalar_lea.vmem %s4, %s767
      %p769 = scmp.lt.s32.totalorder %s17, 1
      %s770 = scalar_select %p769, %s17, 1
      %s771 = smul.addr %s770, 2
      %s772 = scalar_lea.vmem %s5, %s771
      // Predicated region
      $region37: #{preact_bottleneck_forward.5} parent=35 // pred_check
        %p773 = pneg %p124
      $region38: #{preact_bottleneck_forward.5} parent=35 // pred_check_branch
        %775 = sbr.rel (%p773) target = $region40
      $region39: #{preact_bottleneck_forward.5} parent=35 // pred_region
        %s776 = smul.u32 32, %s17
      $region40: #{preact_bottleneck_forward.5} parent=35 // pred_fallthru
        _
      // Predicated region
      $region41: #{preact_bottleneck_forward.5} parent=35 // pred_check
        %p777 = pneg %p150
      $region42: #{preact_bottleneck_forward.5} parent=35 // pred_check_branch
        %779 = sbr.rel (%p777) target = $region44
      $region43: #{preact_bottleneck_forward.5} parent=35 // pred_region
        _
      $region44: #{preact_bottleneck_forward.5} parent=35 // pred_fallthru
        _
    $region36: #{preact_bottleneck_forward.5} parent=5 // pred_fallthru
      _
    %p780 = scmp.le.s32.totalorder 2, %s12
    // Predicated region
    $region45: #{preact_bottleneck_forward.5} parent=5 // pred_check
      %p781 = pneg %p780
    $region46: #{preact_bottleneck_forward.5} parent=5 // pred_check_branch
      %783 = sbr.rel (%p781) target = $region48
    $region47: #{preact_bottleneck_forward.5} parent=5 // pred_region
      %s784 = ssub.s32 %s12, 2
      // Predicated region
      $region49: #{preact_bottleneck_forward.5} parent=47 // pred_check
        %p785 = pneg %p130
      $region50: #{preact_bottleneck_forward.5} parent=47 // pred_check_branch
        %787 = sbr.rel (%p785) target = $region52
      $region51: #{preact_bottleneck_forward.5} parent=47 // pred_region
        %s788 = smul.u32 32, %s18
        %p789 = scmp.lt.s32.totalorder %s788, 63
        %s790 = scalar_select %p789, %s788, 63
        %s791 = smul.addr %s790, 8
        %s792 = scalar_lea.vmem %s4, %s791
      $region52: #{preact_bottleneck_forward.5} parent=47 // pred_fallthru
        _
      // Predicated region
      $region53: #{preact_bottleneck_forward.5} parent=47 // pred_check
        %p793 = pneg %p156
      $region54: #{preact_bottleneck_forward.5} parent=47 // pred_check_branch
        %795 = sbr.rel (%p793) target = $region56
      $region55: #{preact_bottleneck_forward.5} parent=47 // pred_region
        %p796 = scmp.lt.s32.totalorder %s18, 1
        %s797 = scalar_select %p796, %s18, 1
        %s798 = smul.addr %s797, 2
        %s799 = scalar_lea.vmem %s5, %s798
      $region56: #{preact_bottleneck_forward.5} parent=47 // pred_fallthru
        _
    $region48: #{preact_bottleneck_forward.5} parent=5 // pred_fallthru
      _
  $region6: #{preact_bottleneck_forward.5} parent=0 // loop_footer
    %s16 = sadd.s32 1, %s12
  $region7: #{preact_bottleneck_forward.5} parent=0 // loop_footer_branch
    %11 = sbr.rel target = $region3
  $region8: #{preact_bottleneck_forward.5} parent=0 // loop_exit
    _

// kernel: preact_bottleneck_forward.7
$region0: #{preact_bottleneck_forward.7}
  #allocation0 [shape = 'u32[]', space=smem, size = 0x4, offset = 0x4, fixed_abs, tag = 'smem constant byte address 0x4 - core index']
  #allocation1 [shape = 'u32[144,128]{1,0:T(1,128)}', space=vmem, size = 0x12000, scoped, tag = 'internal scratch']
  %s0 = inlined_call_operand.vmem [shape: f32[512,128], index: 0, kind: input, shape index: {}]
  %s1 = inlined_call_operand.vmem [shape: f32[1,128], index: 1, kind: input, shape index: {}]
  %s2 = inlined_call_operand.vmem [shape: f32[1,128], index: 2, kind: input, shape index: {}]
  %s3 = inlined_call_operand.vmem [shape: bf16[128,128], index: 3, kind: input, shape index: {}]
  %s4 = inlined_call_operand.vmem [shape: f32[512,128], index: 4, kind: input, shape index: {}]
  %s5 = inlined_call_operand.vmem [shape: f32[512,128], index: 5, kind: output, shape index: {}]
  %s6 = sld [smem:[#allocation0]]
  $region53: #{preact_bottleneck_forward.7} parent=0
    _
  %s8 = ssub.s32 1, %s6
  %s9 = scalar_select 0, %s8, %s6
  loop: start=0, step=1, limit=4
  $region2: #{preact_bottleneck_forward.7} parent=0 // loop_pre_header
    _
  $region3: #{preact_bottleneck_forward.7} parent=0 // loop_header
    %s11 = sphi 0, %s15
    %p12 = scmp.ge.s32.totalorder %s11, 4
    %s21 = sphi 0, %s23
    %s24 = sphi 0, %s21
    %s25 = sphi 0, %s24
    %s41 = sphi 0, %s25
    %s45 = sphi 0, %s45
    %s47 = sphi 0, %s45
    %s48 = sphi 0, %s47
    %s62 = sphi 0, %s48
    %s66 = sphi 0, %s66
    %s68 = sphi 0, %s66
    %s69 = sphi 0, %s68
    %s83 = sphi 0, %s69
    %s87 = sphi 0, %s87
    %s89 = sphi 0, %s87
    %s90 = sphi 0, %s89
    %s104 = sphi 0, %s90
    %s110 = sphi 0, %s112
    %s113 = sphi 0, %s110
    %s114 = sphi 0, %s113
    %s130 = sphi 0, %s114
    %s136 = sphi 0, %s138
    %s139 = sphi 0, %s136
    %s140 = sphi 0, %s139
    %s156 = sphi 0, %s140
  $region4: #{preact_bottleneck_forward.7} parent=0 // loop_header_branch
    %14 = sbr.rel (%p12) target = $region8
  $region5: #{preact_bottleneck_forward.7} parent=0 // loop_body
    %s16 = ssub.s32 %s11, 1
    %s17 = ssub.s32 %s11, 2
    %s18 = sadd.s32 %s11, 1
    %s19 = ssub.s32 %s11, %s18
    %p20 = scmp.eq.s32.totalorder %s19, 0
    %s22 = sadd.s32 %s21, 1
    %s23 = scalar_select %p20, %s21, %s22
    %p26 = pneg %p20
    %p27 = scmp.eq.s32.totalorder %s11, 1
    %p28 = por %p26, %p27
    %p29 = scmp.ne.s32.totalorder %s21, %s24
    %p30 = scmp.eq.s32.totalorder %s11, 0
    %p31 = por %p29, %p30
    %p32 = scmp.ne.s32.totalorder %s21, %s24
    %p33 = scmp.eq.s32.totalorder %s16, 1
    %p34 = por %p32, %p33
    %p35 = scmp.ne.s32.totalorder %s24, %s25
    %p36 = scmp.eq.s32.totalorder %s16, 0
    %p37 = por %p35, %p36
    %p38 = scmp.ne.s32.totalorder %s24, %s25
    %p39 = scmp.eq.s32.totalorder %s17, 1
    %p40 = por %p38, %p39
    %p42 = scmp.ne.s32.totalorder %s25, %s41
    %p43 = scmp.eq.s32.totalorder %s17, 0
    %p44 = por %p42, %p43
    %s46 = sadd.s32 %s45, 1
    %p49 = scmp.eq.s32.totalorder %s11, 1
    %p50 = scmp.ne.s32.totalorder %s45, %s47
    %p51 = scmp.eq.s32.totalorder %s11, 0
    %p52 = por %p50, %p51
    %p53 = scmp.ne.s32.totalorder %s45, %s47
    %p54 = scmp.eq.s32.totalorder %s16, 1
    %p55 = por %p53, %p54
    %p56 = scmp.ne.s32.totalorder %s47, %s48
    %p57 = scmp.eq.s32.totalorder %s16, 0
    %p58 = por %p56, %p57
    %p59 = scmp.ne.s32.totalorder %s47, %s48
    %p60 = scmp.eq.s32.totalorder %s17, 1
    %p61 = por %p59, %p60
    %p63 = scmp.ne.s32.totalorder %s48, %s62
    %p64 = scmp.eq.s32.totalorder %s17, 0
    %p65 = por %p63, %p64
    %s67 = sadd.s32 %s66, 1
    %p70 = scmp.eq.s32.totalorder %s11, 1
    %p71 = scmp.ne.s32.totalorder %s66, %s68
    %p72 = scmp.eq.s32.totalorder %s11, 0
    %p73 = por %p71, %p72
    %p74 = scmp.ne.s32.totalorder %s66, %s68
    %p75 = scmp.eq.s32.totalorder %s16, 1
    %p76 = por %p74, %p75
    %p77 = scmp.ne.s32.totalorder %s68, %s69
    %p78 = scmp.eq.s32.totalorder %s16, 0
    %p79 = por %p77, %p78
    %p80 = scmp.ne.s32.totalorder %s68, %s69
    %p81 = scmp.eq.s32.totalorder %s17, 1
    %p82 = por %p80, %p81
    %p84 = scmp.ne.s32.totalorder %s69, %s83
    %p85 = scmp.eq.s32.totalorder %s17, 0
    %p86 = por %p84, %p85
    %s88 = sadd.s32 %s87, 1
    %p91 = scmp.eq.s32.totalorder %s11, 1
    %p92 = scmp.ne.s32.totalorder %s87, %s89
    %p93 = scmp.eq.s32.totalorder %s11, 0
    %p94 = por %p92, %p93
    %p95 = scmp.ne.s32.totalorder %s87, %s89
    %p96 = scmp.eq.s32.totalorder %s16, 1
    %p97 = por %p95, %p96
    %p98 = scmp.ne.s32.totalorder %s89, %s90
    %p99 = scmp.eq.s32.totalorder %s16, 0
    %p100 = por %p98, %p99
    %p101 = scmp.ne.s32.totalorder %s89, %s90
    %p102 = scmp.eq.s32.totalorder %s17, 1
    %p103 = por %p101, %p102
    %p105 = scmp.ne.s32.totalorder %s90, %s104
    %p106 = scmp.eq.s32.totalorder %s17, 0
    %p107 = por %p105, %p106
    %s108 = ssub.s32 %s11, %s18
    %p109 = scmp.eq.s32.totalorder %s108, 0
    %s111 = sadd.s32 %s110, 1
    %s112 = scalar_select %p109, %s110, %s111
    %p115 = pneg %p109
    %p116 = scmp.eq.s32.totalorder %s11, 1
    %p117 = por %p115, %p116
    %p118 = scmp.ne.s32.totalorder %s110, %s113
    %p119 = scmp.eq.s32.totalorder %s11, 0
    %p120 = por %p118, %p119
    %p121 = scmp.ne.s32.totalorder %s110, %s113
    %p122 = scmp.eq.s32.totalorder %s16, 1
    %p123 = por %p121, %p122
    %p124 = scmp.ne.s32.totalorder %s113, %s114
    %p125 = scmp.eq.s32.totalorder %s16, 0
    %p126 = por %p124, %p125
    %p127 = scmp.ne.s32.totalorder %s113, %s114
    %p128 = scmp.eq.s32.totalorder %s17, 1
    %p129 = por %p127, %p128
    %p131 = scmp.ne.s32.totalorder %s114, %s130
    %p132 = scmp.eq.s32.totalorder %s17, 0
    %p133 = por %p131, %p132
    %s134 = ssub.s32 %s11, %s18
    %p135 = scmp.eq.s32.totalorder %s134, 0
    %s137 = sadd.s32 %s136, 1
    %s138 = scalar_select %p135, %s136, %s137
    %p141 = pneg %p135
    %p142 = scmp.eq.s32.totalorder %s11, 1
    %p143 = por %p141, %p142
    %p144 = scmp.ne.s32.totalorder %s136, %s139
    %p145 = scmp.eq.s32.totalorder %s11, 0
    %p146 = por %p144, %p145
    %p147 = scmp.ne.s32.totalorder %s136, %s139
    %p148 = scmp.eq.s32.totalorder %s16, 1
    %p149 = por %p147, %p148
    %p150 = scmp.ne.s32.totalorder %s139, %s140
    %p151 = scmp.eq.s32.totalorder %s16, 0
    %p152 = por %p150, %p151
    %p153 = scmp.ne.s32.totalorder %s139, %s140
    %p154 = scmp.eq.s32.totalorder %s17, 1
    %p155 = por %p153, %p154
    %p157 = scmp.ne.s32.totalorder %s140, %s156
    %p158 = scmp.eq.s32.totalorder %s17, 0
    %p159 = por %p157, %p158
    %p160 = scmp.le.s32.totalorder 1, %s11
    %p161 = scmp.lt.s32.totalorder %s11, 3
    %p162 = pnand %p160, %p161
    %p163 = pneg %p162
    // Predicated region
    $region9: #{preact_bottleneck_forward.7} parent=5 // pred_check
      _
    $region10: #{preact_bottleneck_forward.7} parent=5 // pred_check_branch
      %165 = sbr.rel (%p162) target = $region12
    $region11: #{preact_bottleneck_forward.7} parent=5 // pred_region
      %s166 = ssub.s32 %s11, 1
      // Predicated region
      $region13: #{preact_bottleneck_forward.7} parent=11 // pred_check
        %p167 = pneg %p58
      $region14: #{preact_bottleneck_forward.7} parent=11 // pred_check_branch
        %169 = sbr.rel (%p167) target = $region16
      $region15: #{preact_bottleneck_forward.7} parent=11 // pred_region
        _
      $region16: #{preact_bottleneck_forward.7} parent=11 // pred_fallthru
        _
      // Predicated region
      $region17: #{preact_bottleneck_forward.7} parent=11 // pred_check
        %p170 = pneg %p79
      $region18: #{preact_bottleneck_forward.7} parent=11 // pred_check_branch
        %172 = sbr.rel (%p170) target = $region20
      $region19: #{preact_bottleneck_forward.7} parent=11 // pred_region
        _
      $region20: #{preact_bottleneck_forward.7} parent=11 // pred_fallthru
        _
      // Predicated region
      $region21: #{preact_bottleneck_forward.7} parent=11 // pred_check
        %p173 = pneg %p100
      $region22: #{preact_bottleneck_forward.7} parent=11 // pred_check_branch
        %175 = sbr.rel (%p173) target = $region24
      $region23: #{preact_bottleneck_forward.7} parent=11 // pred_region
        _
      $region24: #{preact_bottleneck_forward.7} parent=11 // pred_fallthru
        _
    $region12: #{preact_bottleneck_forward.7} parent=5 // pred_fallthru
      _
    %p176 = scmp.lt.s32.totalorder %s11, 2
    // Predicated region
    $region25: #{preact_bottleneck_forward.7} parent=5 // pred_check
      %p177 = pneg %p176
    $region26: #{preact_bottleneck_forward.7} parent=5 // pred_check_branch
      %179 = sbr.rel (%p177) target = $region28
    $region27: #{preact_bottleneck_forward.7} parent=5 // pred_region
      // Predicated region
      $region29: #{preact_bottleneck_forward.7} parent=27 // pred_check
        %p180 = pneg %p31
      $region30: #{preact_bottleneck_forward.7} parent=27 // pred_check_branch
        %182 = sbr.rel (%p180) target = $region32
      $region31: #{preact_bottleneck_forward.7} parent=27 // pred_region
        %s183 = smul.u32 32, %s11
        %p184 = scmp.lt.s32.totalorder %s183, 63
        %s185 = scalar_select %p184, %s183, 63
        %s186 = smul.addr %s185, 8
        %s187 = scalar_lea.vmem %s0, %s186
        %s188 = smul.u32 32, %s11
      $region32: #{preact_bottleneck_forward.7} parent=27 // pred_fallthru
        _
      // Predicated region
      $region33: #{preact_bottleneck_forward.7} parent=27 // pred_check
        %p189 = pneg %p120
      $region34: #{preact_bottleneck_forward.7} parent=27 // pred_check_branch
        %191 = sbr.rel (%p189) target = $region36
      $region35: #{preact_bottleneck_forward.7} parent=27 // pred_region
        %s192 = smul.u32 32, %s11
        %p193 = scmp.lt.s32.totalorder %s192, 63
        %s194 = scalar_select %p193, %s192, 63
        %s195 = smul.addr %s194, 8
        %s196 = scalar_lea.vmem %s4, %s195
        %s197 = smul.u32 32, %s11
      $region36: #{preact_bottleneck_forward.7} parent=27 // pred_fallthru
        _
    $region28: #{preact_bottleneck_forward.7} parent=5 // pred_fallthru
      _
    %p198 = scmp.le.s32.totalorder 1, %s11
    %p199 = scmp.lt.s32.totalorder %s11, 3
    %p200 = pnand %p198, %p199
    %p201 = pneg %p200
    // Predicated region
    $region37: #{preact_bottleneck_forward.7} parent=5 // pred_check
      _
    $region38: #{preact_bottleneck_forward.7} parent=5 // pred_check_branch
      %203 = sbr.rel (%p200) target = $region40
    $region39: #{preact_bottleneck_forward.7} parent=5 // pred_region
      %s204 = ssub.s32 %s11, 1
      %s205 = smul.u32 32, %s16
      %p206 = scmp.lt.s32.totalorder %s205, 63
      %s207 = scalar_select %p206, %s205, 63
      %s208 = smul.addr %s207, 8
      %s209 = scalar_lea.vmem %s0, %s208
      %p210 = pneg %p37
      %p211 = pneg %p34
      %p212 = pneg %p58
      %p213 = pneg %p55
      %p214 = pneg %p79
      %p215 = pneg %p76
      %p216 = pneg %p100
      %p217 = pneg %p97
      %s218 = smul.u32 32, %s16
      %p219 = scmp.lt.s32.totalorder %s218, 63
      %s220 = scalar_select %p219, %s218, 63
      %s221 = smul.addr %s220, 8
      %s222 = scalar_lea.vmem %s4, %s221
      %p223 = pneg %p126
      %p224 = pneg %p123
      %p225 = pneg %p152
      %p226 = pneg %p149
      %s227 = smul.u32 32, %s16
      %p228 = scmp.lt.s32.totalorder %s227, 63
      %s229 = scalar_select %p228, %s227, 63
      %s230 = smul.addr %s229, 8
      %s231 = scalar_lea.vmem %s5, %s230
      %s232 = smul.u32 32, %s16
      %p233 = scmp.lt.s32.totalorder %s232, 63
      %s234 = scalar_select %p233, %s232, 63
      %s235 = smul.addr %s234, 8
      %s236 = scalar_lea.vmem %s0, %s235
      %s237 = smul.u32 32, %s16
      %s238 = smul.u32 32, %s16
      %p239 = scmp.lt.s32.totalorder %s238, 63
      %s240 = scalar_select %p239, %s238, 63
      %s241 = smul.addr %s240, 8
      %s242 = scalar_lea.vmem %s4, %s241
      %s243 = smul.u32 32, %s16
      %s244 = smul.u32 32, %s16
      %p245 = scmp.lt.s32.totalorder %s244, 63
      %s246 = scalar_select %p245, %s244, 63
      %s247 = smul.addr %s246, 8
      %s248 = scalar_lea.vmem %s5, %s247
      %s249 = smul.u32 32, %s16
      %v251 = vld [vmem:[%s236] sm:$0xff]
      %v252 = vld [vmem:[%s236 + $0x8] sm:$0xff]
      %v253 = vld [vmem:[%s236 + $0x10] sm:$0xff]
      %v254 = vld [vmem:[%s236 + $0x18] sm:$0xff]
      %v255 = vld [vmem:[%s236 + $0x20] sm:$0xff]
      %v256 = vld [vmem:[%s236 + $0x28] sm:$0xff]
      %v257 = vld [vmem:[%s236 + $0x30] sm:$0xff]
      %v258 = vld [vmem:[%s236 + $0x38] sm:$0xff]
      %v259 = vld [vmem:[%s236 + $0x40] sm:$0xff]
      %v260 = vld [vmem:[%s236 + $0x48] sm:$0xff]
      %v261 = vld [vmem:[%s236 + $0x50] sm:$0xff]
      %v262 = vld [vmem:[%s236 + $0x58] sm:$0xff]
      %v263 = vld [vmem:[%s236 + $0x60] sm:$0xff]
      %v264 = vld [vmem:[%s236 + $0x68] sm:$0xff]
      %v265 = vld [vmem:[%s236 + $0x70] sm:$0xff]
      %v266 = vld [vmem:[%s236 + $0x78] sm:$0xff]
      %v267 = vld [vmem:[%s236 + $0x80] sm:$0xff]
      %v268 = vld [vmem:[%s236 + $0x88] sm:$0xff]
      %v269 = vld [vmem:[%s236 + $0x90] sm:$0xff]
      %v270 = vld [vmem:[%s236 + $0x98] sm:$0xff]
      %v271 = vld [vmem:[%s236 + $0xa0] sm:$0xff]
      %v272 = vld [vmem:[%s236 + $0xa8] sm:$0xff]
      %v273 = vld [vmem:[%s236 + $0xb0] sm:$0xff]
      %v274 = vld [vmem:[%s236 + $0xb8] sm:$0xff]
      %v275 = vld [vmem:[%s236 + $0xc0] sm:$0xff]
      %v276 = vld [vmem:[%s236 + $0xc8] sm:$0xff]
      %v277 = vld [vmem:[%s236 + $0xd0] sm:$0xff]
      %v278 = vld [vmem:[%s236 + $0xd8] sm:$0xff]
      %v279 = vld [vmem:[%s236 + $0xe0] sm:$0xff]
      %v280 = vld [vmem:[%s236 + $0xe8] sm:$0xff]
      %v281 = vld [vmem:[%s236 + $0xf0] sm:$0xff]
      %v282 = vld [vmem:[%s236 + $0xf8] sm:$0xff]
      %v283 = vld [vmem:[%s1] sm:$0x1]
      %v285 = vlaneseq
      %v286 = vshrl.u32 %v285, 7
      %v287 = vsub.s32 0, %v286
      %v288 = vrot.slane %v283, %v287
      %v290 = vmul.f32 %v251, %v288
      %v291 = vmul.f32 %v252, %v288
      %v292 = vmul.f32 %v253, %v288
      %v293 = vmul.f32 %v254, %v288
      %v294 = vmul.f32 %v255, %v288
      %v295 = vmul.f32 %v256, %v288
      %v296 = vmul.f32 %v257, %v288
      %v297 = vmul.f32 %v258, %v288
      %v298 = vmul.f32 %v259, %v288
      %v299 = vmul.f32 %v260, %v288
      %v300 = vmul.f32 %v261, %v288
      %v301 = vmul.f32 %v262, %v288
      %v302 = vmul.f32 %v263, %v288
      %v303 = vmul.f32 %v264, %v288
      %v304 = vmul.f32 %v265, %v288
      %v305 = vmul.f32 %v266, %v288
      %v306 = vmul.f32 %v267, %v288
      %v307 = vmul.f32 %v268, %v288
      %v308 = vmul.f32 %v269, %v288
      %v309 = vmul.f32 %v270, %v288
      %v310 = vmul.f32 %v271, %v288
      %v311 = vmul.f32 %v272, %v288
      %v312 = vmul.f32 %v273, %v288
      %v313 = vmul.f32 %v274, %v288
      %v314 = vmul.f32 %v275, %v288
      %v315 = vmul.f32 %v276, %v288
      %v316 = vmul.f32 %v277, %v288
      %v317 = vmul.f32 %v278, %v288
      %v318 = vmul.f32 %v279, %v288
      %v319 = vmul.f32 %v280, %v288
      %v320 = vmul.f32 %v281, %v288
      %v321 = vmul.f32 %v282, %v288
      %v322 = vld [vmem:[%s2] sm:$0x1]
      %v324 = vlaneseq
      %v325 = vshrl.u32 %v324, 7
      %v326 = vsub.s32 0, %v325
      %v327 = vrot.slane %v322, %v326
      %v329 = vadd.f32 %v290, %v327
      %v330 = vadd.f32 %v291, %v327
      %v331 = vadd.f32 %v292, %v327
      %v332 = vadd.f32 %v293, %v327
      %v333 = vadd.f32 %v294, %v327
      %v334 = vadd.f32 %v295, %v327
      %v335 = vadd.f32 %v296, %v327
      %v336 = vadd.f32 %v297, %v327
      %v337 = vadd.f32 %v298, %v327
      %v338 = vadd.f32 %v299, %v327
      %v339 = vadd.f32 %v300, %v327
      %v340 = vadd.f32 %v301, %v327
      %v341 = vadd.f32 %v302, %v327
      %v342 = vadd.f32 %v303, %v327
      %v343 = vadd.f32 %v304, %v327
      %v344 = vadd.f32 %v305, %v327
      %v345 = vadd.f32 %v306, %v327
      %v346 = vadd.f32 %v307, %v327
      %v347 = vadd.f32 %v308, %v327
      %v348 = vadd.f32 %v309, %v327
      %v349 = vadd.f32 %v310, %v327
      %v350 = vadd.f32 %v311, %v327
      %v351 = vadd.f32 %v312, %v327
      %v352 = vadd.f32 %v313, %v327
      %v353 = vadd.f32 %v314, %v327
      %v354 = vadd.f32 %v315, %v327
      %v355 = vadd.f32 %v316, %v327
      %v356 = vadd.f32 %v317, %v327
      %v357 = vadd.f32 %v318, %v327
      %v358 = vadd.f32 %v319, %v327
      %v359 = vadd.f32 %v320, %v327
      %v360 = vadd.f32 %v321, %v327
      %v361 = vmax.f32 %v329, 0.0
      %v362 = vmax.f32 %v330, 0.0
      %v363 = vmax.f32 %v331, 0.0
      %v364 = vmax.f32 %v332, 0.0
      %v365 = vmax.f32 %v333, 0.0
      %v366 = vmax.f32 %v334, 0.0
      %v367 = vmax.f32 %v335, 0.0
      %v368 = vmax.f32 %v336, 0.0
      %v369 = vmax.f32 %v337, 0.0
      %v370 = vmax.f32 %v338, 0.0
      %v371 = vmax.f32 %v339, 0.0
      %v372 = vmax.f32 %v340, 0.0
      %v373 = vmax.f32 %v341, 0.0
      %v374 = vmax.f32 %v342, 0.0
      %v375 = vmax.f32 %v343, 0.0
      %v376 = vmax.f32 %v344, 0.0
      %v377 = vmax.f32 %v345, 0.0
      %v378 = vmax.f32 %v346, 0.0
      %v379 = vmax.f32 %v347, 0.0
      %v380 = vmax.f32 %v348, 0.0
      %v381 = vmax.f32 %v349, 0.0
      %v382 = vmax.f32 %v350, 0.0
      %v383 = vmax.f32 %v351, 0.0
      %v384 = vmax.f32 %v352, 0.0
      %v385 = vmax.f32 %v353, 0.0
      %v386 = vmax.f32 %v354, 0.0
      %v387 = vmax.f32 %v355, 0.0
      %v388 = vmax.f32 %v356, 0.0
      %v389 = vmax.f32 %v357, 0.0
      %v390 = vmax.f32 %v358, 0.0
      %v391 = vmax.f32 %v359, 0.0
      %v392 = vmax.f32 %v360, 0.0
      %v393 = vpack.c.bf16 %v362, %v361
      %v394 = vpack.c.bf16 %v364, %v363
      %v395 = vpack.c.bf16 %v366, %v365
      %v396 = vpack.c.bf16 %v368, %v367
      %v397 = vpack.c.bf16 %v370, %v369
      %v398 = vpack.c.bf16 %v372, %v371
      %v399 = vpack.c.bf16 %v374, %v373
      %v400 = vpack.c.bf16 %v376, %v375
      %v401 = vpack.c.bf16 %v378, %v377
      %v402 = vpack.c.bf16 %v380, %v379
      %v403 = vpack.c.bf16 %v382, %v381
      %v404 = vpack.c.bf16 %v384, %v383
      %v405 = vpack.c.bf16 %v386, %v385
      %v406 = vpack.c.bf16 %v388, %v387
      %v407 = vpack.c.bf16 %v390, %v389
      %v408 = vpack.c.bf16 %v392, %v391
      %v409 = vld [vmem:[%s3] sm:$0xf]
      %v410 = vld [vmem:[%s3 + $0x4] sm:$0xf]
      %v411 = vld [vmem:[%s3 + $0x8] sm:$0xf]
      %v412 = vld [vmem:[%s3 + $0xc] sm:$0xf]
      %v413 = vld [vmem:[%s3 + $0x10] sm:$0xf]
      %v414 = vld [vmem:[%s3 + $0x14] sm:$0xf]
      %v415 = vld [vmem:[%s3 + $0x18] sm:$0xf]
      %v416 = vld [vmem:[%s3 + $0x1c] sm:$0xf]
      %v417 = vld [vmem:[%s3 + $0x20] sm:$0xf]
      %v418 = vld [vmem:[%s3 + $0x24] sm:$0xf]
      %v419 = vld [vmem:[%s3 + $0x28] sm:$0xf]
      %v420 = vld [vmem:[%s3 + $0x2c] sm:$0xf]
      %v421 = vld [vmem:[%s3 + $0x30] sm:$0xf]
      %v422 = vld [vmem:[%s3 + $0x34] sm:$0xf]
      %v423 = vld [vmem:[%s3 + $0x38] sm:$0xf]
      %v424 = vld [vmem:[%s3 + $0x3c] sm:$0xf]
      %v425 = vld [vmem:[%s242] sm:$0xff]
      %v426 = vld [vmem:[%s242 + $0x8] sm:$0xff]
      %v427 = vld [vmem:[%s242 + $0x10] sm:$0xff]
      %v428 = vld [vmem:[%s242 + $0x18] sm:$0xff]
      %v429 = vld [vmem:[%s242 + $0x20] sm:$0xff]
      %v430 = vld [vmem:[%s242 + $0x28] sm:$0xff]
      %v431 = vld [vmem:[%s242 + $0x30] sm:$0xff]
      %v432 = vld [vmem:[%s242 + $0x38] sm:$0xff]
      %v433 = vld [vmem:[%s242 + $0x40] sm:$0xff]
      %v434 = vld [vmem:[%s242 + $0x48] sm:$0xff]
      %v435 = vld [vmem:[%s242 + $0x50] sm:$0xff]
      %v436 = vld [vmem:[%s242 + $0x58] sm:$0xff]
      %v437 = vld [vmem:[%s242 + $0x60] sm:$0xff]
      %v438 = vld [vmem:[%s242 + $0x68] sm:$0xff]
      %v439 = vld [vmem:[%s242 + $0x70] sm:$0xff]
      %v440 = vld [vmem:[%s242 + $0x78] sm:$0xff]
      %v441 = vld [vmem:[%s242 + $0x80] sm:$0xff]
      %v442 = vld [vmem:[%s242 + $0x88] sm:$0xff]
      %v443 = vld [vmem:[%s242 + $0x90] sm:$0xff]
      %v444 = vld [vmem:[%s242 + $0x98] sm:$0xff]
      %v445 = vld [vmem:[%s242 + $0xa0] sm:$0xff]
      %v446 = vld [vmem:[%s242 + $0xa8] sm:$0xff]
      %v447 = vld [vmem:[%s242 + $0xb0] sm:$0xff]
      %v448 = vld [vmem:[%s242 + $0xb8] sm:$0xff]
      %v449 = vld [vmem:[%s242 + $0xc0] sm:$0xff]
      %v450 = vld [vmem:[%s242 + $0xc8] sm:$0xff]
      %v451 = vld [vmem:[%s242 + $0xd0] sm:$0xff]
      %v452 = vld [vmem:[%s242 + $0xd8] sm:$0xff]
      %v453 = vld [vmem:[%s242 + $0xe0] sm:$0xff]
      %v454 = vld [vmem:[%s242 + $0xe8] sm:$0xff]
      %v455 = vld [vmem:[%s242 + $0xf0] sm:$0xff]
      %v456 = vld [vmem:[%s242 + $0xf8] sm:$0xff]
      %v473 = vunpack.c.l.b16 %v409
      %v474 = vunpack.c.l.b16 %v410
      %v475 = vunpack.c.l.b16 %v411
      %v476 = vunpack.c.l.b16 %v412
      %v477 = vunpack.c.l.b16 %v413
      %v478 = vunpack.c.l.b16 %v414
      %v479 = vunpack.c.l.b16 %v415
      %v480 = vunpack.c.l.b16 %v416
      %v481 = vunpack.c.l.b16 %v417
      %v482 = vunpack.c.l.b16 %v418
      %v483 = vunpack.c.l.b16 %v419
      %v484 = vunpack.c.l.b16 %v420
      %v485 = vunpack.c.l.b16 %v421
      %v486 = vunpack.c.l.b16 %v422
      %v487 = vunpack.c.l.b16 %v423
      %v488 = vunpack.c.l.b16 %v424
      %v489 = vpack.c.b16 %v474, %v473
      %v490 = vpack.c.b16 %v476, %v475
      %v491 = vpack.c.b16 %v478, %v477
      %v492 = vpack.c.b16 %v480, %v479
      %v493 = vpack.c.b16 %v482, %v481
      %v494 = vpack.c.b16 %v484, %v483
      %v495 = vpack.c.b16 %v486, %v485
      %v496 = vpack.c.b16 %v488, %v487
      %505 = vmatprep.subr.bf16.mxu0 0
      %506 = vmatpush1.bf16.msra.mxu0 %v489
      %507 = vmatprep.subr.bf16.mxu0 0
      %508 = vmatpush1.bf16.msra.mxu0 %v490
      %509 = vmatprep.subr.bf16.mxu0 0
      %510 = vmatpush1.bf16.msra.mxu0 %v491
      %511 = vmatprep.subr.bf16.mxu0 0
      %512 = vmatpush1.bf16.msra.mxu0 %v492
      %513 = vmatprep.subr.bf16.mxu0 0
      %514 = vmatpush1.bf16.msra.mxu0 %v493
      %515 = vmatprep.subr.bf16.mxu0 0
      %516 = vmatpush1.bf16.msra.mxu0 %v494
      %517 = vmatprep.subr.bf16.mxu0 0
      %518 = vmatpush1.bf16.msra.mxu0 %v495
      %519 = vmatprep.subr.bf16.mxu0 0
      %520 = vmatpush1.bf16.msra.mxu0 %v496
      %521 = vmatprep.subr.bf16.mxu0 0
      %522 = vmatpush1.bf16.msra.mxu0 0
      %523 = vmatprep.subr.bf16.mxu0 0
      %524 = vmatpush1.bf16.msra.mxu0 0
      %525 = vmatprep.subr.bf16.mxu0 0
      %526 = vmatpush1.bf16.msra.mxu0 0
      %527 = vmatprep.subr.bf16.mxu0 0
      %528 = vmatpush1.bf16.msra.mxu0 0
      %529 = vmatprep.subr.bf16.mxu0 0
      %530 = vmatpush1.bf16.msra.mxu0 0
      %531 = vmatprep.subr.bf16.mxu0 0
      %532 = vmatpush1.bf16.msra.mxu0 0
      %533 = vmatprep.subr.bf16.mxu0 0
      %534 = vmatpush1.bf16.msra.mxu0 0
      %535 = vmatprep.subr.bf16.mxu0 0
      %536 = vmatpush1.bf16.msra.mxu0 0
      %537 = vmatprep.mubr.bf16.mxu0 0
      %538 = vmatmul.mubr.bf16.gmra.mrb[0].mxu0 %v393
      %v539 = vpop.f32.mrb[0].mxu0
      %v540 = vadd.f32 %v425, %v539
      %v541 = vpop.f32.mrb[0].mxu0
      %v542 = vpop.f32.mrb[0].mxu0
      %v543 = vadd.f32 %v426, %v542
      %v544 = vpop.f32.mrb[0].mxu0
      %545 = vmatprep.mubr.bf16.mxu0 0
      %546 = vmatmul.mubr.bf16.gmra.mrb[0].mxu0 %v394
      %v547 = vpop.f32.mrb[0].mxu0
      %v548 = vadd.f32 %v427, %v547
      %v549 = vpop.f32.mrb[0].mxu0
      %v550 = vpop.f32.mrb[0].mxu0
      %v551 = vadd.f32 %v428, %v550
      %v552 = vpop.f32.mrb[0].mxu0
      %553 = vmatprep.mubr.bf16.mxu0 0
      %554 = vmatmul.mubr.bf16.gmra.mrb[0].mxu0 %v395
      %v555 = vpop.f32.mrb[0].mxu0
      %v556 = vadd.f32 %v429, %v555
      %v557 = vpop.f32.mrb[0].mxu0
      %v558 = vpop.f32.mrb[0].mxu0
      %v559 = vadd.f32 %v430, %v558
      %v560 = vpop.f32.mrb[0].mxu0
      %561 = vmatprep.mubr.bf16.mxu0 0
      %562 = vmatmul.mubr.bf16.gmra.mrb[0].mxu0 %v396
      %v563 = vpop.f32.mrb[0].mxu0
      %v564 = vadd.f32 %v431, %v563
      %v565 = vpop.f32.mrb[0].mxu0
      %v566 = vpop.f32.mrb[0].mxu0
      %v567 = vadd.f32 %v432, %v566
      %v568 = vpop.f32.mrb[0].mxu0
      %569 = vmatprep.mubr.bf16.mxu0 0
      %570 = vmatmul.mubr.bf16.gmra.mrb[0].mxu0 %v397
      %v571 = vpop.f32.mrb[0].mxu0
      %v572 = vadd.f32 %v433, %v571
      %v573 = vpop.f32.mrb[0].mxu0
      %v574 = vpop.f32.mrb[0].mxu0
      %v575 = vadd.f32 %v434, %v574
      %v576 = vpop.f32.mrb[0].mxu0
      %577 = vmatprep.mubr.bf16.mxu0 0
      %578 = vmatmul.mubr.bf16.gmra.mrb[0].mxu0 %v398
      %v579 = vpop.f32.mrb[0].mxu0
      %v580 = vadd.f32 %v435, %v579
      %v581 = vpop.f32.mrb[0].mxu0
      %v582 = vpop.f32.mrb[0].mxu0
      %v583 = vadd.f32 %v436, %v582
      %v584 = vpop.f32.mrb[0].mxu0
      %585 = vmatprep.mubr.bf16.mxu0 0
      %586 = vmatmul.mubr.bf16.gmra.mrb[0].mxu0 %v399
      %v587 = vpop.f32.mrb[0].mxu0
      %v588 = vadd.f32 %v437, %v587
      %v589 = vpop.f32.mrb[0].mxu0
      %v590 = vpop.f32.mrb[0].mxu0
      %v591 = vadd.f32 %v438, %v590
      %v592 = vpop.f32.mrb[0].mxu0
      %593 = vmatprep.mubr.bf16.mxu0 0
      %594 = vmatmul.mubr.bf16.gmra.mrb[0].mxu0 %v400
      %v595 = vpop.f32.mrb[0].mxu0
      %v596 = vadd.f32 %v439, %v595
      %v597 = vpop.f32.mrb[0].mxu0
      %v598 = vpop.f32.mrb[0].mxu0
      %v599 = vadd.f32 %v440, %v598
      %v600 = vpop.f32.mrb[0].mxu0
      %601 = vmatprep.mubr.bf16.mxu0 0
      %602 = vmatmul.mubr.bf16.gmra.mrb[0].mxu0 %v401
      %v603 = vpop.f32.mrb[0].mxu0
      %v604 = vadd.f32 %v441, %v603
      %v605 = vpop.f32.mrb[0].mxu0
      %v606 = vpop.f32.mrb[0].mxu0
      %v607 = vadd.f32 %v442, %v606
      %v608 = vpop.f32.mrb[0].mxu0
      %609 = vmatprep.mubr.bf16.mxu0 0
      %610 = vmatmul.mubr.bf16.gmra.mrb[0].mxu0 %v402
      %v611 = vpop.f32.mrb[0].mxu0
      %v612 = vadd.f32 %v443, %v611
      %v613 = vpop.f32.mrb[0].mxu0
      %v614 = vpop.f32.mrb[0].mxu0
      %v615 = vadd.f32 %v444, %v614
      %v616 = vpop.f32.mrb[0].mxu0
      %617 = vmatprep.mubr.bf16.mxu0 0
      %618 = vmatmul.mubr.bf16.gmra.mrb[0].mxu0 %v403
      %v619 = vpop.f32.mrb[0].mxu0
      %v620 = vadd.f32 %v445, %v619
      %v621 = vpop.f32.mrb[0].mxu0
      %v622 = vpop.f32.mrb[0].mxu0
      %v623 = vadd.f32 %v446, %v622
      %v624 = vpop.f32.mrb[0].mxu0
      %625 = vmatprep.mubr.bf16.mxu0 0
      %626 = vmatmul.mubr.bf16.gmra.mrb[0].mxu0 %v404
      %v627 = vpop.f32.mrb[0].mxu0
      %v628 = vadd.f32 %v447, %v627
      %v629 = vpop.f32.mrb[0].mxu0
      %v630 = vpop.f32.mrb[0].mxu0
      %v631 = vadd.f32 %v448, %v630
      %v632 = vpop.f32.mrb[0].mxu0
      %633 = vmatprep.mubr.bf16.mxu0 0
      %634 = vmatmul.mubr.bf16.gmra.mrb[0].mxu0 %v405
      %v635 = vpop.f32.mrb[0].mxu0
      %v636 = vadd.f32 %v449, %v635
      %v637 = vpop.f32.mrb[0].mxu0
      %v638 = vpop.f32.mrb[0].mxu0
      %v639 = vadd.f32 %v450, %v638
      %v640 = vpop.f32.mrb[0].mxu0
      %641 = vmatprep.mubr.bf16.mxu0 0
      %642 = vmatmul.mubr.bf16.gmra.mrb[0].mxu0 %v406
      %v643 = vpop.f32.mrb[0].mxu0
      %v644 = vadd.f32 %v451, %v643
      %v645 = vpop.f32.mrb[0].mxu0
      %v646 = vpop.f32.mrb[0].mxu0
      %v647 = vadd.f32 %v452, %v646
      %v648 = vpop.f32.mrb[0].mxu0
      %649 = vmatprep.mubr.bf16.mxu0 0
      %650 = vmatmul.mubr.bf16.gmra.mrb[0].mxu0 %v407
      %v651 = vpop.f32.mrb[0].mxu0
      %v652 = vadd.f32 %v453, %v651
      %v653 = vpop.f32.mrb[0].mxu0
      %v654 = vpop.f32.mrb[0].mxu0
      %v655 = vadd.f32 %v454, %v654
      %v656 = vpop.f32.mrb[0].mxu0
      %657 = vmatprep.mubr.bf16.mxu0 0
      %658 = vmatmul.mubr.bf16.gmra.mrb[0].mxu0 %v408
      %v659 = vpop.f32.mrb[0].mxu0
      %v660 = vadd.f32 %v455, %v659
      %v661 = vpop.f32.mrb[0].mxu0
      %v662 = vpop.f32.mrb[0].mxu0
      %v663 = vadd.f32 %v456, %v662
      %v664 = vpop.f32.mrb[0].mxu0
      %665 = vdwg.mxu0
      %666 = vst [vmem:[%s248] sm:$0xff] %v540
      %667 = vst [vmem:[%s248 + $0x8] sm:$0xff] %v543
      %668 = vst [vmem:[%s248 + $0x10] sm:$0xff] %v548
      %669 = vst [vmem:[%s248 + $0x18] sm:$0xff] %v551
      %670 = vst [vmem:[%s248 + $0x20] sm:$0xff] %v556
      %671 = vst [vmem:[%s248 + $0x28] sm:$0xff] %v559
      %672 = vst [vmem:[%s248 + $0x30] sm:$0xff] %v564
      %673 = vst [vmem:[%s248 + $0x38] sm:$0xff] %v567
      %674 = vst [vmem:[%s248 + $0x40] sm:$0xff] %v572
      %675 = vst [vmem:[%s248 + $0x48] sm:$0xff] %v575
      %676 = vst [vmem:[%s248 + $0x50] sm:$0xff] %v580
      %677 = vst [vmem:[%s248 + $0x58] sm:$0xff] %v583
      %678 = vst [vmem:[%s248 + $0x60] sm:$0xff] %v588
      %679 = vst [vmem:[%s248 + $0x68] sm:$0xff] %v591
      %680 = vst [vmem:[%s248 + $0x70] sm:$0xff] %v596
      %681 = vst [vmem:[%s248 + $0x78] sm:$0xff] %v599
      %682 = vst [vmem:[%s248 + $0x80] sm:$0xff] %v604
      %683 = vst [vmem:[%s248 + $0x88] sm:$0xff] %v607
      %684 = vst [vmem:[%s248 + $0x90] sm:$0xff] %v612
      %685 = vst [vmem:[%s248 + $0x98] sm:$0xff] %v615
      %686 = vst [vmem:[%s248 + $0xa0] sm:$0xff] %v620
      %687 = vst [vmem:[%s248 + $0xa8] sm:$0xff] %v623
      %688 = vst [vmem:[%s248 + $0xb0] sm:$0xff] %v628
      %689 = vst [vmem:[%s248 + $0xb8] sm:$0xff] %v631
      %690 = vst [vmem:[%s248 + $0xc0] sm:$0xff] %v636
      %691 = vst [vmem:[%s248 + $0xc8] sm:$0xff] %v639
      %692 = vst [vmem:[%s248 + $0xd0] sm:$0xff] %v644
      %693 = vst [vmem:[%s248 + $0xd8] sm:$0xff] %v647
      %694 = vst [vmem:[%s248 + $0xe0] sm:$0xff] %v652
      %695 = vst [vmem:[%s248 + $0xe8] sm:$0xff] %v655
      %696 = vst [vmem:[%s248 + $0xf0] sm:$0xff] %v660
      %697 = vst [vmem:[%s248 + $0xf8] sm:$0xff] %v663
      %s698 = smul.u32 32, %s16
      %p699 = scmp.lt.s32.totalorder %s698, 63
      %s700 = scalar_select %p699, %s698, 63
      %s701 = smul.addr %s700, 8
      %s702 = scalar_lea.vmem %s5, %s701
      // Predicated region
      $region41: #{preact_bottleneck_forward.7} parent=39 // pred_check
        %p703 = pneg %p149
      $region42: #{preact_bottleneck_forward.7} parent=39 // pred_check_branch
        %705 = sbr.rel (%p703) target = $region44
      $region43: #{preact_bottleneck_forward.7} parent=39 // pred_region
        %s706 = smul.u32 32, %s16
      $region44: #{preact_bottleneck_forward.7} parent=39 // pred_fallthru
        _
    $region40: #{preact_bottleneck_forward.7} parent=5 // pred_fallthru
      _
    %p707 = scmp.le.s32.totalorder 2, %s11
    // Predicated region
    $region45: #{preact_bottleneck_forward.7} parent=5 // pred_check
      %p708 = pneg %p707
    $region46: #{preact_bottleneck_forward.7} parent=5 // pred_check_branch
      %710 = sbr.rel (%p708) target = $region48
    $region47: #{preact_bottleneck_forward.7} parent=5 // pred_region
      %s711 = ssub.s32 %s11, 2
      // Predicated region
      $region49: #{preact_bottleneck_forward.7} parent=47 // pred_check
        %p712 = pneg %p155
      $region50: #{preact_bottleneck_forward.7} parent=47 // pred_check_branch
        %714 = sbr.rel (%p712) target = $region52
      $region51: #{preact_bottleneck_forward.7} parent=47 // pred_region
        %s715 = smul.u32 32, %s17
        %p716 = scmp.lt.s32.totalorder %s715, 63
        %s717 = scalar_select %p716, %s715, 63
        %s718 = smul.addr %s717, 8
        %s719 = scalar_lea.vmem %s5, %s718
      $region52: #{preact_bottleneck_forward.7} parent=47 // pred_fallthru
        _
    $region48: #{preact_bottleneck_forward.7} parent=5 // pred_fallthru
      _
  $region6: #{preact_bottleneck_forward.7} parent=0 // loop_footer
    %s15 = sadd.s32 1, %s11
  $region7: #{preact_bottleneck_forward.7} parent=0 // loop_footer_branch
    %10 = sbr.rel target = $region3
  $region8: #{preact_bottleneck_forward.7} parent=0 // loop_exit
    _

// kernel: preact_bottleneck_forward.6
$region0: #{preact_bottleneck_forward.6}
  #allocation0 [shape = 'u32[]', space=smem, size = 0x4, offset = 0x4, fixed_abs, tag = 'smem constant byte address 0x4 - core index']
  #allocation1 [shape = 'u32[144,128]{1,0:T(1,128)}', space=vmem, size = 0x12000, scoped, tag = 'internal scratch']
  %s0 = inlined_call_operand.vmem [shape: f32[512,128], index: 0, kind: input, shape index: {}]
  %s1 = inlined_call_operand.vmem [shape: f32[1,128], index: 1, kind: input, shape index: {}]
  %s2 = inlined_call_operand.vmem [shape: f32[1,128], index: 2, kind: input, shape index: {}]
  %s3 = inlined_call_operand.vmem [shape: bf16[3,3,128,128], index: 3, kind: input, shape index: {}]
  %s4 = inlined_call_operand.vmem [shape: f32[512,128], index: 4, kind: output, shape index: {0}]
  %s5 = inlined_call_operand.vmem [shape: f32[2,2,128], index: 5, kind: output, shape index: {1}]
  %6 = xla_tuple %s4, %s5
  %s7 = sld [smem:[#allocation0]]
  $region57: #{preact_bottleneck_forward.6} parent=0
    _
  %s9 = ssub.s32 1, %s7
  %s10 = scalar_select 0, %s9, %s7
  loop: start=0, step=1, limit=4
  $region2: #{preact_bottleneck_forward.6} parent=0 // loop_pre_header
    _
  $region3: #{preact_bottleneck_forward.6} parent=0 // loop_header
    %s12 = sphi 0, %s16
    %p13 = scmp.ge.s32.totalorder %s12, 4
    %s22 = sphi 0, %s24
    %s25 = sphi 0, %s22
    %s26 = sphi 0, %s25
    %s42 = sphi 0, %s26
    %s46 = sphi 0, %s46
    %s48 = sphi 0, %s46
    %s49 = sphi 0, %s48
    %s63 = sphi 0, %s49
    %s67 = sphi 0, %s67
    %s69 = sphi 0, %s67
    %s70 = sphi 0, %s69
    %s84 = sphi 0, %s70
    %s88 = sphi 0, %s88
    %s90 = sphi 0, %s88
    %s91 = sphi 0, %s90
    %s105 = sphi 0, %s91
    %s111 = sphi 0, %s113
    %s114 = sphi 0, %s111
    %s115 = sphi 0, %s114
    %s131 = sphi 0, %s115
    %s137 = sphi 0, %s139
    %s140 = sphi 0, %s137
    %s141 = sphi 0, %s140
    %s157 = sphi 0, %s141
  $region4: #{preact_bottleneck_forward.6} parent=0 // loop_header_branch
    %15 = sbr.rel (%p13) target = $region8
  $region5: #{preact_bottleneck_forward.6} parent=0 // loop_body
    %s17 = ssub.s32 %s12, 1
    %s18 = ssub.s32 %s12, 2
    %s19 = sadd.s32 %s12, 1
    %s20 = ssub.s32 %s12, %s19
    %p21 = scmp.eq.s32.totalorder %s20, 0
    %s23 = sadd.s32 %s22, 1
    %s24 = scalar_select %p21, %s22, %s23
    %p27 = pneg %p21
    %p28 = scmp.eq.s32.totalorder %s12, 1
    %p29 = por %p27, %p28
    %p30 = scmp.ne.s32.totalorder %s22, %s25
    %p31 = scmp.eq.s32.totalorder %s12, 0
    %p32 = por %p30, %p31
    %p33 = scmp.ne.s32.totalorder %s22, %s25
    %p34 = scmp.eq.s32.totalorder %s17, 1
    %p35 = por %p33, %p34
    %p36 = scmp.ne.s32.totalorder %s25, %s26
    %p37 = scmp.eq.s32.totalorder %s17, 0
    %p38 = por %p36, %p37
    %p39 = scmp.ne.s32.totalorder %s25, %s26
    %p40 = scmp.eq.s32.totalorder %s18, 1
    %p41 = por %p39, %p40
    %p43 = scmp.ne.s32.totalorder %s26, %s42
    %p44 = scmp.eq.s32.totalorder %s18, 0
    %p45 = por %p43, %p44
    %s47 = sadd.s32 %s46, 1
    %p50 = scmp.eq.s32.totalorder %s12, 1
    %p51 = scmp.ne.s32.totalorder %s46, %s48
    %p52 = scmp.eq.s32.totalorder %s12, 0
    %p53 = por %p51, %p52
    %p54 = scmp.ne.s32.totalorder %s46, %s48
    %p55 = scmp.eq.s32.totalorder %s17, 1
    %p56 = por %p54, %p55
    %p57 = scmp.ne.s32.totalorder %s48, %s49
    %p58 = scmp.eq.s32.totalorder %s17, 0
    %p59 = por %p57, %p58
    %p60 = scmp.ne.s32.totalorder %s48, %s49
    %p61 = scmp.eq.s32.totalorder %s18, 1
    %p62 = por %p60, %p61
    %p64 = scmp.ne.s32.totalorder %s49, %s63
    %p65 = scmp.eq.s32.totalorder %s18, 0
    %p66 = por %p64, %p65
    %s68 = sadd.s32 %s67, 1
    %p71 = scmp.eq.s32.totalorder %s12, 1
    %p72 = scmp.ne.s32.totalorder %s67, %s69
    %p73 = scmp.eq.s32.totalorder %s12, 0
    %p74 = por %p72, %p73
    %p75 = scmp.ne.s32.totalorder %s67, %s69
    %p76 = scmp.eq.s32.totalorder %s17, 1
    %p77 = por %p75, %p76
    %p78 = scmp.ne.s32.totalorder %s69, %s70
    %p79 = scmp.eq.s32.totalorder %s17, 0
    %p80 = por %p78, %p79
    %p81 = scmp.ne.s32.totalorder %s69, %s70
    %p82 = scmp.eq.s32.totalorder %s18, 1
    %p83 = por %p81, %p82
    %p85 = scmp.ne.s32.totalorder %s70, %s84
    %p86 = scmp.eq.s32.totalorder %s18, 0
    %p87 = por %p85, %p86
    %s89 = sadd.s32 %s88, 1
    %p92 = scmp.eq.s32.totalorder %s12, 1
    %p93 = scmp.ne.s32.totalorder %s88, %s90
    %p94 = scmp.eq.s32.totalorder %s12, 0
    %p95 = por %p93, %p94
    %p96 = scmp.ne.s32.totalorder %s88, %s90
    %p97 = scmp.eq.s32.totalorder %s17, 1
    %p98 = por %p96, %p97
    %p99 = scmp.ne.s32.totalorder %s90, %s91
    %p100 = scmp.eq.s32.totalorder %s17, 0
    %p101 = por %p99, %p100
    %p102 = scmp.ne.s32.totalorder %s90, %s91
    %p103 = scmp.eq.s32.totalorder %s18, 1
    %p104 = por %p102, %p103
    %p106 = scmp.ne.s32.totalorder %s91, %s105
    %p107 = scmp.eq.s32.totalorder %s18, 0
    %p108 = por %p106, %p107
    %s109 = ssub.s32 %s12, %s19
    %p110 = scmp.eq.s32.totalorder %s109, 0
    %s112 = sadd.s32 %s111, 1
    %s113 = scalar_select %p110, %s111, %s112
    %p116 = pneg %p110
    %p117 = scmp.eq.s32.totalorder %s12, 1
    %p118 = por %p116, %p117
    %p119 = scmp.ne.s32.totalorder %s111, %s114
    %p120 = scmp.eq.s32.totalorder %s12, 0
    %p121 = por %p119, %p120
    %p122 = scmp.ne.s32.totalorder %s111, %s114
    %p123 = scmp.eq.s32.totalorder %s17, 1
    %p124 = por %p122, %p123
    %p125 = scmp.ne.s32.totalorder %s114, %s115
    %p126 = scmp.eq.s32.totalorder %s17, 0
    %p127 = por %p125, %p126
    %p128 = scmp.ne.s32.totalorder %s114, %s115
    %p129 = scmp.eq.s32.totalorder %s18, 1
    %p130 = por %p128, %p129
    %p132 = scmp.ne.s32.totalorder %s115, %s131
    %p133 = scmp.eq.s32.totalorder %s18, 0
    %p134 = por %p132, %p133
    %s135 = ssub.s32 %s12, %s19
    %p136 = scmp.eq.s32.totalorder %s135, 0
    %s138 = sadd.s32 %s137, 1
    %s139 = scalar_select %p136, %s137, %s138
    %p142 = pneg %p136
    %p143 = scmp.eq.s32.totalorder %s12, 1
    %p144 = por %p142, %p143
    %p145 = scmp.ne.s32.totalorder %s137, %s140
    %p146 = scmp.eq.s32.totalorder %s12, 0
    %p147 = por %p145, %p146
    %p148 = scmp.ne.s32.totalorder %s137, %s140
    %p149 = scmp.eq.s32.totalorder %s17, 1
    %p150 = por %p148, %p149
    %p151 = scmp.ne.s32.totalorder %s140, %s141
    %p152 = scmp.eq.s32.totalorder %s17, 0
    %p153 = por %p151, %p152
    %p154 = scmp.ne.s32.totalorder %s140, %s141
    %p155 = scmp.eq.s32.totalorder %s18, 1
    %p156 = por %p154, %p155
    %p158 = scmp.ne.s32.totalorder %s141, %s157
    %p159 = scmp.eq.s32.totalorder %s18, 0
    %p160 = por %p158, %p159
    %p161 = scmp.le.s32.totalorder 1, %s12
    %p162 = scmp.lt.s32.totalorder %s12, 3
    %p163 = pnand %p161, %p162
    %p164 = pneg %p163
    // Predicated region
    $region9: #{preact_bottleneck_forward.6} parent=5 // pred_check
      _
    $region10: #{preact_bottleneck_forward.6} parent=5 // pred_check_branch
      %166 = sbr.rel (%p163) target = $region12
    $region11: #{preact_bottleneck_forward.6} parent=5 // pred_region
      %s167 = ssub.s32 %s12, 1
      // Predicated region
      $region13: #{preact_bottleneck_forward.6} parent=11 // pred_check
        %p168 = pneg %p59
      $region14: #{preact_bottleneck_forward.6} parent=11 // pred_check_branch
        %170 = sbr.rel (%p168) target = $region16
      $region15: #{preact_bottleneck_forward.6} parent=11 // pred_region
        _
      $region16: #{preact_bottleneck_forward.6} parent=11 // pred_fallthru
        _
      // Predicated region
      $region17: #{preact_bottleneck_forward.6} parent=11 // pred_check
        %p171 = pneg %p80
      $region18: #{preact_bottleneck_forward.6} parent=11 // pred_check_branch
        %173 = sbr.rel (%p171) target = $region20
      $region19: #{preact_bottleneck_forward.6} parent=11 // pred_region
        _
      $region20: #{preact_bottleneck_forward.6} parent=11 // pred_fallthru
        _
      // Predicated region
      $region21: #{preact_bottleneck_forward.6} parent=11 // pred_check
        %p174 = pneg %p101
      $region22: #{preact_bottleneck_forward.6} parent=11 // pred_check_branch
        %176 = sbr.rel (%p174) target = $region24
      $region23: #{preact_bottleneck_forward.6} parent=11 // pred_region
        _
      $region24: #{preact_bottleneck_forward.6} parent=11 // pred_fallthru
        _
    $region12: #{preact_bottleneck_forward.6} parent=5 // pred_fallthru
      _
    %p177 = scmp.lt.s32.totalorder %s12, 2
    // Predicated region
    $region25: #{preact_bottleneck_forward.6} parent=5 // pred_check
      %p178 = pneg %p177
    $region26: #{preact_bottleneck_forward.6} parent=5 // pred_check_branch
      %180 = sbr.rel (%p178) target = $region28
    $region27: #{preact_bottleneck_forward.6} parent=5 // pred_region
      // Predicated region
      $region29: #{preact_bottleneck_forward.6} parent=27 // pred_check
        %p181 = pneg %p32
      $region30: #{preact_bottleneck_forward.6} parent=27 // pred_check_branch
        %183 = sbr.rel (%p181) target = $region32
      $region31: #{preact_bottleneck_forward.6} parent=27 // pred_region
        %s184 = smul.u32 32, %s12
        %p185 = scmp.lt.s32.totalorder %s184, 63
        %s186 = scalar_select %p185, %s184, 63
        %s187 = smul.addr %s186, 8
        %s188 = scalar_lea.vmem %s0, %s187
        %s189 = smul.u32 32, %s12
      $region32: #{preact_bottleneck_forward.6} parent=27 // pred_fallthru
        _
    $region28: #{preact_bottleneck_forward.6} parent=5 // pred_fallthru
      _
    %p190 = scmp.le.s32.totalorder 1, %s12
    %p191 = scmp.lt.s32.totalorder %s12, 3
    %p192 = pnand %p190, %p191
    %p193 = pneg %p192
    // Predicated region
    $region33: #{preact_bottleneck_forward.6} parent=5 // pred_check
      _
    $region34: #{preact_bottleneck_forward.6} parent=5 // pred_check_branch
      %195 = sbr.rel (%p192) target = $region36
    $region35: #{preact_bottleneck_forward.6} parent=5 // pred_region
      %s196 = ssub.s32 %s12, 1
      %s197 = smul.u32 32, %s17
      %p198 = scmp.lt.s32.totalorder %s197, 63
      %s199 = scalar_select %p198, %s197, 63
      %s200 = smul.addr %s199, 8
      %s201 = scalar_lea.vmem %s0, %s200
      %p202 = pneg %p38
      %p203 = pneg %p35
      %p204 = pneg %p59
      %p205 = pneg %p56
      %p206 = pneg %p80
      %p207 = pneg %p77
      %p208 = pneg %p101
      %p209 = pneg %p98
      %p210 = pneg %p127
      %p211 = pneg %p124
      %s212 = smul.u32 32, %s17
      %p213 = scmp.lt.s32.totalorder %s212, 63
      %s214 = scalar_select %p213, %s212, 63
      %s215 = smul.addr %s214, 8
      %s216 = scalar_lea.vmem %s4, %s215
      %p217 = pneg %p153
      %p218 = pneg %p150
      %p219 = scmp.lt.s32.totalorder %s17, 1
      %s220 = scalar_select %p219, %s17, 1
      %s221 = smul.addr %s220, 2
      %s222 = scalar_lea.vmem %s5, %s221
      %s223 = smul.u32 32, %s17
      %p224 = scmp.lt.s32.totalorder %s223, 63
      %s225 = scalar_select %p224, %s223, 63
      %s226 = smul.addr %s225, 8
      %s227 = scalar_lea.vmem %s0, %s226
      %s228 = smul.u32 32, %s17
      %s229 = smul.u32 32, %s17
      %p230 = scmp.lt.s32.totalorder %s229, 63
      %s231 = scalar_select %p230, %s229, 63
      %s232 = smul.addr %s231, 8
      %s233 = scalar_lea.vmem %s4, %s232
      %s234 = smul.u32 32, %s17
      %p235 = scmp.lt.s32.totalorder %s17, 1
      %s236 = scalar_select %p235, %s17, 1
      %s237 = smul.addr %s236, 2
      %s238 = scalar_lea.vmem %s5, %s237
      %v240 = vld [vmem:[%s227] sm:$0xff]
      %v241 = vld [vmem:[%s227 + $0x8] sm:$0xff]
      %v242 = vld [vmem:[%s227 + $0x10] sm:$0xff]
      %v243 = vld [vmem:[%s227 + $0x18] sm:$0xff]
      %v244 = vld [vmem:[%s227 + $0x20] sm:$0xff]
      %v245 = vld [vmem:[%s227 + $0x28] sm:$0xff]
      %v246 = vld [vmem:[%s227 + $0x30] sm:$0xff]
      %v247 = vld [vmem:[%s227 + $0x38] sm:$0xff]
      %v248 = vld [vmem:[%s227 + $0x40] sm:$0xff]
      %v249 = vld [vmem:[%s227 + $0x48] sm:$0xff]
      %v250 = vld [vmem:[%s227 + $0x50] sm:$0xff]
      %v251 = vld [vmem:[%s227 + $0x58] sm:$0xff]
      %v252 = vld [vmem:[%s227 + $0x60] sm:$0xff]
      %v253 = vld [vmem:[%s227 + $0x68] sm:$0xff]
      %v254 = vld [vmem:[%s227 + $0x70] sm:$0xff]
      %v255 = vld [vmem:[%s227 + $0x78] sm:$0xff]
      %v256 = vld [vmem:[%s227 + $0x80] sm:$0xff]
      %v257 = vld [vmem:[%s227 + $0x88] sm:$0xff]
      %v258 = vld [vmem:[%s227 + $0x90] sm:$0xff]
      %v259 = vld [vmem:[%s227 + $0x98] sm:$0xff]
      %v260 = vld [vmem:[%s227 + $0xa0] sm:$0xff]
      %v261 = vld [vmem:[%s227 + $0xa8] sm:$0xff]
      %v262 = vld [vmem:[%s227 + $0xb0] sm:$0xff]
      %v263 = vld [vmem:[%s227 + $0xb8] sm:$0xff]
      %v264 = vld [vmem:[%s227 + $0xc0] sm:$0xff]
      %v265 = vld [vmem:[%s227 + $0xc8] sm:$0xff]
      %v266 = vld [vmem:[%s227 + $0xd0] sm:$0xff]
      %v267 = vld [vmem:[%s227 + $0xd8] sm:$0xff]
      %v268 = vld [vmem:[%s227 + $0xe0] sm:$0xff]
      %v269 = vld [vmem:[%s227 + $0xe8] sm:$0xff]
      %v270 = vld [vmem:[%s227 + $0xf0] sm:$0xff]
      %v271 = vld [vmem:[%s227 + $0xf8] sm:$0xff]
      %v272 = vld [vmem:[%s1] sm:$0x1]
      %v274 = vlaneseq
      %v275 = vshrl.u32 %v274, 7
      %v276 = vsub.s32 0, %v275
      %v277 = vrot.slane %v272, %v276
      %v279 = vmul.f32 %v240, %v277
      %v280 = vmul.f32 %v241, %v277
      %v281 = vmul.f32 %v242, %v277
      %v282 = vmul.f32 %v243, %v277
      %v283 = vmul.f32 %v244, %v277
      %v284 = vmul.f32 %v245, %v277
      %v285 = vmul.f32 %v246, %v277
      %v286 = vmul.f32 %v247, %v277
      %v287 = vmul.f32 %v248, %v277
      %v288 = vmul.f32 %v249, %v277
      %v289 = vmul.f32 %v250, %v277
      %v290 = vmul.f32 %v251, %v277
      %v291 = vmul.f32 %v252, %v277
      %v292 = vmul.f32 %v253, %v277
      %v293 = vmul.f32 %v254, %v277
      %v294 = vmul.f32 %v255, %v277
      %v295 = vmul.f32 %v256, %v277
      %v296 = vmul.f32 %v257, %v277
      %v297 = vmul.f32 %v258, %v277
      %v298 = vmul.f32 %v259, %v277
      %v299 = vmul.f32 %v260, %v277
      %v300 = vmul.f32 %v261, %v277
      %v301 = vmul.f32 %v262, %v277
      %v302 = vmul.f32 %v263, %v277
      %v303 = vmul.f32 %v264, %v277
      %v304 = vmul.f32 %v265, %v277
      %v305 = vmul.f32 %v266, %v277
      %v306 = vmul.f32 %v267, %v277
      %v307 = vmul.f32 %v268, %v277
      %v308 = vmul.f32 %v269, %v277
      %v309 = vmul.f32 %v270, %v277
      %v310 = vmul.f32 %v271, %v277
      %v311 = vld [vmem:[%s2] sm:$0x1]
      %v313 = vlaneseq
      %v314 = vshrl.u32 %v313, 7
      %v315 = vsub.s32 0, %v314
      %v316 = vrot.slane %v311, %v315
      %v318 = vadd.f32 %v279, %v316
      %v319 = vadd.f32 %v280, %v316
      %v320 = vadd.f32 %v281, %v316
      %v321 = vadd.f32 %v282, %v316
      %v322 = vadd.f32 %v283, %v316
      %v323 = vadd.f32 %v284, %v316
      %v324 = vadd.f32 %v285, %v316
      %v325 = vadd.f32 %v286, %v316
      %v326 = vadd.f32 %v287, %v316
      %v327 = vadd.f32 %v288, %v316
      %v328 = vadd.f32 %v289, %v316
      %v329 = vadd.f32 %v290, %v316
      %v330 = vadd.f32 %v291, %v316
      %v331 = vadd.f32 %v292, %v316
      %v332 = vadd.f32 %v293, %v316
      %v333 = vadd.f32 %v294, %v316
      %v334 = vadd.f32 %v295, %v316
      %v335 = vadd.f32 %v296, %v316
      %v336 = vadd.f32 %v297, %v316
      %v337 = vadd.f32 %v298, %v316
      %v338 = vadd.f32 %v299, %v316
      %v339 = vadd.f32 %v300, %v316
      %v340 = vadd.f32 %v301, %v316
      %v341 = vadd.f32 %v302, %v316
      %v342 = vadd.f32 %v303, %v316
      %v343 = vadd.f32 %v304, %v316
      %v344 = vadd.f32 %v305, %v316
      %v345 = vadd.f32 %v306, %v316
      %v346 = vadd.f32 %v307, %v316
      %v347 = vadd.f32 %v308, %v316
      %v348 = vadd.f32 %v309, %v316
      %v349 = vadd.f32 %v310, %v316
      %v350 = vmax.f32 %v318, 0.0
      %v351 = vmax.f32 %v319, 0.0
      %v352 = vmax.f32 %v320, 0.0
      %v353 = vmax.f32 %v321, 0.0
      %v354 = vmax.f32 %v322, 0.0
      %v355 = vmax.f32 %v323, 0.0
      %v356 = vmax.f32 %v324, 0.0
      %v357 = vmax.f32 %v325, 0.0
      %v358 = vmax.f32 %v326, 0.0
      %v359 = vmax.f32 %v327, 0.0
      %v360 = vmax.f32 %v328, 0.0
      %v361 = vmax.f32 %v329, 0.0
      %v362 = vmax.f32 %v330, 0.0
      %v363 = vmax.f32 %v331, 0.0
      %v364 = vmax.f32 %v332, 0.0
      %v365 = vmax.f32 %v333, 0.0
      %v366 = vmax.f32 %v334, 0.0
      %v367 = vmax.f32 %v335, 0.0
      %v368 = vmax.f32 %v336, 0.0
      %v369 = vmax.f32 %v337, 0.0
      %v370 = vmax.f32 %v338, 0.0
      %v371 = vmax.f32 %v339, 0.0
      %v372 = vmax.f32 %v340, 0.0
      %v373 = vmax.f32 %v341, 0.0
      %v374 = vmax.f32 %v342, 0.0
      %v375 = vmax.f32 %v343, 0.0
      %v376 = vmax.f32 %v344, 0.0
      %v377 = vmax.f32 %v345, 0.0
      %v378 = vmax.f32 %v346, 0.0
      %v379 = vmax.f32 %v347, 0.0
      %v380 = vmax.f32 %v348, 0.0
      %v381 = vmax.f32 %v349, 0.0
      %v382 = vlaneseq
      %v383 = vshrl.u32 %v382, 7
      %v384 = vadd.s32 %v383, 8
      %v385 = vadd.s32 %v383, 16
      %v386 = vadd.s32 %v383, 24
      %v387 = vadd.s32 %v383, 32
      %v388 = vadd.s32 %v383, 40
      %v389 = vadd.s32 %v383, 48
      %v390 = vadd.s32 %v383, 56
      %v391 = vadd.s32 %v383, 64
      %v392 = vadd.s32 %v383, 72
      %v393 = vadd.s32 %v383, 80
      %v394 = vadd.s32 %v383, 88
      %v395 = vadd.s32 %v383, 96
      %v396 = vadd.s32 %v383, 104
      %v397 = vadd.s32 %v383, 112
      %v398 = vadd.s32 %v383, 120
      %v399 = vadd.s32 %v383, 128
      %v400 = vadd.s32 %v383, 136
      %v401 = vadd.s32 %v383, 144
      %v402 = vadd.s32 %v383, 152
      %v403 = vadd.s32 %v383, 160
      %v404 = vadd.s32 %v383, 168
      %v405 = vadd.s32 %v383, 176
      %v406 = vadd.s32 %v383, 184
      %v407 = vadd.s32 %v383, 192
      %v408 = vadd.s32 %v383, 200
      %v409 = vadd.s32 %v383, 208
      %v410 = vadd.s32 %v383, 216
      %v411 = vadd.s32 %v383, 224
      %v412 = vadd.s32 %v383, 232
      %v413 = vadd.s32 %v383, 240
      %v414 = vadd.s32 %v383, 248
      %vm415 = vcmp.lt.s32.totalorder %v383, 0
      %v416 = vsub.s32 0, %v383
      %v417 = vsel %vm415, %v416, %v383
      %v418 = vshrl.u32 %v417, 4
      %v419 = vand.u32 %v417, 15
      %v420 = vsub.s32 0, %v419
      %v421 = vsel %vm415, %v420, %v419
      %vm422 = vcmp.lt.s32.totalorder %v384, 0
      %v423 = vsub.s32 0, %v384
      %v424 = vsel %vm422, %v423, %v384
      %v425 = vshrl.u32 %v424, 4
      %v426 = vand.u32 %v424, 15
      %v427 = vsub.s32 0, %v426
      %v428 = vsel %vm422, %v427, %v426
      %vm429 = vcmp.lt.s32.totalorder %v385, 0
      %v430 = vsub.s32 0, %v385
      %v431 = vsel %vm429, %v430, %v385
      %v432 = vshrl.u32 %v431, 4
      %v433 = vand.u32 %v431, 15
      %v434 = vsub.s32 0, %v433
      %v435 = vsel %vm429, %v434, %v433
      %vm436 = vcmp.lt.s32.totalorder %v386, 0
      %v437 = vsub.s32 0, %v386
      %v438 = vsel %vm436, %v437, %v386
      %v439 = vshrl.u32 %v438, 4
      %v440 = vand.u32 %v438, 15
      %v441 = vsub.s32 0, %v440
      %v442 = vsel %vm436, %v441, %v440
      %vm443 = vcmp.lt.s32.totalorder %v387, 0
      %v444 = vsub.s32 0, %v387
      %v445 = vsel %vm443, %v444, %v387
      %v446 = vshrl.u32 %v445, 4
      %v447 = vand.u32 %v445, 15
      %v448 = vsub.s32 0, %v447
      %v449 = vsel %vm443, %v448, %v447
      %vm450 = vcmp.lt.s32.totalorder %v388, 0
      %v451 = vsub.s32 0, %v388
      %v452 = vsel %vm450, %v451, %v388
      %v453 = vshrl.u32 %v452, 4
      %v454 = vand.u32 %v452, 15
      %v455 = vsub.s32 0, %v454
      %v456 = vsel %vm450, %v455, %v454
      %vm457 = vcmp.lt.s32.totalorder %v389, 0
      %v458 = vsub.s32 0, %v389
      %v459 = vsel %vm457, %v458, %v389
      %v460 = vshrl.u32 %v459, 4
      %v461 = vand.u32 %v459, 15
      %v462 = vsub.s32 0, %v461
      %v463 = vsel %vm457, %v462, %v461
      %vm464 = vcmp.lt.s32.totalorder %v390, 0
      %v465 = vsub.s32 0, %v390
      %v466 = vsel %vm464, %v465, %v390
      %v467 = vshrl.u32 %v466, 4
      %v468 = vand.u32 %v466, 15
      %v469 = vsub.s32 0, %v468
      %v470 = vsel %vm464, %v469, %v468
      %vm471 = vcmp.lt.s32.totalorder %v391, 0
      %v472 = vsub.s32 0, %v391
      %v473 = vsel %vm471, %v472, %v391
      %v474 = vshrl.u32 %v473, 4
      %v475 = vand.u32 %v473, 15
      %v476 = vsub.s32 0, %v475
      %v477 = vsel %vm471, %v476, %v475
      %vm478 = vcmp.lt.s32.totalorder %v392, 0
      %v479 = vsub.s32 0, %v392
      %v480 = vsel %vm478, %v479, %v392
      %v481 = vshrl.u32 %v480, 4
      %v482 = vand.u32 %v480, 15
      %v483 = vsub.s32 0, %v482
      %v484 = vsel %vm478, %v483, %v482
      %vm485 = vcmp.lt.s32.totalorder %v393, 0
      %v486 = vsub.s32 0, %v393
      %v487 = vsel %vm485, %v486, %v393
      %v488 = vshrl.u32 %v487, 4
      %v489 = vand.u32 %v487, 15
      %v490 = vsub.s32 0, %v489
      %v491 = vsel %vm485, %v490, %v489
      %vm492 = vcmp.lt.s32.totalorder %v394, 0
      %v493 = vsub.s32 0, %v394
      %v494 = vsel %vm492, %v493, %v394
      %v495 = vshrl.u32 %v494, 4
      %v496 = vand.u32 %v494, 15
      %v497 = vsub.s32 0, %v496
      %v498 = vsel %vm492, %v497, %v496
      %vm499 = vcmp.lt.s32.totalorder %v395, 0
      %v500 = vsub.s32 0, %v395
      %v501 = vsel %vm499, %v500, %v395
      %v502 = vshrl.u32 %v501, 4
      %v503 = vand.u32 %v501, 15
      %v504 = vsub.s32 0, %v503
      %v505 = vsel %vm499, %v504, %v503
      %vm506 = vcmp.lt.s32.totalorder %v396, 0
      %v507 = vsub.s32 0, %v396
      %v508 = vsel %vm506, %v507, %v396
      %v509 = vshrl.u32 %v508, 4
      %v510 = vand.u32 %v508, 15
      %v511 = vsub.s32 0, %v510
      %v512 = vsel %vm506, %v511, %v510
      %vm513 = vcmp.lt.s32.totalorder %v397, 0
      %v514 = vsub.s32 0, %v397
      %v515 = vsel %vm513, %v514, %v397
      %v516 = vshrl.u32 %v515, 4
      %v517 = vand.u32 %v515, 15
      %v518 = vsub.s32 0, %v517
      %v519 = vsel %vm513, %v518, %v517
      %vm520 = vcmp.lt.s32.totalorder %v398, 0
      %v521 = vsub.s32 0, %v398
      %v522 = vsel %vm520, %v521, %v398
      %v523 = vshrl.u32 %v522, 4
      %v524 = vand.u32 %v522, 15
      %v525 = vsub.s32 0, %v524
      %v526 = vsel %vm520, %v525, %v524
      %vm527 = vcmp.lt.s32.totalorder %v399, 0
      %v528 = vsub.s32 0, %v399
      %v529 = vsel %vm527, %v528, %v399
      %v530 = vshrl.u32 %v529, 4
      %v531 = vand.u32 %v529, 15
      %v532 = vsub.s32 0, %v531
      %v533 = vsel %vm527, %v532, %v531
      %vm534 = vcmp.lt.s32.totalorder %v400, 0
      %v535 = vsub.s32 0, %v400
      %v536 = vsel %vm534, %v535, %v400
      %v537 = vshrl.u32 %v536, 4
      %v538 = vand.u32 %v536, 15
      %v539 = vsub.s32 0, %v538
      %v540 = vsel %vm534, %v539, %v538
      %vm541 = vcmp.lt.s32.totalorder %v401, 0
      %v542 = vsub.s32 0, %v401
      %v543 = vsel %vm541, %v542, %v401
      %v544 = vshrl.u32 %v543, 4
      %v545 = vand.u32 %v543, 15
      %v546 = vsub.s32 0, %v545
      %v547 = vsel %vm541, %v546, %v545
      %vm548 = vcmp.lt.s32.totalorder %v402, 0
      %v549 = vsub.s32 0, %v402
      %v550 = vsel %vm548, %v549, %v402
      %v551 = vshrl.u32 %v550, 4
      %v552 = vand.u32 %v550, 15
      %v553 = vsub.s32 0, %v552
      %v554 = vsel %vm548, %v553, %v552
      %vm555 = vcmp.lt.s32.totalorder %v403, 0
      %v556 = vsub.s32 0, %v403
      %v557 = vsel %vm555, %v556, %v403
      %v558 = vshrl.u32 %v557, 4
      %v559 = vand.u32 %v557, 15
      %v560 = vsub.s32 0, %v559
      %v561 = vsel %vm555, %v560, %v559
      %vm562 = vcmp.lt.s32.totalorder %v404, 0
      %v563 = vsub.s32 0, %v404
      %v564 = vsel %vm562, %v563, %v404
      %v565 = vshrl.u32 %v564, 4
      %v566 = vand.u32 %v564, 15
      %v567 = vsub.s32 0, %v566
      %v568 = vsel %vm562, %v567, %v566
      %vm569 = vcmp.lt.s32.totalorder %v405, 0
      %v570 = vsub.s32 0, %v405
      %v571 = vsel %vm569, %v570, %v405
      %v572 = vshrl.u32 %v571, 4
      %v573 = vand.u32 %v571, 15
      %v574 = vsub.s32 0, %v573
      %v575 = vsel %vm569, %v574, %v573
      %vm576 = vcmp.lt.s32.totalorder %v406, 0
      %v577 = vsub.s32 0, %v406
      %v578 = vsel %vm576, %v577, %v406
      %v579 = vshrl.u32 %v578, 4
      %v580 = vand.u32 %v578, 15
      %v581 = vsub.s32 0, %v580
      %v582 = vsel %vm576, %v581, %v580
      %vm583 = vcmp.lt.s32.totalorder %v407, 0
      %v584 = vsub.s32 0, %v407
      %v585 = vsel %vm583, %v584, %v407
      %v586 = vshrl.u32 %v585, 4
      %v587 = vand.u32 %v585, 15
      %v588 = vsub.s32 0, %v587
      %v589 = vsel %vm583, %v588, %v587
      %vm590 = vcmp.lt.s32.totalorder %v408, 0
      %v591 = vsub.s32 0, %v408
      %v592 = vsel %vm590, %v591, %v408
      %v593 = vshrl.u32 %v592, 4
      %v594 = vand.u32 %v592, 15
      %v595 = vsub.s32 0, %v594
      %v596 = vsel %vm590, %v595, %v594
      %vm597 = vcmp.lt.s32.totalorder %v409, 0
      %v598 = vsub.s32 0, %v409
      %v599 = vsel %vm597, %v598, %v409
      %v600 = vshrl.u32 %v599, 4
      %v601 = vand.u32 %v599, 15
      %v602 = vsub.s32 0, %v601
      %v603 = vsel %vm597, %v602, %v601
      %vm604 = vcmp.lt.s32.totalorder %v410, 0
      %v605 = vsub.s32 0, %v410
      %v606 = vsel %vm604, %v605, %v410
      %v607 = vshrl.u32 %v606, 4
      %v608 = vand.u32 %v606, 15
      %v609 = vsub.s32 0, %v608
      %v610 = vsel %vm604, %v609, %v608
      %vm611 = vcmp.lt.s32.totalorder %v411, 0
      %v612 = vsub.s32 0, %v411
      %v613 = vsel %vm611, %v612, %v411
      %v614 = vshrl.u32 %v613, 4
      %v615 = vand.u32 %v613, 15
      %v616 = vsub.s32 0, %v615
      %v617 = vsel %vm611, %v616, %v615
      %vm618 = vcmp.lt.s32.totalorder %v412, 0
      %v619 = vsub.s32 0, %v412
      %v620 = vsel %vm618, %v619, %v412
      %v621 = vshrl.u32 %v620, 4
      %v622 = vand.u32 %v620, 15
      %v623 = vsub.s32 0, %v622
      %v624 = vsel %vm618, %v623, %v622
      %vm625 = vcmp.lt.s32.totalorder %v413, 0
      %v626 = vsub.s32 0, %v413
      %v627 = vsel %vm625, %v626, %v413
      %v628 = vshrl.u32 %v627, 4
      %v629 = vand.u32 %v627, 15
      %v630 = vsub.s32 0, %v629
      %v631 = vsel %vm625, %v630, %v629
      %vm632 = vcmp.lt.s32.totalorder %v414, 0
      %v633 = vsub.s32 0, %v414
      %v634 = vsel %vm632, %v633, %v414
      %v635 = vshrl.u32 %v634, 4
      %v636 = vand.u32 %v634, 15
      %v637 = vsub.s32 0, %v636
      %v638 = vsel %vm632, %v637, %v636
      %vm639 = vcmp.ne.s32.totalorder %v421, 0
      %vm640 = vcmp.ne.s32.totalorder %v428, 0
      %vm641 = vcmp.ne.s32.totalorder %v435, 0
      %vm642 = vcmp.ne.s32.totalorder %v442, 0
      %vm643 = vcmp.ne.s32.totalorder %v449, 0
      %vm644 = vcmp.ne.s32.totalorder %v456, 0
      %vm645 = vcmp.ne.s32.totalorder %v463, 0
      %vm646 = vcmp.ne.s32.totalorder %v470, 0
      %vm647 = vcmp.ne.s32.totalorder %v477, 0
      %vm648 = vcmp.ne.s32.totalorder %v484, 0
      %vm649 = vcmp.ne.s32.totalorder %v491, 0
      %vm650 = vcmp.ne.s32.totalorder %v498, 0
      %vm651 = vcmp.ne.s32.totalorder %v505, 0
      %vm652 = vcmp.ne.s32.totalorder %v512, 0
      %vm653 = vcmp.ne.s32.totalorder %v519, 0
      %vm654 = vcmp.ne.s32.totalorder %v526, 0
      %vm655 = vcmp.ne.s32.totalorder %v533, 0
      %vm656 = vcmp.ne.s32.totalorder %v540, 0
      %vm657 = vcmp.ne.s32.totalorder %v547, 0
      %vm658 = vcmp.ne.s32.totalorder %v554, 0
      %vm659 = vcmp.ne.s32.totalorder %v561, 0
      %vm660 = vcmp.ne.s32.totalorder %v568, 0
      %vm661 = vcmp.ne.s32.totalorder %v575, 0
      %vm662 = vcmp.ne.s32.totalorder %v582, 0
      %vm663 = vcmp.ne.s32.totalorder %v589, 0
      %vm664 = vcmp.ne.s32.totalorder %v596, 0
      %vm665 = vcmp.ne.s32.totalorder %v603, 0
      %vm666 = vcmp.ne.s32.totalorder %v610, 0
      %vm667 = vcmp.ne.s32.totalorder %v617, 0
      %vm668 = vcmp.ne.s32.totalorder %v624, 0
      %vm669 = vcmp.ne.s32.totalorder %v631, 0
      %vm670 = vcmp.ne.s32.totalorder %v638, 0
      %vm671 = vcmp.lt.s32.totalorder %v421, 0
      %vm672 = vcmp.lt.s32.totalorder %v428, 0
      %vm673 = vcmp.lt.s32.totalorder %v435, 0
      %vm674 = vcmp.lt.s32.totalorder %v442, 0
      %vm675 = vcmp.lt.s32.totalorder %v449, 0
      %vm676 = vcmp.lt.s32.totalorder %v456, 0
      %vm677 = vcmp.lt.s32.totalorder %v463, 0
      %vm678 = vcmp.lt.s32.totalorder %v470, 0
      %vm679 = vcmp.lt.s32.totalorder %v477, 0
      %vm680 = vcmp.lt.s32.totalorder %v484, 0
      %vm681 = vcmp.lt.s32.totalorder %v491, 0
      %vm682 = vcmp.lt.s32.totalorder %v498, 0
      %vm683 = vcmp.lt.s32.totalorder %v505, 0
      %vm684 = vcmp.lt.s32.totalorder %v512, 0
      %vm685 = vcmp.lt.s32.totalorder %v519, 0
      %vm686 = vcmp.lt.s32.totalorder %v526, 0
      %vm687 = vcmp.lt.s32.totalorder %v533, 0
      %vm688 = vcmp.lt.s32.totalorder %v540, 0
      %vm689 = vcmp.lt.s32.totalorder %v547, 0
      %vm690 = vcmp.lt.s32.totalorder %v554, 0
      %vm691 = vcmp.lt.s32.totalorder %v561, 0
      %vm692 = vcmp.lt.s32.totalorder %v568, 0
      %vm693 = vcmp.lt.s32.totalorder %v575, 0
      %vm694 = vcmp.lt.s32.totalorder %v582, 0
      %vm695 = vcmp.lt.s32.totalorder %v589, 0
      %vm696 = vcmp.lt.s32.totalorder %v596, 0
      %vm697 = vcmp.lt.s32.totalorder %v603, 0
      %vm698 = vcmp.lt.s32.totalorder %v610, 0
      %vm699 = vcmp.lt.s32.totalorder %v617, 0
      %vm700 = vcmp.lt.s32.totalorder %v624, 0
      %vm701 = vcmp.lt.s32.totalorder %v631, 0
      %vm702 = vcmp.lt.s32.totalorder %v638, 0
      %vm703 = vmand %vm671, %vm639
      %vm704 = vmand %vm672, %vm640
      %vm705 = vmand %vm673, %vm641
      %vm706 = vmand %vm674, %vm642
      %vm707 = vmand %vm675, %vm643
      %vm708 = vmand %vm676, %vm644
      %vm709 = vmand %vm677, %vm645
      %vm710 = vmand %vm678, %vm646
      %vm711 = vmand %vm679, %vm647
      %vm712 = vmand %vm680, %vm648
      %vm713 = vmand %vm681, %vm649
      %vm714 = vmand %vm682, %vm650
      %vm715 = vmand %vm683, %vm651
      %vm716 = vmand %vm684, %vm652
      %vm717 = vmand %vm685, %vm653
      %vm718 = vmand %vm686, %vm654
      %vm719 = vmand %vm687, %vm655
      %vm720 = vmand %vm688, %vm656
      %vm721 = vmand %vm689, %vm657
      %vm722 = vmand %vm690, %vm658
      %vm723 = vmand %vm691, %vm659
      %vm724 = vmand %vm692, %vm660
      %vm725 = vmand %vm693, %vm661
      %vm726 = vmand %vm694, %vm662
      %vm727 = vmand %vm695, %vm663
      %vm728 = vmand %vm696, %vm664
      %vm729 = vmand %vm697, %vm665
      %vm730 = vmand %vm698, %vm666
      %vm731 = vmand %vm699, %vm667
      %vm732 = vmand %vm700, %vm668
      %vm733 = vmand %vm701, %vm669
      %vm734 = vmand %vm702, %vm670
      %v735 = vadd.s32 %v421, 16
      %v736 = vadd.s32 %v428, 16
      %v737 = vadd.s32 %v435, 16
      %v738 = vadd.s32 %v442, 16
      %v739 = vadd.s32 %v449, 16
      %v740 = vadd.s32 %v456, 16
      %v741 = vadd.s32 %v463, 16
      %v742 = vadd.s32 %v470, 16
      %v743 = vadd.s32 %v477, 16
      %v744 = vadd.s32 %v484, 16
      %v745 = vadd.s32 %v491, 16
      %v746 = vadd.s32 %v498, 16
      %v747 = vadd.s32 %v505, 16
      %v748 = vadd.s32 %v512, 16
      %v749 = vadd.s32 %v519, 16
      %v750 = vadd.s32 %v526, 16
      %v751 = vadd.s32 %v533, 16
      %v752 = vadd.s32 %v540, 16
      %v753 = vadd.s32 %v547, 16
      %v754 = vadd.s32 %v554, 16
      %v755 = vadd.s32 %v561, 16
      %v756 = vadd.s32 %v568, 16
      %v757 = vadd.s32 %v575, 16
      %v758 = vadd.s32 %v582, 16
      %v759 = vadd.s32 %v589, 16
      %v760 = vadd.s32 %v596, 16
      %v761 = vadd.s32 %v603, 16
      %v762 = vadd.s32 %v610, 16
      %v763 = vadd.s32 %v617, 16
      %v764 = vadd.s32 %v624, 16
      %v765 = vadd.s32 %v631, 16
      %v766 = vadd.s32 %v638, 16
      %v767 = vsel %vm703, %v735, %v421
      %v768 = vsel %vm704, %v736, %v428
      %v769 = vsel %vm705, %v737, %v435
      %v770 = vsel %vm706, %v738, %v442
      %v771 = vsel %vm707, %v739, %v449
      %v772 = vsel %vm708, %v740, %v456
      %v773 = vsel %vm709, %v741, %v463
      %v774 = vsel %vm710, %v742, %v470
      %v775 = vsel %vm711, %v743, %v477
      %v776 = vsel %vm712, %v744, %v484
      %v777 = vsel %vm713, %v745, %v491
      %v778 = vsel %vm714, %v746, %v498
      %v779 = vsel %vm715, %v747, %v505
      %v780 = vsel %vm716, %v748, %v512
      %v781 = vsel %vm717, %v749, %v519
      %v782 = vsel %vm718, %v750, %v526
      %v783 = vsel %vm719, %v751, %v533
      %v784 = vsel %vm720, %v752, %v540
      %v785 = vsel %vm721, %v753, %v547
      %v786 = vsel %vm722, %v754, %v554
      %v787 = vsel %vm723, %v755, %v561
      %v788 = vsel %vm724, %v756, %v568
      %v789 = vsel %vm725, %v757, %v575
      %v790 = vsel %vm726, %v758, %v582
      %v791 = vsel %vm727, %v759, %v589
      %v792 = vsel %vm728, %v760, %v596
      %v793 = vsel %vm729, %v761, %v603
      %v794 = vsel %vm730, %v762, %v610
      %v795 = vsel %vm731, %v763, %v617
      %v796 = vsel %vm732, %v764, %v624
      %v797 = vsel %vm733, %v765, %v631
      %v798 = vsel %vm734, %v766, %v638
      %vm799 = vcmp.gt.s32.totalorder %v767, 0
      %vm800 = vcmp.gt.s32.totalorder %v768, 0
      %vm801 = vcmp.gt.s32.totalorder %v769, 0
      %vm802 = vcmp.gt.s32.totalorder %v770, 0
      %vm803 = vcmp.gt.s32.totalorder %v771, 0
      %vm804 = vcmp.gt.s32.totalorder %v772, 0
      %vm805 = vcmp.gt.s32.totalorder %v773, 0
      %vm806 = vcmp.gt.s32.totalorder %v774, 0
      %vm807 = vcmp.gt.s32.totalorder %v775, 0
      %vm808 = vcmp.gt.s32.totalorder %v776, 0
      %vm809 = vcmp.gt.s32.totalorder %v777, 0
      %vm810 = vcmp.gt.s32.totalorder %v778, 0
      %vm811 = vcmp.gt.s32.totalorder %v779, 0
      %vm812 = vcmp.gt.s32.totalorder %v780, 0
      %vm813 = vcmp.gt.s32.totalorder %v781, 0
      %vm814 = vcmp.gt.s32.totalorder %v782, 0
      %vm815 = vcmp.gt.s32.totalorder %v783, 0
      %vm816 = vcmp.gt.s32.totalorder %v784, 0
      %vm817 = vcmp.gt.s32.totalorder %v785, 0
      %vm818 = vcmp.gt.s32.totalorder %v786, 0
      %vm819 = vcmp.gt.s32.totalorder %v787, 0
      %vm820 = vcmp.gt.s32.totalorder %v788, 0
      %vm821 = vcmp.gt.s32.totalorder %v789, 0
      %vm822 = vcmp.gt.s32.totalorder %v790, 0
      %vm823 = vcmp.gt.s32.totalorder %v791, 0
      %vm824 = vcmp.gt.s32.totalorder %v792, 0
      %vm825 = vcmp.gt.s32.totalorder %v793, 0
      %vm826 = vcmp.gt.s32.totalorder %v794, 0
      %vm827 = vcmp.gt.s32.totalorder %v795, 0
      %vm828 = vcmp.gt.s32.totalorder %v796, 0
      %vm829 = vcmp.gt.s32.totalorder %v797, 0
      %vm830 = vcmp.gt.s32.totalorder %v798, 0
      %vm831 = vcmp.lt.s32.totalorder %v767, 15
      %vm832 = vcmp.lt.s32.totalorder %v768, 15
      %vm833 = vcmp.lt.s32.totalorder %v769, 15
      %vm834 = vcmp.lt.s32.totalorder %v770, 15
      %vm835 = vcmp.lt.s32.totalorder %v771, 15
      %vm836 = vcmp.lt.s32.totalorder %v772, 15
      %vm837 = vcmp.lt.s32.totalorder %v773, 15
      %vm838 = vcmp.lt.s32.totalorder %v774, 15
      %vm839 = vcmp.lt.s32.totalorder %v775, 15
      %vm840 = vcmp.lt.s32.totalorder %v776, 15
      %vm841 = vcmp.lt.s32.totalorder %v777, 15
      %vm842 = vcmp.lt.s32.totalorder %v778, 15
      %vm843 = vcmp.lt.s32.totalorder %v779, 15
      %vm844 = vcmp.lt.s32.totalorder %v780, 15
      %vm845 = vcmp.lt.s32.totalorder %v781, 15
      %vm846 = vcmp.lt.s32.totalorder %v782, 15
      %vm847 = vcmp.lt.s32.totalorder %v783, 15
      %vm848 = vcmp.lt.s32.totalorder %v784, 15
      %vm849 = vcmp.lt.s32.totalorder %v785, 15
      %vm850 = vcmp.lt.s32.totalorder %v786, 15
      %vm851 = vcmp.lt.s32.totalorder %v787, 15
      %vm852 = vcmp.lt.s32.totalorder %v788, 15
      %vm853 = vcmp.lt.s32.totalorder %v789, 15
      %vm854 = vcmp.lt.s32.totalorder %v790, 15
      %vm855 = vcmp.lt.s32.totalorder %v791, 15
      %vm856 = vcmp.lt.s32.totalorder %v792, 15
      %vm857 = vcmp.lt.s32.totalorder %v793, 15
      %vm858 = vcmp.lt.s32.totalorder %v794, 15
      %vm859 = vcmp.lt.s32.totalorder %v795, 15
      %vm860 = vcmp.lt.s32.totalorder %v796, 15
      %vm861 = vcmp.lt.s32.totalorder %v797, 15
      %vm862 = vcmp.lt.s32.totalorder %v798, 15
      %vm893 = vcmask 1040384
      %v894 = vrot.slane %v350, 7
      %v895 = vrot.slane %v351, 7
      %v896 = vsel %vm893, %v894, %v895
      %v897 = vrot.slane %v352, 7
      %v898 = vsel %vm893, %v895, %v897
      %v899 = vrot.slane %v353, 7
      %v900 = vsel %vm893, %v897, %v899
      %v901 = vrot.slane %v354, 7
      %v902 = vsel %vm893, %v899, %v901
      %v903 = vrot.slane %v355, 7
      %v904 = vsel %vm893, %v901, %v903
      %v905 = vrot.slane %v356, 7
      %v906 = vsel %vm893, %v903, %v905
      %v907 = vrot.slane %v357, 7
      %v908 = vsel %vm893, %v905, %v907
      %v909 = vrot.slane %v358, 7
      %v910 = vsel %vm893, %v907, %v909
      %v911 = vrot.slane %v359, 7
      %v912 = vsel %vm893, %v909, %v911
      %v913 = vrot.slane %v360, 7
      %v914 = vsel %vm893, %v911, %v913
      %v915 = vrot.slane %v361, 7
      %v916 = vsel %vm893, %v913, %v915
      %v917 = vrot.slane %v362, 7
      %v918 = vsel %vm893, %v915, %v917
      %v919 = vrot.slane %v363, 7
      %v920 = vsel %vm893, %v917, %v919
      %v921 = vrot.slane %v364, 7
      %v922 = vsel %vm893, %v919, %v921
      %v923 = vrot.slane %v365, 7
      %v924 = vsel %vm893, %v921, %v923
      %v925 = vrot.slane %v366, 7
      %v926 = vsel %vm893, %v923, %v925
      %v927 = vrot.slane %v367, 7
      %v928 = vsel %vm893, %v925, %v927
      %v929 = vrot.slane %v368, 7
      %v930 = vsel %vm893, %v927, %v929
      %v931 = vrot.slane %v369, 7
      %v932 = vsel %vm893, %v929, %v931
      %v933 = vrot.slane %v370, 7
      %v934 = vsel %vm893, %v931, %v933
      %v935 = vrot.slane %v371, 7
      %v936 = vsel %vm893, %v933, %v935
      %v937 = vrot.slane %v372, 7
      %v938 = vsel %vm893, %v935, %v937
      %v939 = vrot.slane %v373, 7
      %v940 = vsel %vm893, %v937, %v939
      %v941 = vrot.slane %v374, 7
      %v942 = vsel %vm893, %v939, %v941
      %v943 = vrot.slane %v375, 7
      %v944 = vsel %vm893, %v941, %v943
      %v945 = vrot.slane %v376, 7
      %v946 = vsel %vm893, %v943, %v945
      %v947 = vrot.slane %v377, 7
      %v948 = vsel %vm893, %v945, %v947
      %v949 = vrot.slane %v378, 7
      %v950 = vsel %vm893, %v947, %v949
      %v951 = vrot.slane %v379, 7
      %v952 = vsel %vm893, %v949, %v951
      %v983 = vsel %vm893, 0.0, %v894
      %v984 = vsel %vm799, 1, 0
      %v985 = vsel %vm800, 1, 0
      %v986 = vsel %vm801, 1, 0
      %v987 = vsel %vm802, 1, 0
      %v988 = vsel %vm803, 1, 0
      %v989 = vsel %vm804, 1, 0
      %v990 = vsel %vm805, 1, 0
      %v991 = vsel %vm806, 1, 0
      %v992 = vsel %vm807, 1, 0
      %v993 = vsel %vm808, 1, 0
      %v994 = vsel %vm809, 1, 0
      %v995 = vsel %vm810, 1, 0
      %v996 = vsel %vm811, 1, 0
      %v997 = vsel %vm812, 1, 0
      %v998 = vsel %vm813, 1, 0
      %v999 = vsel %vm814, 1, 0
      %v1000 = vsel %vm815, 1, 0
      %v1001 = vsel %vm816, 1, 0
      %v1002 = vsel %vm817, 1, 0
      %v1003 = vsel %vm818, 1, 0
      %v1004 = vsel %vm819, 1, 0
      %v1005 = vsel %vm820, 1, 0
      %v1006 = vsel %vm821, 1, 0
      %v1007 = vsel %vm822, 1, 0
      %v1008 = vsel %vm823, 1, 0
      %v1009 = vsel %vm824, 1, 0
      %v1010 = vsel %vm825, 1, 0
      %v1011 = vsel %vm826, 1, 0
      %v1012 = vsel %vm827, 1, 0
      %v1013 = vsel %vm828, 1, 0
      %v1014 = vsel %vm829, 1, 0
      %v1015 = vsel %vm830, 1, 0
      %vm1016 = vcmp.eq.s32.totalorder %v984, 1
      %vm1017 = vcmp.eq.s32.totalorder %v985, 1
      %vm1018 = vcmp.eq.s32.totalorder %v986, 1
      %vm1019 = vcmp.eq.s32.totalorder %v987, 1
      %vm1020 = vcmp.eq.s32.totalorder %v988, 1
      %vm1021 = vcmp.eq.s32.totalorder %v989, 1
      %vm1022 = vcmp.eq.s32.totalorder %v990, 1
      %vm1023 = vcmp.eq.s32.totalorder %v991, 1
      %vm1024 = vcmp.eq.s32.totalorder %v992, 1
      %vm1025 = vcmp.eq.s32.totalorder %v993, 1
      %vm1026 = vcmp.eq.s32.totalorder %v994, 1
      %vm1027 = vcmp.eq.s32.totalorder %v995, 1
      %vm1028 = vcmp.eq.s32.totalorder %v996, 1
      %vm1029 = vcmp.eq.s32.totalorder %v997, 1
      %vm1030 = vcmp.eq.s32.totalorder %v998, 1
      %vm1031 = vcmp.eq.s32.totalorder %v999, 1
      %vm1032 = vcmp.eq.s32.totalorder %v1000, 1
      %vm1033 = vcmp.eq.s32.totalorder %v1001, 1
      %vm1034 = vcmp.eq.s32.totalorder %v1002, 1
      %vm1035 = vcmp.eq.s32.totalorder %v1003, 1
      %vm1036 = vcmp.eq.s32.totalorder %v1004, 1
      %vm1037 = vcmp.eq.s32.totalorder %v1005, 1
      %vm1038 = vcmp.eq.s32.totalorder %v1006, 1
      %vm1039 = vcmp.eq.s32.totalorder %v1007, 1
      %vm1040 = vcmp.eq.s32.totalorder %v1008, 1
      %vm1041 = vcmp.eq.s32.totalorder %v1009, 1
      %vm1042 = vcmp.eq.s32.totalorder %v1010, 1
      %vm1043 = vcmp.eq.s32.totalorder %v1011, 1
      %vm1044 = vcmp.eq.s32.totalorder %v1012, 1
      %vm1045 = vcmp.eq.s32.totalorder %v1013, 1
      %vm1046 = vcmp.eq.s32.totalorder %v1014, 1
      %vm1047 = vcmp.eq.s32.totalorder %v1015, 1
      %v1048 = vsel %vm1018, %v983, 0.0
      %v1049 = vsel %vm1019, %v896, 0.0
      %v1050 = vsel %vm1020, %v898, 0.0
      %v1051 = vsel %vm1021, %v900, 0.0
      %v1052 = vsel %vm1022, %v902, 0.0
      %v1053 = vsel %vm1023, %v904, 0.0
      %v1054 = vsel %vm1024, %v906, 0.0
      %v1055 = vsel %vm1025, %v908, 0.0
      %v1056 = vsel %vm1026, %v910, 0.0
      %v1057 = vsel %vm1027, %v912, 0.0
      %v1058 = vsel %vm1028, %v914, 0.0
      %v1059 = vsel %vm1029, %v916, 0.0
      %v1060 = vsel %vm1030, %v918, 0.0
      %v1061 = vsel %vm1031, %v920, 0.0
      %v1062 = vsel %vm1032, %v922, 0.0
      %v1063 = vsel %vm1033, %v924, 0.0
      %v1064 = vsel %vm1034, %v926, 0.0
      %v1065 = vsel %vm1035, %v928, 0.0
      %v1066 = vsel %vm1036, %v930, 0.0
      %v1067 = vsel %vm1037, %v932, 0.0
      %v1068 = vsel %vm1038, %v934, 0.0
      %v1069 = vsel %vm1039, %v936, 0.0
      %v1070 = vsel %vm1040, %v938, 0.0
      %v1071 = vsel %vm1041, %v940, 0.0
      %v1072 = vsel %vm1042, %v942, 0.0
      %v1073 = vsel %vm1043, %v944, 0.0
      %v1074 = vsel %vm1044, %v946, 0.0
      %v1075 = vsel %vm1045, %v948, 0.0
      %v1076 = vsel %vm1046, %v950, 0.0
      %v1077 = vsel %vm1047, %v952, 0.0
      %v1078 = vpack.c.bf16 0.0, 0.0
      %v1079 = vpack.c.bf16 %v1049, %v1048
      %v1080 = vpack.c.bf16 %v1051, %v1050
      %v1081 = vpack.c.bf16 %v1053, %v1052
      %v1082 = vpack.c.bf16 %v1055, %v1054
      %v1083 = vpack.c.bf16 %v1057, %v1056
      %v1084 = vpack.c.bf16 %v1059, %v1058
      %v1085 = vpack.c.bf16 %v1061, %v1060
      %v1086 = vpack.c.bf16 %v1063, %v1062
      %v1087 = vpack.c.bf16 %v1065, %v1064
      %v1088 = vpack.c.bf16 %v1067, %v1066
      %v1089 = vpack.c.bf16 %v1069, %v1068
      %v1090 = vpack.c.bf16 %v1071, %v1070
      %v1091 = vpack.c.bf16 %v1073, %v1072
      %v1092 = vpack.c.bf16 %v1075, %v1074
      %v1093 = vpack.c.bf16 %v1077, %v1076
      %v1094 = vld [vmem:[%s3] sm:$0xf]
      %v1095 = vld [vmem:[%s3 + $0x4] sm:$0xf]
      %v1096 = vld [vmem:[%s3 + $0x8] sm:$0xf]
      %v1097 = vld [vmem:[%s3 + $0xc] sm:$0xf]
      %v1098 = vld [vmem:[%s3 + $0x10] sm:$0xf]
      %v1099 = vld [vmem:[%s3 + $0x14] sm:$0xf]
      %v1100 = vld [vmem:[%s3 + $0x18] sm:$0xf]
      %v1101 = vld [vmem:[%s3 + $0x1c] sm:$0xf]
      %v1102 = vld [vmem:[%s3 + $0x20] sm:$0xf]
      %v1103 = vld [vmem:[%s3 + $0x24] sm:$0xf]
      %v1104 = vld [vmem:[%s3 + $0x28] sm:$0xf]
      %v1105 = vld [vmem:[%s3 + $0x2c] sm:$0xf]
      %v1106 = vld [vmem:[%s3 + $0x30] sm:$0xf]
      %v1107 = vld [vmem:[%s3 + $0x34] sm:$0xf]
      %v1108 = vld [vmem:[%s3 + $0x38] sm:$0xf]
      %v1109 = vld [vmem:[%s3 + $0x3c] sm:$0xf]
      %v1110 = vpack.c.bf16 %v351, %v350
      %v1111 = vpack.c.bf16 %v353, %v352
      %v1112 = vpack.c.bf16 %v355, %v354
      %v1113 = vpack.c.bf16 %v357, %v356
      %v1114 = vpack.c.bf16 %v359, %v358
      %v1115 = vpack.c.bf16 %v361, %v360
      %v1116 = vpack.c.bf16 %v363, %v362
      %v1117 = vpack.c.bf16 %v365, %v364
      %v1118 = vpack.c.bf16 %v367, %v366
      %v1119 = vpack.c.bf16 %v369, %v368
      %v1120 = vpack.c.bf16 %v371, %v370
      %v1121 = vpack.c.bf16 %v373, %v372
      %v1122 = vpack.c.bf16 %v375, %v374
      %v1123 = vpack.c.bf16 %v377, %v376
      %v1124 = vpack.c.bf16 %v379, %v378
      %s1125 = scalar_lea.vmem %s3, 64
      %v1126 = vld [vmem:[%s1125] sm:$0xf]
      %v1127 = vld [vmem:[%s1125 + $0x4] sm:$0xf]
      %v1128 = vld [vmem:[%s1125 + $0x8] sm:$0xf]
      %v1129 = vld [vmem:[%s1125 + $0xc] sm:$0xf]
      %v1130 = vld [vmem:[%s1125 + $0x10] sm:$0xf]
      %v1131 = vld [vmem:[%s1125 + $0x14] sm:$0xf]
      %v1132 = vld [vmem:[%s1125 + $0x18] sm:$0xf]
      %v1133 = vld [vmem:[%s1125 + $0x1c] sm:$0xf]
      %v1134 = vld [vmem:[%s1125 + $0x20] sm:$0xf]
      %v1135 = vld [vmem:[%s1125 + $0x24] sm:$0xf]
      %v1136 = vld [vmem:[%s1125 + $0x28] sm:$0xf]
      %v1137 = vld [vmem:[%s1125 + $0x2c] sm:$0xf]
      %v1138 = vld [vmem:[%s1125 + $0x30] sm:$0xf]
      %v1139 = vld [vmem:[%s1125 + $0x34] sm:$0xf]
      %v1140 = vld [vmem:[%s1125 + $0x38] sm:$0xf]
      %v1141 = vld [vmem:[%s1125 + $0x3c] sm:$0xf]
      %v1158 = vunpack.c.l.b16 %v1126
      %v1159 = vunpack.c.l.b16 %v1127
      %v1160 = vunpack.c.l.b16 %v1128
      %v1161 = vunpack.c.l.b16 %v1129
      %v1162 = vunpack.c.l.b16 %v1130
      %v1163 = vunpack.c.l.b16 %v1131
      %v1164 = vunpack.c.l.b16 %v1132
      %v1165 = vunpack.c.l.b16 %v1133
      %v1166 = vunpack.c.l.b16 %v1134
      %v1167 = vunpack.c.l.b16 %v1135
      %v1168 = vunpack.c.l.b16 %v1136
      %v1169 = vunpack.c.l.b16 %v1137
      %v1170 = vunpack.c.l.b16 %v1138
      %v1171 = vunpack.c.l.b16 %v1139
      %v1172 = vunpack.c.l.b16 %v1140
      %v1173 = vunpack.c.l.b16 %v1141
      %v1174 = vpack.c.b16 %v1159, %v1158
      %v1175 = vpack.c.b16 %v1161, %v1160
      %v1176 = vpack.c.b16 %v1163, %v1162
      %v1177 = vpack.c.b16 %v1165, %v1164
      %v1178 = vpack.c.b16 %v1167, %v1166
      %v1179 = vpack.c.b16 %v1169, %v1168
      %v1180 = vpack.c.b16 %v1171, %v1170
      %v1181 = vpack.c.b16 %v1173, %v1172
      %1190 = vmatprep.subr.bf16.mxu0 0
      %1191 = vmatpush1.bf16.msra.mxu0 %v1174
      %1192 = vmatprep.subr.bf16.mxu0 0
      %1193 = vmatpush1.bf16.msra.mxu0 %v1175
      %1194 = vmatprep.subr.bf16.mxu0 0
      %1195 = vmatpush1.bf16.msra.mxu0 %v1176
      %1196 = vmatprep.subr.bf16.mxu0 0
      %1197 = vmatpush1.bf16.msra.mxu0 %v1177
      %1198 = vmatprep.subr.bf16.mxu0 0
      %1199 = vmatpush1.bf16.msra.mxu0 %v1178
      %1200 = vmatprep.subr.bf16.mxu0 0
      %1201 = vmatpush1.bf16.msra.mxu0 %v1179
      %1202 = vmatprep.subr.bf16.mxu0 0
      %1203 = vmatpush1.bf16.msra.mxu0 %v1180
      %1204 = vmatprep.subr.bf16.mxu0 0
      %1205 = vmatpush1.bf16.msra.mxu0 %v1181
      %1206 = vmatprep.subr.bf16.mxu0 0
      %1207 = vmatpush1.bf16.msra.mxu0 0
      %1208 = vmatprep.subr.bf16.mxu0 0
      %1209 = vmatpush1.bf16.msra.mxu0 0
      %1210 = vmatprep.subr.bf16.mxu0 0
      %1211 = vmatpush1.bf16.msra.mxu0 0
      %1212 = vmatprep.subr.bf16.mxu0 0
      %1213 = vmatpush1.bf16.msra.mxu0 0
      %1214 = vmatprep.subr.bf16.mxu0 0
      %1215 = vmatpush1.bf16.msra.mxu0 0
      %1216 = vmatprep.subr.bf16.mxu0 0
      %1217 = vmatpush1.bf16.msra.mxu0 0
      %1218 = vmatprep.subr.bf16.mxu0 0
      %1219 = vmatpush1.bf16.msra.mxu0 0
      %1220 = vmatprep.subr.bf16.mxu0 0
      %1221 = vmatpush1.bf16.msra.mxu0 0
      %1222 = vmatprep.mubr.bf16.mxu0 0
      %1223 = vmatmul.mubr.bf16.gmra.mrb[0].mxu0 %v1078
      %v1224 = vpop.f32.mrb[0].mxu0
      %v1225 = vadd.f32 0.0, %v1224
      %v1226 = vpop.f32.mrb[0].mxu0
      %v1227 = vpop.f32.mrb[0].mxu0
      %v1228 = vadd.f32 0.0, %v1227
      %v1229 = vpop.f32.mrb[0].mxu0
      %1230 = vmatprep.mubr.bf16.mxu0 0
      %1231 = vmatmul.mubr.bf16.gmra.mrb[0].mxu0 %v1110
      %v1232 = vpop.f32.mrb[0].mxu0
      %v1233 = vadd.f32 0.0, %v1232
      %v1234 = vpop.f32.mrb[0].mxu0
      %v1235 = vpop.f32.mrb[0].mxu0
      %v1236 = vadd.f32 0.0, %v1235
      %v1237 = vpop.f32.mrb[0].mxu0
      %1238 = vmatprep.mubr.bf16.mxu0 0
      %1239 = vmatmul.mubr.bf16.gmra.mrb[0].mxu0 %v1111
      %v1240 = vpop.f32.mrb[0].mxu0
      %v1241 = vadd.f32 0.0, %v1240
      %v1242 = vpop.f32.mrb[0].mxu0
      %v1243 = vpop.f32.mrb[0].mxu0
      %v1244 = vadd.f32 0.0, %v1243
      %v1245 = vpop.f32.mrb[0].mxu0
      %1246 = vmatprep.mubr.bf16.mxu0 0
      %1247 = vmatmul.mubr.bf16.gmra.mrb[0].mxu0 %v1112
      %v1248 = vpop.f32.mrb[0].mxu0
      %v1249 = vadd.f32 0.0, %v1248
      %v1250 = vpop.f32.mrb[0].mxu0
      %v1251 = vpop.f32.mrb[0].mxu0
      %v1252 = vadd.f32 0.0, %v1251
      %v1253 = vpop.f32.mrb[0].mxu0
      %1254 = vmatprep.mubr.bf16.mxu0 0
      %1255 = vmatmul.mubr.bf16.gmra.mrb[0].mxu0 %v1113
      %v1256 = vpop.f32.mrb[0].mxu0
      %v1257 = vadd.f32 0.0, %v1256
      %v1258 = vpop.f32.mrb[0].mxu0
      %v1259 = vpop.f32.mrb[0].mxu0
      %v1260 = vadd.f32 0.0, %v1259
      %v1261 = vpop.f32.mrb[0].mxu0
      %1262 = vmatprep.mubr.bf16.mxu0 0
      %1263 = vmatmul.mubr.bf16.gmra.mrb[0].mxu0 %v1114
      %v1264 = vpop.f32.mrb[0].mxu0
      %v1265 = vadd.f32 0.0, %v1264
      %v1266 = vpop.f32.mrb[0].mxu0
      %v1267 = vpop.f32.mrb[0].mxu0
      %v1268 = vadd.f32 0.0, %v1267
      %v1269 = vpop.f32.mrb[0].mxu0
      %1270 = vmatprep.mubr.bf16.mxu0 0
      %1271 = vmatmul.mubr.bf16.gmra.mrb[0].mxu0 %v1115
      %v1272 = vpop.f32.mrb[0].mxu0
      %v1273 = vadd.f32 0.0, %v1272
      %v1274 = vpop.f32.mrb[0].mxu0
      %v1275 = vpop.f32.mrb[0].mxu0
      %v1276 = vadd.f32 0.0, %v1275
      %v1277 = vpop.f32.mrb[0].mxu0
      %1278 = vmatprep.mubr.bf16.mxu0 0
      %1279 = vmatmul.mubr.bf16.gmra.mrb[0].mxu0 %v1116
      %v1280 = vpop.f32.mrb[0].mxu0
      %v1281 = vadd.f32 0.0, %v1280
      %v1282 = vpop.f32.mrb[0].mxu0
      %v1283 = vpop.f32.mrb[0].mxu0
      %v1284 = vadd.f32 0.0, %v1283
      %v1285 = vpop.f32.mrb[0].mxu0
      %1286 = vmatprep.mubr.bf16.mxu0 0
      %1287 = vmatmul.mubr.bf16.gmra.mrb[0].mxu0 %v1117
      %v1288 = vpop.f32.mrb[0].mxu0
      %v1289 = vadd.f32 0.0, %v1288
      %v1290 = vpop.f32.mrb[0].mxu0
      %v1291 = vpop.f32.mrb[0].mxu0
      %v1292 = vadd.f32 0.0, %v1291
      %v1293 = vpop.f32.mrb[0].mxu0
      %1294 = vmatprep.mubr.bf16.mxu0 0
      %1295 = vmatmul.mubr.bf16.gmra.mrb[0].mxu0 %v1118
      %v1296 = vpop.f32.mrb[0].mxu0
      %v1297 = vadd.f32 0.0, %v1296
      %v1298 = vpop.f32.mrb[0].mxu0
      %v1299 = vpop.f32.mrb[0].mxu0
      %v1300 = vadd.f32 0.0, %v1299
      %v1301 = vpop.f32.mrb[0].mxu0
      %1302 = vmatprep.mubr.bf16.mxu0 0
      %1303 = vmatmul.mubr.bf16.gmra.mrb[0].mxu0 %v1119
      %v1304 = vpop.f32.mrb[0].mxu0
      %v1305 = vadd.f32 0.0, %v1304
      %v1306 = vpop.f32.mrb[0].mxu0
      %v1307 = vpop.f32.mrb[0].mxu0
      %v1308 = vadd.f32 0.0, %v1307
      %v1309 = vpop.f32.mrb[0].mxu0
      %1310 = vmatprep.mubr.bf16.mxu0 0
      %1311 = vmatmul.mubr.bf16.gmra.mrb[0].mxu0 %v1120
      %v1312 = vpop.f32.mrb[0].mxu0
      %v1313 = vadd.f32 0.0, %v1312
      %v1314 = vpop.f32.mrb[0].mxu0
      %v1315 = vpop.f32.mrb[0].mxu0
      %v1316 = vadd.f32 0.0, %v1315
      %v1317 = vpop.f32.mrb[0].mxu0
      %1318 = vmatprep.mubr.bf16.mxu0 0
      %1319 = vmatmul.mubr.bf16.gmra.mrb[0].mxu0 %v1121
      %v1320 = vpop.f32.mrb[0].mxu0
      %v1321 = vadd.f32 0.0, %v1320
      %v1322 = vpop.f32.mrb[0].mxu0
      %v1323 = vpop.f32.mrb[0].mxu0
      %v1324 = vadd.f32 0.0, %v1323
      %v1325 = vpop.f32.mrb[0].mxu0
      %1326 = vmatprep.mubr.bf16.mxu0 0
      %1327 = vmatmul.mubr.bf16.gmra.mrb[0].mxu0 %v1122
      %v1328 = vpop.f32.mrb[0].mxu0
      %v1329 = vadd.f32 0.0, %v1328
      %v1330 = vpop.f32.mrb[0].mxu0
      %v1331 = vpop.f32.mrb[0].mxu0
      %v1332 = vadd.f32 0.0, %v1331
      %v1333 = vpop.f32.mrb[0].mxu0
      %1334 = vmatprep.mubr.bf16.mxu0 0
      %1335 = vmatmul.mubr.bf16.gmra.mrb[0].mxu0 %v1123
      %v1336 = vpop.f32.mrb[0].mxu0
      %v1337 = vadd.f32 0.0, %v1336
      %v1338 = vpop.f32.mrb[0].mxu0
      %v1339 = vpop.f32.mrb[0].mxu0
      %v1340 = vadd.f32 0.0, %v1339
      %v1341 = vpop.f32.mrb[0].mxu0
      %1342 = vmatprep.mubr.bf16.mxu0 0
      %1343 = vmatmul.mubr.bf16.gmra.mrb[0].mxu0 %v1124
      %v1344 = vpop.f32.mrb[0].mxu0
      %v1345 = vadd.f32 0.0, %v1344
      %v1346 = vpop.f32.mrb[0].mxu0
      %v1347 = vpop.f32.mrb[0].mxu0
      %v1348 = vadd.f32 0.0, %v1347
      %v1349 = vpop.f32.mrb[0].mxu0
      %1350 = vdwg.mxu0
      %v1367 = vunpack.c.l.b16 %v1094
      %v1368 = vunpack.c.l.b16 %v1095
      %v1369 = vunpack.c.l.b16 %v1096
      %v1370 = vunpack.c.l.b16 %v1097
      %v1371 = vunpack.c.l.b16 %v1098
      %v1372 = vunpack.c.l.b16 %v1099
      %v1373 = vunpack.c.l.b16 %v1100
      %v1374 = vunpack.c.l.b16 %v1101
      %v1375 = vunpack.c.l.b16 %v1102
      %v1376 = vunpack.c.l.b16 %v1103
      %v1377 = vunpack.c.l.b16 %v1104
      %v1378 = vunpack.c.l.b16 %v1105
      %v1379 = vunpack.c.l.b16 %v1106
      %v1380 = vunpack.c.l.b16 %v1107
      %v1381 = vunpack.c.l.b16 %v1108
      %v1382 = vunpack.c.l.b16 %v1109
      %v1383 = vpack.c.b16 %v1368, %v1367
      %v1384 = vpack.c.b16 %v1370, %v1369
      %v1385 = vpack.c.b16 %v1372, %v1371
      %v1386 = vpack.c.b16 %v1374, %v1373
      %v1387 = vpack.c.b16 %v1376, %v1375
      %v1388 = vpack.c.b16 %v1378, %v1377
      %v1389 = vpack.c.b16 %v1380, %v1379
      %v1390 = vpack.c.b16 %v1382, %v1381
      %1399 = vmatprep.subr.bf16.mxu0 0
      %1400 = vmatpush1.bf16.msra.mxu0 %v1383
      %1401 = vmatprep.subr.bf16.mxu0 0
      %1402 = vmatpush1.bf16.msra.mxu0 %v1384
      %1403 = vmatprep.subr.bf16.mxu0 0
      %1404 = vmatpush1.bf16.msra.mxu0 %v1385
      %1405 = vmatprep.subr.bf16.mxu0 0
      %1406 = vmatpush1.bf16.msra.mxu0 %v1386
      %1407 = vmatprep.subr.bf16.mxu0 0
      %1408 = vmatpush1.bf16.msra.mxu0 %v1387
      %1409 = vmatprep.subr.bf16.mxu0 0
      %1410 = vmatpush1.bf16.msra.mxu0 %v1388
      %1411 = vmatprep.subr.bf16.mxu0 0
      %1412 = vmatpush1.bf16.msra.mxu0 %v1389
      %1413 = vmatprep.subr.bf16.mxu0 0
      %1414 = vmatpush1.bf16.msra.mxu0 %v1390
      %1415 = vmatprep.subr.bf16.mxu0 0
      %1416 = vmatpush1.bf16.msra.mxu0 0
      %1417 = vmatprep.subr.bf16.mxu0 0
      %1418 = vmatpush1.bf16.msra.mxu0 0
      %1419 = vmatprep.subr.bf16.mxu0 0
      %1420 = vmatpush1.bf16.msra.mxu0 0
      %1421 = vmatprep.subr.bf16.mxu0 0
      %1422 = vmatpush1.bf16.msra.mxu0 0
      %1423 = vmatprep.subr.bf16.mxu0 0
      %1424 = vmatpush1.bf16.msra.mxu0 0
      %1425 = vmatprep.subr.bf16.mxu0 0
      %1426 = vmatpush1.bf16.msra.mxu0 0
      %1427 = vmatprep.subr.bf16.mxu0 0
      %1428 = vmatpush1.bf16.msra.mxu0 0
      %1429 = vmatprep.subr.bf16.mxu0 0
      %1430 = vmatpush1.bf16.msra.mxu0 0
      %1431 = vmatprep.mubr.bf16.mxu0 0
      %1432 = vmatmul.mubr.bf16.gmra.mrb[0].mxu0 %v1078
      %v1433 = vpop.f32.mrb[0].mxu0
      %v1434 = vadd.f32 %v1225, %v1433
      %v1435 = vpop.f32.mrb[0].mxu0
      %v1436 = vpop.f32.mrb[0].mxu0
      %v1437 = vadd.f32 %v1228, %v1436
      %v1438 = vpop.f32.mrb[0].mxu0
      %1439 = vmatprep.mubr.bf16.mxu0 0
      %1440 = vmatmul.mubr.bf16.gmra.mrb[0].mxu0 %v1079
      %v1441 = vpop.f32.mrb[0].mxu0
      %v1442 = vadd.f32 %v1233, %v1441
      %v1443 = vpop.f32.mrb[0].mxu0
      %v1444 = vpop.f32.mrb[0].mxu0
      %v1445 = vadd.f32 %v1236, %v1444
      %v1446 = vpop.f32.mrb[0].mxu0
      %1447 = vmatprep.mubr.bf16.mxu0 0
      %1448 = vmatmul.mubr.bf16.gmra.mrb[0].mxu0 %v1080
      %v1449 = vpop.f32.mrb[0].mxu0
      %v1450 = vadd.f32 %v1241, %v1449
      %v1451 = vpop.f32.mrb[0].mxu0
      %v1452 = vpop.f32.mrb[0].mxu0
      %v1453 = vadd.f32 %v1244, %v1452
      %v1454 = vpop.f32.mrb[0].mxu0
      %1455 = vmatprep.mubr.bf16.mxu0 0
      %1456 = vmatmul.mubr.bf16.gmra.mrb[0].mxu0 %v1081
      %v1457 = vpop.f32.mrb[0].mxu0
      %v1458 = vadd.f32 %v1249, %v1457
      %v1459 = vpop.f32.mrb[0].mxu0
      %v1460 = vpop.f32.mrb[0].mxu0
      %v1461 = vadd.f32 %v1252, %v1460
      %v1462 = vpop.f32.mrb[0].mxu0
      %1463 = vmatprep.mubr.bf16.mxu0 0
      %1464 = vmatmul.mubr.bf16.gmra.mrb[0].mxu0 %v1082
      %v1465 = vpop.f32.mrb[0].mxu0
      %v1466 = vadd.f32 %v1257, %v1465
      %v1467 = vpop.f32.mrb[0].mxu0
      %v1468 = vpop.f32.mrb[0].mxu0
      %v1469 = vadd.f32 %v1260, %v1468
      %v1470 = vpop.f32.mrb[0].mxu0
      %1471 = vmatprep.mubr.bf16.mxu0 0
      %1472 = vmatmul.mubr.bf16.gmra.mrb[0].mxu0 %v1083
      %v1473 = vpop.f32.mrb[0].mxu0
      %v1474 = vadd.f32 %v1265, %v1473
      %v1475 = vpop.f32.mrb[0].mxu0
      %v1476 = vpop.f32.mrb[0].mxu0
      %v1477 = vadd.f32 %v1268, %v1476
      %v1478 = vpop.f32.mrb[0].mxu0
      %1479 = vmatprep.mubr.bf16.mxu0 0
      %1480 = vmatmul.mubr.bf16.gmra.mrb[0].mxu0 %v1084
      %v1481 = vpop.f32.mrb[0].mxu0
      %v1482 = vadd.f32 %v1273, %v1481
      %v1483 = vpop.f32.mrb[0].mxu0
      %v1484 = vpop.f32.mrb[0].mxu0
      %v1485 = vadd.f32 %v1276, %v1484
      %v1486 = vpop.f32.mrb[0].mxu0
      %1487 = vmatprep.mubr.bf16.mxu0 0
      %1488 = vmatmul.mubr.bf16.gmra.mrb[0].mxu0 %v1085
      %v1489 = vpop.f32.mrb[0].mxu0
      %v1490 = vadd.f32 %v1281, %v1489
      %v1491 = vpop.f32.mrb[0].mxu0
      %v1492 = vpop.f32.mrb[0].mxu0
      %v1493 = vadd.f32 %v1284, %v1492
      %v1494 = vpop.f32.mrb[0].mxu0
      %1495 = vmatprep.mubr.bf16.mxu0 0
      %1496 = vmatmul.mubr.bf16.gmra.mrb[0].mxu0 %v1086
      %v1497 = vpop.f32.mrb[0].mxu0
      %v1498 = vadd.f32 %v1289, %v1497
      %v1499 = vpop.f32.mrb[0].mxu0
      %v1500 = vpop.f32.mrb[0].mxu0
      %v1501 = vadd.f32 %v1292, %v1500
      %v1502 = vpop.f32.mrb[0].mxu0
      %1503 = vmatprep.mubr.bf16.mxu0 0
      %1504 = vmatmul.mubr.bf16.gmra.mrb[0].mxu0 %v1087
      %v1505 = vpop.f32.mrb[0].mxu0
      %v1506 = vadd.f32 %v1297, %v1505
      %v1507 = vpop.f32.mrb[0].mxu0
      %v1508 = vpop.f32.mrb[0].mxu0
      %v1509 = vadd.f32 %v1300, %v1508
      %v1510 = vpop.f32.mrb[0].mxu0
      %1511 = vmatprep.mubr.bf16.mxu0 0
      %1512 = vmatmul.mubr.bf16.gmra.mrb[0].mxu0 %v1088
      %v1513 = vpop.f32.mrb[0].mxu0
      %v1514 = vadd.f32 %v1305, %v1513
      %v1515 = vpop.f32.mrb[0].mxu0
      %v1516 = vpop.f32.mrb[0].mxu0
      %v1517 = vadd.f32 %v1308, %v1516
      %v1518 = vpop.f32.mrb[0].mxu0
      %1519 = vmatprep.mubr.bf16.mxu0 0
      %1520 = vmatmul.mubr.bf16.gmra.mrb[0].mxu0 %v1089
      %v1521 = vpop.f32.mrb[0].mxu0
      %v1522 = vadd.f32 %v1313, %v1521
      %v1523 = vpop.f32.mrb[0].mxu0
      %v1524 = vpop.f32.mrb[0].mxu0
      %v1525 = vadd.f32 %v1316, %v1524
      %v1526 = vpop.f32.mrb[0].mxu0
      %1527 = vmatprep.mubr.bf16.mxu0 0
      %1528 = vmatmul.mubr.bf16.gmra.mrb[0].mxu0 %v1090
      %v1529 = vpop.f32.mrb[0].mxu0
      %v1530 = vadd.f32 %v1321, %v1529
      %v1531 = vpop.f32.mrb[0].mxu0
      %v1532 = vpop.f32.mrb[0].mxu0
      %v1533 = vadd.f32 %v1324, %v1532
      %v1534 = vpop.f32.mrb[0].mxu0
      %1535 = vmatprep.mubr.bf16.mxu0 0
      %1536 = vmatmul.mubr.bf16.gmra.mrb[0].mxu0 %v1091
      %v1537 = vpop.f32.mrb[0].mxu0
      %v1538 = vadd.f32 %v1329, %v1537
      %v1539 = vpop.f32.mrb[0].mxu0
      %v1540 = vpop.f32.mrb[0].mxu0
      %v1541 = vadd.f32 %v1332, %v1540
      %v1542 = vpop.f32.mrb[0].mxu0
      %1543 = vmatprep.mubr.bf16.mxu0 0
      %1544 = vmatmul.mubr.bf16.gmra.mrb[0].mxu0 %v1092
      %v1545 = vpop.f32.mrb[0].mxu0
      %v1546 = vadd.f32 %v1337, %v1545
      %v1547 = vpop.f32.mrb[0].mxu0
      %v1548 = vpop.f32.mrb[0].mxu0
      %v1549 = vadd.f32 %v1340, %v1548
      %v1550 = vpop.f32.mrb[0].mxu0
      %1551 = vmatprep.mubr.bf16.mxu0 0
      %1552 = vmatmul.mubr.bf16.gmra.mrb[0].mxu0 %v1093
      %v1553 = vpop.f32.mrb[0].mxu0
      %v1554 = vadd.f32 %v1345, %v1553
      %v1555 = vpop.f32.mrb[0].mxu0
      %v1556 = vpop.f32.mrb[0].mxu0
      %v1557 = vadd.f32 %v1348, %v1556
      %v1558 = vpop.f32.mrb[0].mxu0
      %1559 = vdwg.mxu0
      %vm1561 = vcmask 1046528
      %v1562 = vrot.slane %v350, 1
      %v1563 = vrot.slane %v351, 1
      %v1564 = vsel %vm1561, %v1562, %v1563
      %v1565 = vrot.slane %v352, 1
      %v1566 = vsel %vm1561, %v1563, %v1565
      %v1567 = vrot.slane %v353, 1
      %v1568 = vsel %vm1561, %v1565, %v1567
      %v1569 = vrot.slane %v354, 1
      %v1570 = vsel %vm1561, %v1567, %v1569
      %v1571 = vrot.slane %v355, 1
      %v1572 = vsel %vm1561, %v1569, %v1571
      %v1573 = vrot.slane %v356, 1
      %v1574 = vsel %vm1561, %v1571, %v1573
      %v1575 = vrot.slane %v357, 1
      %v1576 = vsel %vm1561, %v1573, %v1575
      %v1577 = vrot.slane %v358, 1
      %v1578 = vsel %vm1561, %v1575, %v1577
      %v1579 = vrot.slane %v359, 1
      %v1580 = vsel %vm1561, %v1577, %v1579
      %v1581 = vrot.slane %v360, 1
      %v1582 = vsel %vm1561, %v1579, %v1581
      %v1583 = vrot.slane %v361, 1
      %v1584 = vsel %vm1561, %v1581, %v1583
      %v1585 = vrot.slane %v362, 1
      %v1586 = vsel %vm1561, %v1583, %v1585
      %v1587 = vrot.slane %v363, 1
      %v1588 = vsel %vm1561, %v1585, %v1587
      %v1589 = vrot.slane %v364, 1
      %v1590 = vsel %vm1561, %v1587, %v1589
      %v1591 = vrot.slane %v365, 1
      %v1592 = vsel %vm1561, %v1589, %v1591
      %v1593 = vrot.slane %v366, 1
      %v1594 = vsel %vm1561, %v1591, %v1593
      %v1595 = vrot.slane %v367, 1
      %v1596 = vsel %vm1561, %v1593, %v1595
      %v1597 = vrot.slane %v368, 1
      %v1598 = vsel %vm1561, %v1595, %v1597
      %v1599 = vrot.slane %v369, 1
      %v1600 = vsel %vm1561, %v1597, %v1599
      %v1601 = vrot.slane %v370, 1
      %v1602 = vsel %vm1561, %v1599, %v1601
      %v1603 = vrot.slane %v371, 1
      %v1604 = vsel %vm1561, %v1601, %v1603
      %v1605 = vrot.slane %v372, 1
      %v1606 = vsel %vm1561, %v1603, %v1605
      %v1607 = vrot.slane %v373, 1
      %v1608 = vsel %vm1561, %v1605, %v1607
      %v1609 = vrot.slane %v374, 1
      %v1610 = vsel %vm1561, %v1607, %v1609
      %v1611 = vrot.slane %v375, 1
      %v1612 = vsel %vm1561, %v1609, %v1611
      %v1613 = vrot.slane %v376, 1
      %v1614 = vsel %vm1561, %v1611, %v1613
      %v1615 = vrot.slane %v377, 1
      %v1616 = vsel %vm1561, %v1613, %v1615
      %v1617 = vrot.slane %v378, 1
      %v1618 = vsel %vm1561, %v1615, %v1617
      %v1619 = vrot.slane %v379, 1
      %v1620 = vsel %vm1561, %v1617, %v1619
      %v1621 = vrot.slane %v380, 1
      %v1622 = vsel %vm1561, %v1619, %v1621
      %v1654 = vsel %vm1561, 0.0, %v1562
      %v1655 = vsel %vm831, 1, 0
      %v1656 = vsel %vm832, 1, 0
      %v1657 = vsel %vm833, 1, 0
      %v1658 = vsel %vm834, 1, 0
      %v1659 = vsel %vm835, 1, 0
      %v1660 = vsel %vm836, 1, 0
      %v1661 = vsel %vm837, 1, 0
      %v1662 = vsel %vm838, 1, 0
      %v1663 = vsel %vm839, 1, 0
      %v1664 = vsel %vm840, 1, 0
      %v1665 = vsel %vm841, 1, 0
      %v1666 = vsel %vm842, 1, 0
      %v1667 = vsel %vm843, 1, 0
      %v1668 = vsel %vm844, 1, 0
      %v1669 = vsel %vm845, 1, 0
      %v1670 = vsel %vm846, 1, 0
      %v1671 = vsel %vm847, 1, 0
      %v1672 = vsel %vm848, 1, 0
      %v1673 = vsel %vm849, 1, 0
      %v1674 = vsel %vm850, 1, 0
      %v1675 = vsel %vm851, 1, 0
      %v1676 = vsel %vm852, 1, 0
      %v1677 = vsel %vm853, 1, 0
      %v1678 = vsel %vm854, 1, 0
      %v1679 = vsel %vm855, 1, 0
      %v1680 = vsel %vm856, 1, 0
      %v1681 = vsel %vm857, 1, 0
      %v1682 = vsel %vm858, 1, 0
      %v1683 = vsel %vm859, 1, 0
      %v1684 = vsel %vm860, 1, 0
      %v1685 = vsel %vm861, 1, 0
      %v1686 = vsel %vm862, 1, 0
      %vm1687 = vcmp.eq.s32.totalorder %v1655, 1
      %vm1688 = vcmp.eq.s32.totalorder %v1656, 1
      %vm1689 = vcmp.eq.s32.totalorder %v1657, 1
      %vm1690 = vcmp.eq.s32.totalorder %v1658, 1
      %vm1691 = vcmp.eq.s32.totalorder %v1659, 1
      %vm1692 = vcmp.eq.s32.totalorder %v1660, 1
      %vm1693 = vcmp.eq.s32.totalorder %v1661, 1
      %vm1694 = vcmp.eq.s32.totalorder %v1662, 1
      %vm1695 = vcmp.eq.s32.totalorder %v1663, 1
      %vm1696 = vcmp.eq.s32.totalorder %v1664, 1
      %vm1697 = vcmp.eq.s32.totalorder %v1665, 1
      %vm1698 = vcmp.eq.s32.totalorder %v1666, 1
      %vm1699 = vcmp.eq.s32.totalorder %v1667, 1
      %vm1700 = vcmp.eq.s32.totalorder %v1668, 1
      %vm1701 = vcmp.eq.s32.totalorder %v1669, 1
      %vm1702 = vcmp.eq.s32.totalorder %v1670, 1
      %vm1703 = vcmp.eq.s32.totalorder %v1671, 1
      %vm1704 = vcmp.eq.s32.totalorder %v1672, 1
      %vm1705 = vcmp.eq.s32.totalorder %v1673, 1
      %vm1706 = vcmp.eq.s32.totalorder %v1674, 1
      %vm1707 = vcmp.eq.s32.totalorder %v1675, 1
      %vm1708 = vcmp.eq.s32.totalorder %v1676, 1
      %vm1709 = vcmp.eq.s32.totalorder %v1677, 1
      %vm1710 = vcmp.eq.s32.totalorder %v1678, 1
      %vm1711 = vcmp.eq.s32.totalorder %v1679, 1
      %vm1712 = vcmp.eq.s32.totalorder %v1680, 1
      %vm1713 = vcmp.eq.s32.totalorder %v1681, 1
      %vm1714 = vcmp.eq.s32.totalorder %v1682, 1
      %vm1715 = vcmp.eq.s32.totalorder %v1683, 1
      %vm1716 = vcmp.eq.s32.totalorder %v1684, 1
      %vm1717 = vcmp.eq.s32.totalorder %v1685, 1
      %vm1718 = vcmp.eq.s32.totalorder %v1686, 1
      %v1719 = vsel %vm1688, %v1654, 0.0
      %v1720 = vsel %vm1689, %v1564, 0.0
      %v1721 = vsel %vm1690, %v1566, 0.0
      %v1722 = vsel %vm1691, %v1568, 0.0
      %v1723 = vsel %vm1692, %v1570, 0.0
      %v1724 = vsel %vm1693, %v1572, 0.0
      %v1725 = vsel %vm1694, %v1574, 0.0
      %v1726 = vsel %vm1695, %v1576, 0.0
      %v1727 = vsel %vm1696, %v1578, 0.0
      %v1728 = vsel %vm1697, %v1580, 0.0
      %v1729 = vsel %vm1698, %v1582, 0.0
      %v1730 = vsel %vm1699, %v1584, 0.0
      %v1731 = vsel %vm1700, %v1586, 0.0
      %v1732 = vsel %vm1701, %v1588, 0.0
      %v1733 = vsel %vm1702, %v1590, 0.0
      %v1734 = vsel %vm1703, %v1592, 0.0
      %v1735 = vsel %vm1704, %v1594, 0.0
      %v1736 = vsel %vm1705, %v1596, 0.0
      %v1737 = vsel %vm1706, %v1598, 0.0
      %v1738 = vsel %vm1707, %v1600, 0.0
      %v1739 = vsel %vm1708, %v1602, 0.0
      %v1740 = vsel %vm1709, %v1604, 0.0
      %v1741 = vsel %vm1710, %v1606, 0.0
      %v1742 = vsel %vm1711, %v1608, 0.0
      %v1743 = vsel %vm1712, %v1610, 0.0
      %v1744 = vsel %vm1713, %v1612, 0.0
      %v1745 = vsel %vm1714, %v1614, 0.0
      %v1746 = vsel %vm1715, %v1616, 0.0
      %v1747 = vsel %vm1716, %v1618, 0.0
      %v1748 = vsel %vm1717, %v1620, 0.0
      %v1749 = vsel %vm1718, %v1622, 0.0
      %v1750 = vpack.c.bf16 %v1719, 0.0
      %v1751 = vpack.c.bf16 %v1721, %v1720
      %v1752 = vpack.c.bf16 %v1723, %v1722
      %v1753 = vpack.c.bf16 %v1725, %v1724
      %v1754 = vpack.c.bf16 %v1727, %v1726
      %v1755 = vpack.c.bf16 %v1729, %v1728
      %v1756 = vpack.c.bf16 %v1731, %v1730
      %v1757 = vpack.c.bf16 %v1733, %v1732
      %v1758 = vpack.c.bf16 %v1735, %v1734
      %v1759 = vpack.c.bf16 %v1737, %v1736
      %v1760 = vpack.c.bf16 %v1739, %v1738
      %v1761 = vpack.c.bf16 %v1741, %v1740
      %v1762 = vpack.c.bf16 %v1743, %v1742
      %v1763 = vpack.c.bf16 %v1745, %v1744
      %v1764 = vpack.c.bf16 %v1747, %v1746
      %v1765 = vpack.c.bf16 %v1749, %v1748
      %s1766 = scalar_lea.vmem %s3, 128
      %v1767 = vld [vmem:[%s1766] sm:$0xf]
      %v1768 = vld [vmem:[%s1766 + $0x4] sm:$0xf]
      %v1769 = vld [vmem:[%s1766 + $0x8] sm:$0xf]
      %v1770 = vld [vmem:[%s1766 + $0xc] sm:$0xf]
      %v1771 = vld [vmem:[%s1766 + $0x10] sm:$0xf]
      %v1772 = vld [vmem:[%s1766 + $0x14] sm:$0xf]
      %v1773 = vld [vmem:[%s1766 + $0x18] sm:$0xf]
      %v1774 = vld [vmem:[%s1766 + $0x1c] sm:$0xf]
      %v1775 = vld [vmem:[%s1766 + $0x20] sm:$0xf]
      %v1776 = vld [vmem:[%s1766 + $0x24] sm:$0xf]
      %v1777 = vld [vmem:[%s1766 + $0x28] sm:$0xf]
      %v1778 = vld [vmem:[%s1766 + $0x2c] sm:$0xf]
      %v1779 = vld [vmem:[%s1766 + $0x30] sm:$0xf]
      %v1780 = vld [vmem:[%s1766 + $0x34] sm:$0xf]
      %v1781 = vld [vmem:[%s1766 + $0x38] sm:$0xf]
      %v1782 = vld [vmem:[%s1766 + $0x3c] sm:$0xf]
      %v1799 = vunpack.c.l.b16 %v1767
      %v1800 = vunpack.c.l.b16 %v1768
      %v1801 = vunpack.c.l.b16 %v1769
      %v1802 = vunpack.c.l.b16 %v1770
      %v1803 = vunpack.c.l.b16 %v1771
      %v1804 = vunpack.c.l.b16 %v1772
      %v1805 = vunpack.c.l.b16 %v1773
      %v1806 = vunpack.c.l.b16 %v1774
      %v1807 = vunpack.c.l.b16 %v1775
      %v1808 = vunpack.c.l.b16 %v1776
      %v1809 = vunpack.c.l.b16 %v1777
      %v1810 = vunpack.c.l.b16 %v1778
      %v1811 = vunpack.c.l.b16 %v1779
      %v1812 = vunpack.c.l.b16 %v1780
      %v1813 = vunpack.c.l.b16 %v1781
      %v1814 = vunpack.c.l.b16 %v1782
      %v1815 = vpack.c.b16 %v1800, %v1799
      %v1816 = vpack.c.b16 %v1802, %v1801
      %v1817 = vpack.c.b16 %v1804, %v1803
      %v1818 = vpack.c.b16 %v1806, %v1805
      %v1819 = vpack.c.b16 %v1808, %v1807
      %v1820 = vpack.c.b16 %v1810, %v1809
      %v1821 = vpack.c.b16 %v1812, %v1811
      %v1822 = vpack.c.b16 %v1814, %v1813
      %1831 = vmatprep.subr.bf16.mxu0 0
      %1832 = vmatpush1.bf16.msra.mxu0 %v1815
      %1833 = vmatprep.subr.bf16.mxu0 0
      %1834 = vmatpush1.bf16.msra.mxu0 %v1816
      %1835 = vmatprep.subr.bf16.mxu0 0
      %1836 = vmatpush1.bf16.msra.mxu0 %v1817
      %1837 = vmatprep.subr.bf16.mxu0 0
      %1838 = vmatpush1.bf16.msra.mxu0 %v1818
      %1839 = vmatprep.subr.bf16.mxu0 0
      %1840 = vmatpush1.bf16.msra.mxu0 %v1819
      %1841 = vmatprep.subr.bf16.mxu0 0
      %1842 = vmatpush1.bf16.msra.mxu0 %v1820
      %1843 = vmatprep.subr.bf16.mxu0 0
      %1844 = vmatpush1.bf16.msra.mxu0 %v1821
      %1845 = vmatprep.subr.bf16.mxu0 0
      %1846 = vmatpush1.bf16.msra.mxu0 %v1822
      %1847 = vmatprep.subr.bf16.mxu0 0
      %1848 = vmatpush1.bf16.msra.mxu0 0
      %1849 = vmatprep.subr.bf16.mxu0 0
      %1850 = vmatpush1.bf16.msra.mxu0 0
      %1851 = vmatprep.subr.bf16.mxu0 0
      %1852 = vmatpush1.bf16.msra.mxu0 0
      %1853 = vmatprep.subr.bf16.mxu0 0
      %1854 = vmatpush1.bf16.msra.mxu0 0
      %1855 = vmatprep.subr.bf16.mxu0 0
      %1856 = vmatpush1.bf16.msra.mxu0 0
      %1857 = vmatprep.subr.bf16.mxu0 0
      %1858 = vmatpush1.bf16.msra.mxu0 0
      %1859 = vmatprep.subr.bf16.mxu0 0
      %1860 = vmatpush1.bf16.msra.mxu0 0
      %1861 = vmatprep.subr.bf16.mxu0 0
      %1862 = vmatpush1.bf16.msra.mxu0 0
      %1863 = vmatprep.mubr.bf16.mxu0 0
      %1864 = vmatmul.mubr.bf16.gmra.mrb[0].mxu0 %v1750
      %v1865 = vpop.f32.mrb[0].mxu0
      %v1866 = vadd.f32 0.0, %v1865
      %v1867 = vpop.f32.mrb[0].mxu0
      %v1868 = vpop.f32.mrb[0].mxu0
      %v1869 = vadd.f32 0.0, %v1868
      %v1870 = vpop.f32.mrb[0].mxu0
      %1871 = vmatprep.mubr.bf16.mxu0 0
      %1872 = vmatmul.mubr.bf16.gmra.mrb[0].mxu0 %v1751
      %v1873 = vpop.f32.mrb[0].mxu0
      %v1874 = vadd.f32 0.0, %v1873
      %v1875 = vpop.f32.mrb[0].mxu0
      %v1876 = vpop.f32.mrb[0].mxu0
      %v1877 = vadd.f32 0.0, %v1876
      %v1878 = vpop.f32.mrb[0].mxu0
      %1879 = vmatprep.mubr.bf16.mxu0 0
      %1880 = vmatmul.mubr.bf16.gmra.mrb[0].mxu0 %v1752
      %v1881 = vpop.f32.mrb[0].mxu0
      %v1882 = vadd.f32 0.0, %v1881
      %v1883 = vpop.f32.mrb[0].mxu0
      %v1884 = vpop.f32.mrb[0].mxu0
      %v1885 = vadd.f32 0.0, %v1884
      %v1886 = vpop.f32.mrb[0].mxu0
      %1887 = vmatprep.mubr.bf16.mxu0 0
      %1888 = vmatmul.mubr.bf16.gmra.mrb[0].mxu0 %v1753
      %v1889 = vpop.f32.mrb[0].mxu0
      %v1890 = vadd.f32 0.0, %v1889
      %v1891 = vpop.f32.mrb[0].mxu0
      %v1892 = vpop.f32.mrb[0].mxu0
      %v1893 = vadd.f32 0.0, %v1892
      %v1894 = vpop.f32.mrb[0].mxu0
      %1895 = vmatprep.mubr.bf16.mxu0 0
      %1896 = vmatmul.mubr.bf16.gmra.mrb[0].mxu0 %v1754
      %v1897 = vpop.f32.mrb[0].mxu0
      %v1898 = vadd.f32 0.0, %v1897
      %v1899 = vpop.f32.mrb[0].mxu0
      %v1900 = vpop.f32.mrb[0].mxu0
      %v1901 = vadd.f32 0.0, %v1900
      %v1902 = vpop.f32.mrb[0].mxu0
      %1903 = vmatprep.mubr.bf16.mxu0 0
      %1904 = vmatmul.mubr.bf16.gmra.mrb[0].mxu0 %v1755
      %v1905 = vpop.f32.mrb[0].mxu0
      %v1906 = vadd.f32 0.0, %v1905
      %v1907 = vpop.f32.mrb[0].mxu0
      %v1908 = vpop.f32.mrb[0].mxu0
      %v1909 = vadd.f32 0.0, %v1908
      %v1910 = vpop.f32.mrb[0].mxu0
      %1911 = vmatprep.mubr.bf16.mxu0 0
      %1912 = vmatmul.mubr.bf16.gmra.mrb[0].mxu0 %v1756
      %v1913 = vpop.f32.mrb[0].mxu0
      %v1914 = vadd.f32 0.0, %v1913
      %v1915 = vpop.f32.mrb[0].mxu0
      %v1916 = vpop.f32.mrb[0].mxu0
      %v1917 = vadd.f32 0.0, %v1916
      %v1918 = vpop.f32.mrb[0].mxu0
      %1919 = vmatprep.mubr.bf16.mxu0 0
      %1920 = vmatmul.mubr.bf16.gmra.mrb[0].mxu0 %v1757
      %v1921 = vpop.f32.mrb[0].mxu0
      %v1922 = vadd.f32 0.0, %v1921
      %v1923 = vpop.f32.mrb[0].mxu0
      %v1924 = vpop.f32.mrb[0].mxu0
      %v1925 = vadd.f32 0.0, %v1924
      %v1926 = vpop.f32.mrb[0].mxu0
      %1927 = vmatprep.mubr.bf16.mxu0 0
      %1928 = vmatmul.mubr.bf16.gmra.mrb[0].mxu0 %v1758
      %v1929 = vpop.f32.mrb[0].mxu0
      %v1930 = vadd.f32 0.0, %v1929
      %v1931 = vpop.f32.mrb[0].mxu0
      %v1932 = vpop.f32.mrb[0].mxu0
      %v1933 = vadd.f32 0.0, %v1932
      %v1934 = vpop.f32.mrb[0].mxu0
      %1935 = vmatprep.mubr.bf16.mxu0 0
      %1936 = vmatmul.mubr.bf16.gmra.mrb[0].mxu0 %v1759
      %v1937 = vpop.f32.mrb[0].mxu0
      %v1938 = vadd.f32 0.0, %v1937
      %v1939 = vpop.f32.mrb[0].mxu0
      %v1940 = vpop.f32.mrb[0].mxu0
      %v1941 = vadd.f32 0.0, %v1940
      %v1942 = vpop.f32.mrb[0].mxu0
      %1943 = vmatprep.mubr.bf16.mxu0 0
      %1944 = vmatmul.mubr.bf16.gmra.mrb[0].mxu0 %v1760
      %v1945 = vpop.f32.mrb[0].mxu0
      %v1946 = vadd.f32 0.0, %v1945
      %v1947 = vpop.f32.mrb[0].mxu0
      %v1948 = vpop.f32.mrb[0].mxu0
      %v1949 = vadd.f32 0.0, %v1948
      %v1950 = vpop.f32.mrb[0].mxu0
      %1951 = vmatprep.mubr.bf16.mxu0 0
      %1952 = vmatmul.mubr.bf16.gmra.mrb[0].mxu0 %v1761
      %v1953 = vpop.f32.mrb[0].mxu0
      %v1954 = vadd.f32 0.0, %v1953
      %v1955 = vpop.f32.mrb[0].mxu0
      %v1956 = vpop.f32.mrb[0].mxu0
      %v1957 = vadd.f32 0.0, %v1956
      %v1958 = vpop.f32.mrb[0].mxu0
      %1959 = vmatprep.mubr.bf16.mxu0 0
      %1960 = vmatmul.mubr.bf16.gmra.mrb[0].mxu0 %v1762
      %v1961 = vpop.f32.mrb[0].mxu0
      %v1962 = vadd.f32 0.0, %v1961
      %v1963 = vpop.f32.mrb[0].mxu0
      %v1964 = vpop.f32.mrb[0].mxu0
      %v1965 = vadd.f32 0.0, %v1964
      %v1966 = vpop.f32.mrb[0].mxu0
      %1967 = vmatprep.mubr.bf16.mxu0 0
      %1968 = vmatmul.mubr.bf16.gmra.mrb[0].mxu0 %v1763
      %v1969 = vpop.f32.mrb[0].mxu0
      %v1970 = vadd.f32 0.0, %v1969
      %v1971 = vpop.f32.mrb[0].mxu0
      %v1972 = vpop.f32.mrb[0].mxu0
      %v1973 = vadd.f32 0.0, %v1972
      %v1974 = vpop.f32.mrb[0].mxu0
      %1975 = vmatprep.mubr.bf16.mxu0 0
      %1976 = vmatmul.mubr.bf16.gmra.mrb[0].mxu0 %v1764
      %v1977 = vpop.f32.mrb[0].mxu0
      %v1978 = vadd.f32 0.0, %v1977
      %v1979 = vpop.f32.mrb[0].mxu0
      %v1980 = vpop.f32.mrb[0].mxu0
      %v1981 = vadd.f32 0.0, %v1980
      %v1982 = vpop.f32.mrb[0].mxu0
      %1983 = vmatprep.mubr.bf16.mxu0 0
      %1984 = vmatmul.mubr.bf16.gmra.mrb[0].mxu0 %v1765
      %v1985 = vpop.f32.mrb[0].mxu0
      %v1986 = vadd.f32 0.0, %v1985
      %v1987 = vpop.f32.mrb[0].mxu0
      %v1988 = vpop.f32.mrb[0].mxu0
      %v1989 = vadd.f32 0.0, %v1988
      %v1990 = vpop.f32.mrb[0].mxu0
      %1991 = vdwg.mxu0
      %v1992 = vadd.f32 %v1434, %v1866
      %v1993 = vadd.f32 %v1437, %v1869
      %v1994 = vadd.f32 %v1442, %v1874
      %v1995 = vadd.f32 %v1445, %v1877
      %v1996 = vadd.f32 %v1450, %v1882
      %v1997 = vadd.f32 %v1453, %v1885
      %v1998 = vadd.f32 %v1458, %v1890
      %v1999 = vadd.f32 %v1461, %v1893
      %v2000 = vadd.f32 %v1466, %v1898
      %v2001 = vadd.f32 %v1469, %v1901
      %v2002 = vadd.f32 %v1474, %v1906
      %v2003 = vadd.f32 %v1477, %v1909
      %v2004 = vadd.f32 %v1482, %v1914
      %v2005 = vadd.f32 %v1485, %v1917
      %v2006 = vadd.f32 %v1490, %v1922
      %v2007 = vadd.f32 %v1493, %v1925
      %v2008 = vadd.f32 %v1498, %v1930
      %v2009 = vadd.f32 %v1501, %v1933
      %v2010 = vadd.f32 %v1506, %v1938
      %v2011 = vadd.f32 %v1509, %v1941
      %v2012 = vadd.f32 %v1514, %v1946
      %v2013 = vadd.f32 %v1517, %v1949
      %v2014 = vadd.f32 %v1522, %v1954
      %v2015 = vadd.f32 %v1525, %v1957
      %v2016 = vadd.f32 %v1530, %v1962
      %v2017 = vadd.f32 %v1533, %v1965
      %v2018 = vadd.f32 %v1538, %v1970
      %v2019 = vadd.f32 %v1541, %v1973
      %v2020 = vadd.f32 %v1546, %v1978
      %v2021 = vadd.f32 %v1549, %v1981
      %v2022 = vadd.f32 %v1554, %v1986
      %v2023 = vadd.f32 %v1557, %v1989
      %v2025 = vrot.slane %v380, 7
      %v2026 = vsel %vm893, %v951, %v2025
      %v2027 = vrot.slane %v381, 7
      %v2028 = vsel %vm893, %v2025, %v2027
      %v2031 = vsel %vm1016, %v983, 0.0
      %v2032 = vsel %vm1017, %v896, 0.0
      %v2033 = vsel %vm1018, %v898, 0.0
      %v2034 = vsel %vm1019, %v900, 0.0
      %v2035 = vsel %vm1020, %v902, 0.0
      %v2036 = vsel %vm1021, %v904, 0.0
      %v2037 = vsel %vm1022, %v906, 0.0
      %v2038 = vsel %vm1023, %v908, 0.0
      %v2039 = vsel %vm1024, %v910, 0.0
      %v2040 = vsel %vm1025, %v912, 0.0
      %v2041 = vsel %vm1026, %v914, 0.0
      %v2042 = vsel %vm1027, %v916, 0.0
      %v2043 = vsel %vm1028, %v918, 0.0
      %v2044 = vsel %vm1029, %v920, 0.0
      %v2045 = vsel %vm1030, %v922, 0.0
      %v2046 = vsel %vm1031, %v924, 0.0
      %v2047 = vsel %vm1032, %v926, 0.0
      %v2048 = vsel %vm1033, %v928, 0.0
      %v2049 = vsel %vm1034, %v930, 0.0
      %v2050 = vsel %vm1035, %v932, 0.0
      %v2051 = vsel %vm1036, %v934, 0.0
      %v2052 = vsel %vm1037, %v936, 0.0
      %v2053 = vsel %vm1038, %v938, 0.0
      %v2054 = vsel %vm1039, %v940, 0.0
      %v2055 = vsel %vm1040, %v942, 0.0
      %v2056 = vsel %vm1041, %v944, 0.0
      %v2057 = vsel %vm1042, %v946, 0.0
      %v2058 = vsel %vm1043, %v948, 0.0
      %v2059 = vsel %vm1044, %v950, 0.0
      %v2060 = vsel %vm1045, %v952, 0.0
      %v2061 = vsel %vm1046, %v2026, 0.0
      %v2062 = vsel %vm1047, %v2028, 0.0
      %v2063 = vpack.c.bf16 %v2032, %v2031
      %v2064 = vpack.c.bf16 %v2034, %v2033
      %v2065 = vpack.c.bf16 %v2036, %v2035
      %v2066 = vpack.c.bf16 %v2038, %v2037
      %v2067 = vpack.c.bf16 %v2040, %v2039
      %v2068 = vpack.c.bf16 %v2042, %v2041
      %v2069 = vpack.c.bf16 %v2044, %v2043
      %v2070 = vpack.c.bf16 %v2046, %v2045
      %v2071 = vpack.c.bf16 %v2048, %v2047
      %v2072 = vpack.c.bf16 %v2050, %v2049
      %v2073 = vpack.c.bf16 %v2052, %v2051
      %v2074 = vpack.c.bf16 %v2054, %v2053
      %v2075 = vpack.c.bf16 %v2056, %v2055
      %v2076 = vpack.c.bf16 %v2058, %v2057
      %v2077 = vpack.c.bf16 %v2060, %v2059
      %v2078 = vpack.c.bf16 %v2062, %v2061
      %s2079 = scalar_lea.vmem %s3, 192
      %v2080 = vld [vmem:[%s2079] sm:$0xf]
      %v2081 = vld [vmem:[%s2079 + $0x4] sm:$0xf]
      %v2082 = vld [vmem:[%s2079 + $0x8] sm:$0xf]
      %v2083 = vld [vmem:[%s2079 + $0xc] sm:$0xf]
      %v2084 = vld [vmem:[%s2079 + $0x10] sm:$0xf]
      %v2085 = vld [vmem:[%s2079 + $0x14] sm:$0xf]
      %v2086 = vld [vmem:[%s2079 + $0x18] sm:$0xf]
      %v2087 = vld [vmem:[%s2079 + $0x1c] sm:$0xf]
      %v2088 = vld [vmem:[%s2079 + $0x20] sm:$0xf]
      %v2089 = vld [vmem:[%s2079 + $0x24] sm:$0xf]
      %v2090 = vld [vmem:[%s2079 + $0x28] sm:$0xf]
      %v2091 = vld [vmem:[%s2079 + $0x2c] sm:$0xf]
      %v2092 = vld [vmem:[%s2079 + $0x30] sm:$0xf]
      %v2093 = vld [vmem:[%s2079 + $0x34] sm:$0xf]
      %v2094 = vld [vmem:[%s2079 + $0x38] sm:$0xf]
      %v2095 = vld [vmem:[%s2079 + $0x3c] sm:$0xf]
      %v2112 = vunpack.c.l.b16 %v2080
      %v2113 = vunpack.c.l.b16 %v2081
      %v2114 = vunpack.c.l.b16 %v2082
      %v2115 = vunpack.c.l.b16 %v2083
      %v2116 = vunpack.c.l.b16 %v2084
      %v2117 = vunpack.c.l.b16 %v2085
      %v2118 = vunpack.c.l.b16 %v2086
      %v2119 = vunpack.c.l.b16 %v2087
      %v2120 = vunpack.c.l.b16 %v2088
      %v2121 = vunpack.c.l.b16 %v2089
      %v2122 = vunpack.c.l.b16 %v2090
      %v2123 = vunpack.c.l.b16 %v2091
      %v2124 = vunpack.c.l.b16 %v2092
      %v2125 = vunpack.c.l.b16 %v2093
      %v2126 = vunpack.c.l.b16 %v2094
      %v2127 = vunpack.c.l.b16 %v2095
      %v2128 = vpack.c.b16 %v2113, %v2112
      %v2129 = vpack.c.b16 %v2115, %v2114
      %v2130 = vpack.c.b16 %v2117, %v2116
      %v2131 = vpack.c.b16 %v2119, %v2118
      %v2132 = vpack.c.b16 %v2121, %v2120
      %v2133 = vpack.c.b16 %v2123, %v2122
      %v2134 = vpack.c.b16 %v2125, %v2124
      %v2135 = vpack.c.b16 %v2127, %v2126
      %2144 = vmatprep.subr.bf16.mxu0 0
      %2145 = vmatpush1.bf16.msra.mxu0 %v2128
      %2146 = vmatprep.subr.bf16.mxu0 0
      %2147 = vmatpush1.bf16.msra.mxu0 %v2129
      %2148 = vmatprep.subr.bf16.mxu0 0
      %2149 = vmatpush1.bf16.msra.mxu0 %v2130
      %2150 = vmatprep.subr.bf16.mxu0 0
      %2151 = vmatpush1.bf16.msra.mxu0 %v2131
      %2152 = vmatprep.subr.bf16.mxu0 0
      %2153 = vmatpush1.bf16.msra.mxu0 %v2132
      %2154 = vmatprep.subr.bf16.mxu0 0
      %2155 = vmatpush1.bf16.msra.mxu0 %v2133
      %2156 = vmatprep.subr.bf16.mxu0 0
      %2157 = vmatpush1.bf16.msra.mxu0 %v2134
      %2158 = vmatprep.subr.bf16.mxu0 0
      %2159 = vmatpush1.bf16.msra.mxu0 %v2135
      %2160 = vmatprep.subr.bf16.mxu0 0
      %2161 = vmatpush1.bf16.msra.mxu0 0
      %2162 = vmatprep.subr.bf16.mxu0 0
      %2163 = vmatpush1.bf16.msra.mxu0 0
      %2164 = vmatprep.subr.bf16.mxu0 0
      %2165 = vmatpush1.bf16.msra.mxu0 0
      %2166 = vmatprep.subr.bf16.mxu0 0
      %2167 = vmatpush1.bf16.msra.mxu0 0
      %2168 = vmatprep.subr.bf16.mxu0 0
      %2169 = vmatpush1.bf16.msra.mxu0 0
      %2170 = vmatprep.subr.bf16.mxu0 0
      %2171 = vmatpush1.bf16.msra.mxu0 0
      %2172 = vmatprep.subr.bf16.mxu0 0
      %2173 = vmatpush1.bf16.msra.mxu0 0
      %2174 = vmatprep.subr.bf16.mxu0 0
      %2175 = vmatpush1.bf16.msra.mxu0 0
      %2176 = vmatprep.mubr.bf16.mxu0 0
      %2177 = vmatmul.mubr.bf16.gmra.mrb[0].mxu0 %v2063
      %v2178 = vpop.f32.mrb[0].mxu0
      %v2179 = vadd.f32 0.0, %v2178
      %v2180 = vpop.f32.mrb[0].mxu0
      %v2181 = vpop.f32.mrb[0].mxu0
      %v2182 = vadd.f32 0.0, %v2181
      %v2183 = vpop.f32.mrb[0].mxu0
      %2184 = vmatprep.mubr.bf16.mxu0 0
      %2185 = vmatmul.mubr.bf16.gmra.mrb[0].mxu0 %v2064
      %v2186 = vpop.f32.mrb[0].mxu0
      %v2187 = vadd.f32 0.0, %v2186
      %v2188 = vpop.f32.mrb[0].mxu0
      %v2189 = vpop.f32.mrb[0].mxu0
      %v2190 = vadd.f32 0.0, %v2189
      %v2191 = vpop.f32.mrb[0].mxu0
      %2192 = vmatprep.mubr.bf16.mxu0 0
      %2193 = vmatmul.mubr.bf16.gmra.mrb[0].mxu0 %v2065
      %v2194 = vpop.f32.mrb[0].mxu0
      %v2195 = vadd.f32 0.0, %v2194
      %v2196 = vpop.f32.mrb[0].mxu0
      %v2197 = vpop.f32.mrb[0].mxu0
      %v2198 = vadd.f32 0.0, %v2197
      %v2199 = vpop.f32.mrb[0].mxu0
      %2200 = vmatprep.mubr.bf16.mxu0 0
      %2201 = vmatmul.mubr.bf16.gmra.mrb[0].mxu0 %v2066
      %v2202 = vpop.f32.mrb[0].mxu0
      %v2203 = vadd.f32 0.0, %v2202
      %v2204 = vpop.f32.mrb[0].mxu0
      %v2205 = vpop.f32.mrb[0].mxu0
      %v2206 = vadd.f32 0.0, %v2205
      %v2207 = vpop.f32.mrb[0].mxu0
      %2208 = vmatprep.mubr.bf16.mxu0 0
      %2209 = vmatmul.mubr.bf16.gmra.mrb[0].mxu0 %v2067
      %v2210 = vpop.f32.mrb[0].mxu0
      %v2211 = vadd.f32 0.0, %v2210
      %v2212 = vpop.f32.mrb[0].mxu0
      %v2213 = vpop.f32.mrb[0].mxu0
      %v2214 = vadd.f32 0.0, %v2213
      %v2215 = vpop.f32.mrb[0].mxu0
      %2216 = vmatprep.mubr.bf16.mxu0 0
      %2217 = vmatmul.mubr.bf16.gmra.mrb[0].mxu0 %v2068
      %v2218 = vpop.f32.mrb[0].mxu0
      %v2219 = vadd.f32 0.0, %v2218
      %v2220 = vpop.f32.mrb[0].mxu0
      %v2221 = vpop.f32.mrb[0].mxu0
      %v2222 = vadd.f32 0.0, %v2221
      %v2223 = vpop.f32.mrb[0].mxu0
      %2224 = vmatprep.mubr.bf16.mxu0 0
      %2225 = vmatmul.mubr.bf16.gmra.mrb[0].mxu0 %v2069
      %v2226 = vpop.f32.mrb[0].mxu0
      %v2227 = vadd.f32 0.0, %v2226
      %v2228 = vpop.f32.mrb[0].mxu0
      %v2229 = vpop.f32.mrb[0].mxu0
      %v2230 = vadd.f32 0.0, %v2229
      %v2231 = vpop.f32.mrb[0].mxu0
      %2232 = vmatprep.mubr.bf16.mxu0 0
      %2233 = vmatmul.mubr.bf16.gmra.mrb[0].mxu0 %v2070
      %v2234 = vpop.f32.mrb[0].mxu0
      %v2235 = vadd.f32 0.0, %v2234
      %v2236 = vpop.f32.mrb[0].mxu0
      %v2237 = vpop.f32.mrb[0].mxu0
      %v2238 = vadd.f32 0.0, %v2237
      %v2239 = vpop.f32.mrb[0].mxu0
      %2240 = vmatprep.mubr.bf16.mxu0 0
      %2241 = vmatmul.mubr.bf16.gmra.mrb[0].mxu0 %v2071
      %v2242 = vpop.f32.mrb[0].mxu0
      %v2243 = vadd.f32 0.0, %v2242
      %v2244 = vpop.f32.mrb[0].mxu0
      %v2245 = vpop.f32.mrb[0].mxu0
      %v2246 = vadd.f32 0.0, %v2245
      %v2247 = vpop.f32.mrb[0].mxu0
      %2248 = vmatprep.mubr.bf16.mxu0 0
      %2249 = vmatmul.mubr.bf16.gmra.mrb[0].mxu0 %v2072
      %v2250 = vpop.f32.mrb[0].mxu0
      %v2251 = vadd.f32 0.0, %v2250
      %v2252 = vpop.f32.mrb[0].mxu0
      %v2253 = vpop.f32.mrb[0].mxu0
      %v2254 = vadd.f32 0.0, %v2253
      %v2255 = vpop.f32.mrb[0].mxu0
      %2256 = vmatprep.mubr.bf16.mxu0 0
      %2257 = vmatmul.mubr.bf16.gmra.mrb[0].mxu0 %v2073
      %v2258 = vpop.f32.mrb[0].mxu0
      %v2259 = vadd.f32 0.0, %v2258
      %v2260 = vpop.f32.mrb[0].mxu0
      %v2261 = vpop.f32.mrb[0].mxu0
      %v2262 = vadd.f32 0.0, %v2261
      %v2263 = vpop.f32.mrb[0].mxu0
      %2264 = vmatprep.mubr.bf16.mxu0 0
      %2265 = vmatmul.mubr.bf16.gmra.mrb[0].mxu0 %v2074
      %v2266 = vpop.f32.mrb[0].mxu0
      %v2267 = vadd.f32 0.0, %v2266
      %v2268 = vpop.f32.mrb[0].mxu0
      %v2269 = vpop.f32.mrb[0].mxu0
      %v2270 = vadd.f32 0.0, %v2269
      %v2271 = vpop.f32.mrb[0].mxu0
      %2272 = vmatprep.mubr.bf16.mxu0 0
      %2273 = vmatmul.mubr.bf16.gmra.mrb[0].mxu0 %v2075
      %v2274 = vpop.f32.mrb[0].mxu0
      %v2275 = vadd.f32 0.0, %v2274
      %v2276 = vpop.f32.mrb[0].mxu0
      %v2277 = vpop.f32.mrb[0].mxu0
      %v2278 = vadd.f32 0.0, %v2277
      %v2279 = vpop.f32.mrb[0].mxu0
      %2280 = vmatprep.mubr.bf16.mxu0 0
      %2281 = vmatmul.mubr.bf16.gmra.mrb[0].mxu0 %v2076
      %v2282 = vpop.f32.mrb[0].mxu0
      %v2283 = vadd.f32 0.0, %v2282
      %v2284 = vpop.f32.mrb[0].mxu0
      %v2285 = vpop.f32.mrb[0].mxu0
      %v2286 = vadd.f32 0.0, %v2285
      %v2287 = vpop.f32.mrb[0].mxu0
      %2288 = vmatprep.mubr.bf16.mxu0 0
      %2289 = vmatmul.mubr.bf16.gmra.mrb[0].mxu0 %v2077
      %v2290 = vpop.f32.mrb[0].mxu0
      %v2291 = vadd.f32 0.0, %v2290
      %v2292 = vpop.f32.mrb[0].mxu0
      %v2293 = vpop.f32.mrb[0].mxu0
      %v2294 = vadd.f32 0.0, %v2293
      %v2295 = vpop.f32.mrb[0].mxu0
      %2296 = vmatprep.mubr.bf16.mxu0 0
      %2297 = vmatmul.mubr.bf16.gmra.mrb[0].mxu0 %v2078
      %v2298 = vpop.f32.mrb[0].mxu0
      %v2299 = vadd.f32 0.0, %v2298
      %v2300 = vpop.f32.mrb[0].mxu0
      %v2301 = vpop.f32.mrb[0].mxu0
      %v2302 = vadd.f32 0.0, %v2301
      %v2303 = vpop.f32.mrb[0].mxu0
      %2304 = vdwg.mxu0
      %v2305 = vadd.f32 %v1992, %v2179
      %v2306 = vadd.f32 %v1993, %v2182
      %v2307 = vadd.f32 %v1994, %v2187
      %v2308 = vadd.f32 %v1995, %v2190
      %v2309 = vadd.f32 %v1996, %v2195
      %v2310 = vadd.f32 %v1997, %v2198
      %v2311 = vadd.f32 %v1998, %v2203
      %v2312 = vadd.f32 %v1999, %v2206
      %v2313 = vadd.f32 %v2000, %v2211
      %v2314 = vadd.f32 %v2001, %v2214
      %v2315 = vadd.f32 %v2002, %v2219
      %v2316 = vadd.f32 %v2003, %v2222
      %v2317 = vadd.f32 %v2004, %v2227
      %v2318 = vadd.f32 %v2005, %v2230
      %v2319 = vadd.f32 %v2006, %v2235
      %v2320 = vadd.f32 %v2007, %v2238
      %v2321 = vadd.f32 %v2008, %v2243
      %v2322 = vadd.f32 %v2009, %v2246
      %v2323 = vadd.f32 %v2010, %v2251
      %v2324 = vadd.f32 %v2011, %v2254
      %v2325 = vadd.f32 %v2012, %v2259
      %v2326 = vadd.f32 %v2013, %v2262
      %v2327 = vadd.f32 %v2014, %v2267
      %v2328 = vadd.f32 %v2015, %v2270
      %v2329 = vadd.f32 %v2016, %v2275
      %v2330 = vadd.f32 %v2017, %v2278
      %v2331 = vadd.f32 %v2018, %v2283
      %v2332 = vadd.f32 %v2019, %v2286
      %v2333 = vadd.f32 %v2020, %v2291
      %v2334 = vadd.f32 %v2021, %v2294
      %v2335 = vadd.f32 %v2022, %v2299
      %v2336 = vadd.f32 %v2023, %v2302
      %v2337 = vpack.c.bf16 %v381, %v380
      %s2338 = scalar_lea.vmem %s3, 256
      %v2339 = vld [vmem:[%s2338] sm:$0xf]
      %v2340 = vld [vmem:[%s2338 + $0x4] sm:$0xf]
      %v2341 = vld [vmem:[%s2338 + $0x8] sm:$0xf]
      %v2342 = vld [vmem:[%s2338 + $0xc] sm:$0xf]
      %v2343 = vld [vmem:[%s2338 + $0x10] sm:$0xf]
      %v2344 = vld [vmem:[%s2338 + $0x14] sm:$0xf]
      %v2345 = vld [vmem:[%s2338 + $0x18] sm:$0xf]
      %v2346 = vld [vmem:[%s2338 + $0x1c] sm:$0xf]
      %v2347 = vld [vmem:[%s2338 + $0x20] sm:$0xf]
      %v2348 = vld [vmem:[%s2338 + $0x24] sm:$0xf]
      %v2349 = vld [vmem:[%s2338 + $0x28] sm:$0xf]
      %v2350 = vld [vmem:[%s2338 + $0x2c] sm:$0xf]
      %v2351 = vld [vmem:[%s2338 + $0x30] sm:$0xf]
      %v2352 = vld [vmem:[%s2338 + $0x34] sm:$0xf]
      %v2353 = vld [vmem:[%s2338 + $0x38] sm:$0xf]
      %v2354 = vld [vmem:[%s2338 + $0x3c] sm:$0xf]
      %v2371 = vunpack.c.l.b16 %v2339
      %v2372 = vunpack.c.l.b16 %v2340
      %v2373 = vunpack.c.l.b16 %v2341
      %v2374 = vunpack.c.l.b16 %v2342
      %v2375 = vunpack.c.l.b16 %v2343
      %v2376 = vunpack.c.l.b16 %v2344
      %v2377 = vunpack.c.l.b16 %v2345
      %v2378 = vunpack.c.l.b16 %v2346
      %v2379 = vunpack.c.l.b16 %v2347
      %v2380 = vunpack.c.l.b16 %v2348
      %v2381 = vunpack.c.l.b16 %v2349
      %v2382 = vunpack.c.l.b16 %v2350
      %v2383 = vunpack.c.l.b16 %v2351
      %v2384 = vunpack.c.l.b16 %v2352
      %v2385 = vunpack.c.l.b16 %v2353
      %v2386 = vunpack.c.l.b16 %v2354
      %v2387 = vpack.c.b16 %v2372, %v2371
      %v2388 = vpack.c.b16 %v2374, %v2373
      %v2389 = vpack.c.b16 %v2376, %v2375
      %v2390 = vpack.c.b16 %v2378, %v2377
      %v2391 = vpack.c.b16 %v2380, %v2379
      %v2392 = vpack.c.b16 %v2382, %v2381
      %v2393 = vpack.c.b16 %v2384, %v2383
      %v2394 = vpack.c.b16 %v2386, %v2385
      %2403 = vmatprep.subr.bf16.mxu0 0
      %2404 = vmatpush1.bf16.msra.mxu0 %v2387
      %2405 = vmatprep.subr.bf16.mxu0 0
      %2406 = vmatpush1.bf16.msra.mxu0 %v2388
      %2407 = vmatprep.subr.bf16.mxu0 0
      %2408 = vmatpush1.bf16.msra.mxu0 %v2389
      %2409 = vmatprep.subr.bf16.mxu0 0
      %2410 = vmatpush1.bf16.msra.mxu0 %v2390
      %2411 = vmatprep.subr.bf16.mxu0 0
      %2412 = vmatpush1.bf16.msra.mxu0 %v2391
      %2413 = vmatprep.subr.bf16.mxu0 0
      %2414 = vmatpush1.bf16.msra.mxu0 %v2392
      %2415 = vmatprep.subr.bf16.mxu0 0
      %2416 = vmatpush1.bf16.msra.mxu0 %v2393
      %2417 = vmatprep.subr.bf16.mxu0 0
      %2418 = vmatpush1.bf16.msra.mxu0 %v2394
      %2419 = vmatprep.subr.bf16.mxu0 0
      %2420 = vmatpush1.bf16.msra.mxu0 0
      %2421 = vmatprep.subr.bf16.mxu0 0
      %2422 = vmatpush1.bf16.msra.mxu0 0
      %2423 = vmatprep.subr.bf16.mxu0 0
      %2424 = vmatpush1.bf16.msra.mxu0 0
      %2425 = vmatprep.subr.bf16.mxu0 0
      %2426 = vmatpush1.bf16.msra.mxu0 0
      %2427 = vmatprep.subr.bf16.mxu0 0
      %2428 = vmatpush1.bf16.msra.mxu0 0
      %2429 = vmatprep.subr.bf16.mxu0 0
      %2430 = vmatpush1.bf16.msra.mxu0 0
      %2431 = vmatprep.subr.bf16.mxu0 0
      %2432 = vmatpush1.bf16.msra.mxu0 0
      %2433 = vmatprep.subr.bf16.mxu0 0
      %2434 = vmatpush1.bf16.msra.mxu0 0
      %2435 = vmatprep.mubr.bf16.mxu0 0
      %2436 = vmatmul.mubr.bf16.gmra.mrb[0].mxu0 %v1110
      %v2437 = vpop.f32.mrb[0].mxu0
      %v2438 = vadd.f32 0.0, %v2437
      %v2439 = vpop.f32.mrb[0].mxu0
      %v2440 = vpop.f32.mrb[0].mxu0
      %v2441 = vadd.f32 0.0, %v2440
      %v2442 = vpop.f32.mrb[0].mxu0
      %2443 = vmatprep.mubr.bf16.mxu0 0
      %2444 = vmatmul.mubr.bf16.gmra.mrb[0].mxu0 %v1111
      %v2445 = vpop.f32.mrb[0].mxu0
      %v2446 = vadd.f32 0.0, %v2445
      %v2447 = vpop.f32.mrb[0].mxu0
      %v2448 = vpop.f32.mrb[0].mxu0
      %v2449 = vadd.f32 0.0, %v2448
      %v2450 = vpop.f32.mrb[0].mxu0
      %2451 = vmatprep.mubr.bf16.mxu0 0
      %2452 = vmatmul.mubr.bf16.gmra.mrb[0].mxu0 %v1112
      %v2453 = vpop.f32.mrb[0].mxu0
      %v2454 = vadd.f32 0.0, %v2453
      %v2455 = vpop.f32.mrb[0].mxu0
      %v2456 = vpop.f32.mrb[0].mxu0
      %v2457 = vadd.f32 0.0, %v2456
      %v2458 = vpop.f32.mrb[0].mxu0
      %2459 = vmatprep.mubr.bf16.mxu0 0
      %2460 = vmatmul.mubr.bf16.gmra.mrb[0].mxu0 %v1113
      %v2461 = vpop.f32.mrb[0].mxu0
      %v2462 = vadd.f32 0.0, %v2461
      %v2463 = vpop.f32.mrb[0].mxu0
      %v2464 = vpop.f32.mrb[0].mxu0
      %v2465 = vadd.f32 0.0, %v2464
      %v2466 = vpop.f32.mrb[0].mxu0
      %2467 = vmatprep.mubr.bf16.mxu0 0
      %2468 = vmatmul.mubr.bf16.gmra.mrb[0].mxu0 %v1114
      %v2469 = vpop.f32.mrb[0].mxu0
      %v2470 = vadd.f32 0.0, %v2469
      %v2471 = vpop.f32.mrb[0].mxu0
      %v2472 = vpop.f32.mrb[0].mxu0
      %v2473 = vadd.f32 0.0, %v2472
      %v2474 = vpop.f32.mrb[0].mxu0
      %2475 = vmatprep.mubr.bf16.mxu0 0
      %2476 = vmatmul.mubr.bf16.gmra.mrb[0].mxu0 %v1115
      %v2477 = vpop.f32.mrb[0].mxu0
      %v2478 = vadd.f32 0.0, %v2477
      %v2479 = vpop.f32.mrb[0].mxu0
      %v2480 = vpop.f32.mrb[0].mxu0
      %v2481 = vadd.f32 0.0, %v2480
      %v2482 = vpop.f32.mrb[0].mxu0
      %2483 = vmatprep.mubr.bf16.mxu0 0
      %2484 = vmatmul.mubr.bf16.gmra.mrb[0].mxu0 %v1116
      %v2485 = vpop.f32.mrb[0].mxu0
      %v2486 = vadd.f32 0.0, %v2485
      %v2487 = vpop.f32.mrb[0].mxu0
      %v2488 = vpop.f32.mrb[0].mxu0
      %v2489 = vadd.f32 0.0, %v2488
      %v2490 = vpop.f32.mrb[0].mxu0
      %2491 = vmatprep.mubr.bf16.mxu0 0
      %2492 = vmatmul.mubr.bf16.gmra.mrb[0].mxu0 %v1117
      %v2493 = vpop.f32.mrb[0].mxu0
      %v2494 = vadd.f32 0.0, %v2493
      %v2495 = vpop.f32.mrb[0].mxu0
      %v2496 = vpop.f32.mrb[0].mxu0
      %v2497 = vadd.f32 0.0, %v2496
      %v2498 = vpop.f32.mrb[0].mxu0
      %2499 = vmatprep.mubr.bf16.mxu0 0
      %2500 = vmatmul.mubr.bf16.gmra.mrb[0].mxu0 %v1118
      %v2501 = vpop.f32.mrb[0].mxu0
      %v2502 = vadd.f32 0.0, %v2501
      %v2503 = vpop.f32.mrb[0].mxu0
      %v2504 = vpop.f32.mrb[0].mxu0
      %v2505 = vadd.f32 0.0, %v2504
      %v2506 = vpop.f32.mrb[0].mxu0
      %2507 = vmatprep.mubr.bf16.mxu0 0
      %2508 = vmatmul.mubr.bf16.gmra.mrb[0].mxu0 %v1119
      %v2509 = vpop.f32.mrb[0].mxu0
      %v2510 = vadd.f32 0.0, %v2509
      %v2511 = vpop.f32.mrb[0].mxu0
      %v2512 = vpop.f32.mrb[0].mxu0
      %v2513 = vadd.f32 0.0, %v2512
      %v2514 = vpop.f32.mrb[0].mxu0
      %2515 = vmatprep.mubr.bf16.mxu0 0
      %2516 = vmatmul.mubr.bf16.gmra.mrb[0].mxu0 %v1120
      %v2517 = vpop.f32.mrb[0].mxu0
      %v2518 = vadd.f32 0.0, %v2517
      %v2519 = vpop.f32.mrb[0].mxu0
      %v2520 = vpop.f32.mrb[0].mxu0
      %v2521 = vadd.f32 0.0, %v2520
      %v2522 = vpop.f32.mrb[0].mxu0
      %2523 = vmatprep.mubr.bf16.mxu0 0
      %2524 = vmatmul.mubr.bf16.gmra.mrb[0].mxu0 %v1121
      %v2525 = vpop.f32.mrb[0].mxu0
      %v2526 = vadd.f32 0.0, %v2525
      %v2527 = vpop.f32.mrb[0].mxu0
      %v2528 = vpop.f32.mrb[0].mxu0
      %v2529 = vadd.f32 0.0, %v2528
      %v2530 = vpop.f32.mrb[0].mxu0
      %2531 = vmatprep.mubr.bf16.mxu0 0
      %2532 = vmatmul.mubr.bf16.gmra.mrb[0].mxu0 %v1122
      %v2533 = vpop.f32.mrb[0].mxu0
      %v2534 = vadd.f32 0.0, %v2533
      %v2535 = vpop.f32.mrb[0].mxu0
      %v2536 = vpop.f32.mrb[0].mxu0
      %v2537 = vadd.f32 0.0, %v2536
      %v2538 = vpop.f32.mrb[0].mxu0
      %2539 = vmatprep.mubr.bf16.mxu0 0
      %2540 = vmatmul.mubr.bf16.gmra.mrb[0].mxu0 %v1123
      %v2541 = vpop.f32.mrb[0].mxu0
      %v2542 = vadd.f32 0.0, %v2541
      %v2543 = vpop.f32.mrb[0].mxu0
      %v2544 = vpop.f32.mrb[0].mxu0
      %v2545 = vadd.f32 0.0, %v2544
      %v2546 = vpop.f32.mrb[0].mxu0
      %2547 = vmatprep.mubr.bf16.mxu0 0
      %2548 = vmatmul.mubr.bf16.gmra.mrb[0].mxu0 %v1124
      %v2549 = vpop.f32.mrb[0].mxu0
      %v2550 = vadd.f32 0.0, %v2549
      %v2551 = vpop.f32.mrb[0].mxu0
      %v2552 = vpop.f32.mrb[0].mxu0
      %v2553 = vadd.f32 0.0, %v2552
      %v2554 = vpop.f32.mrb[0].mxu0
      %2555 = vmatprep.mubr.bf16.mxu0 0
      %2556 = vmatmul.mubr.bf16.gmra.mrb[0].mxu0 %v2337
      %v2557 = vpop.f32.mrb[0].mxu0
      %v2558 = vadd.f32 0.0, %v2557
      %v2559 = vpop.f32.mrb[0].mxu0
      %v2560 = vpop.f32.mrb[0].mxu0
      %v2561 = vadd.f32 0.0, %v2560
      %v2562 = vpop.f32.mrb[0].mxu0
      %2563 = vdwg.mxu0
      %v2564 = vadd.f32 %v2305, %v2438
      %v2565 = vadd.f32 %v2306, %v2441
      %v2566 = vadd.f32 %v2307, %v2446
      %v2567 = vadd.f32 %v2308, %v2449
      %v2568 = vadd.f32 %v2309, %v2454
      %v2569 = vadd.f32 %v2310, %v2457
      %v2570 = vadd.f32 %v2311, %v2462
      %v2571 = vadd.f32 %v2312, %v2465
      %v2572 = vadd.f32 %v2313, %v2470
      %v2573 = vadd.f32 %v2314, %v2473
      %v2574 = vadd.f32 %v2315, %v2478
      %v2575 = vadd.f32 %v2316, %v2481
      %v2576 = vadd.f32 %v2317, %v2486
      %v2577 = vadd.f32 %v2318, %v2489
      %v2578 = vadd.f32 %v2319, %v2494
      %v2579 = vadd.f32 %v2320, %v2497
      %v2580 = vadd.f32 %v2321, %v2502
      %v2581 = vadd.f32 %v2322, %v2505
      %v2582 = vadd.f32 %v2323, %v2510
      %v2583 = vadd.f32 %v2324, %v2513
      %v2584 = vadd.f32 %v2325, %v2518
      %v2585 = vadd.f32 %v2326, %v2521
      %v2586 = vadd.f32 %v2327, %v2526
      %v2587 = vadd.f32 %v2328, %v2529
      %v2588 = vadd.f32 %v2329, %v2534
      %v2589 = vadd.f32 %v2330, %v2537
      %v2590 = vadd.f32 %v2331, %v2542
      %v2591 = vadd.f32 %v2332, %v2545
      %v2592 = vadd.f32 %v2333, %v2550
      %v2593 = vadd.f32 %v2334, %v2553
      %v2594 = vadd.f32 %v2335, %v2558
      %v2595 = vadd.f32 %v2336, %v2561
      %v2596 = vrot.slane %v381, 1
      %v2597 = vsel %vm1561, %v1621, %v2596
      %v2600 = vsel %vm1561, %v2596, 0.0
      %v2601 = vsel %vm1687, %v1564, 0.0
      %v2602 = vsel %vm1688, %v1566, 0.0
      %v2603 = vsel %vm1689, %v1568, 0.0
      %v2604 = vsel %vm1690, %v1570, 0.0
      %v2605 = vsel %vm1691, %v1572, 0.0
      %v2606 = vsel %vm1692, %v1574, 0.0
      %v2607 = vsel %vm1693, %v1576, 0.0
      %v2608 = vsel %vm1694, %v1578, 0.0
      %v2609 = vsel %vm1695, %v1580, 0.0
      %v2610 = vsel %vm1696, %v1582, 0.0
      %v2611 = vsel %vm1697, %v1584, 0.0
      %v2612 = vsel %vm1698, %v1586, 0.0
      %v2613 = vsel %vm1699, %v1588, 0.0
      %v2614 = vsel %vm1700, %v1590, 0.0
      %v2615 = vsel %vm1701, %v1592, 0.0
      %v2616 = vsel %vm1702, %v1594, 0.0
      %v2617 = vsel %vm1703, %v1596, 0.0
      %v2618 = vsel %vm1704, %v1598, 0.0
      %v2619 = vsel %vm1705, %v1600, 0.0
      %v2620 = vsel %vm1706, %v1602, 0.0
      %v2621 = vsel %vm1707, %v1604, 0.0
      %v2622 = vsel %vm1708, %v1606, 0.0
      %v2623 = vsel %vm1709, %v1608, 0.0
      %v2624 = vsel %vm1710, %v1610, 0.0
      %v2625 = vsel %vm1711, %v1612, 0.0
      %v2626 = vsel %vm1712, %v1614, 0.0
      %v2627 = vsel %vm1713, %v1616, 0.0
      %v2628 = vsel %vm1714, %v1618, 0.0
      %v2629 = vsel %vm1715, %v1620, 0.0
      %v2630 = vsel %vm1716, %v1622, 0.0
      %v2631 = vsel %vm1717, %v2597, 0.0
      %v2632 = vsel %vm1718, %v2600, 0.0
      %v2633 = vpack.c.bf16 %v2602, %v2601
      %v2634 = vpack.c.bf16 %v2604, %v2603
      %v2635 = vpack.c.bf16 %v2606, %v2605
      %v2636 = vpack.c.bf16 %v2608, %v2607
      %v2637 = vpack.c.bf16 %v2610, %v2609
      %v2638 = vpack.c.bf16 %v2612, %v2611
      %v2639 = vpack.c.bf16 %v2614, %v2613
      %v2640 = vpack.c.bf16 %v2616, %v2615
      %v2641 = vpack.c.bf16 %v2618, %v2617
      %v2642 = vpack.c.bf16 %v2620, %v2619
      %v2643 = vpack.c.bf16 %v2622, %v2621
      %v2644 = vpack.c.bf16 %v2624, %v2623
      %v2645 = vpack.c.bf16 %v2626, %v2625
      %v2646 = vpack.c.bf16 %v2628, %v2627
      %v2647 = vpack.c.bf16 %v2630, %v2629
      %v2648 = vpack.c.bf16 %v2632, %v2631
      %s2649 = scalar_lea.vmem %s3, 320
      %v2650 = vld [vmem:[%s2649] sm:$0xf]
      %v2651 = vld [vmem:[%s2649 + $0x4] sm:$0xf]
      %v2652 = vld [vmem:[%s2649 + $0x8] sm:$0xf]
      %v2653 = vld [vmem:[%s2649 + $0xc] sm:$0xf]
      %v2654 = vld [vmem:[%s2649 + $0x10] sm:$0xf]
      %v2655 = vld [vmem:[%s2649 + $0x14] sm:$0xf]
      %v2656 = vld [vmem:[%s2649 + $0x18] sm:$0xf]
      %v2657 = vld [vmem:[%s2649 + $0x1c] sm:$0xf]
      %v2658 = vld [vmem:[%s2649 + $0x20] sm:$0xf]
      %v2659 = vld [vmem:[%s2649 + $0x24] sm:$0xf]
      %v2660 = vld [vmem:[%s2649 + $0x28] sm:$0xf]
      %v2661 = vld [vmem:[%s2649 + $0x2c] sm:$0xf]
      %v2662 = vld [vmem:[%s2649 + $0x30] sm:$0xf]
      %v2663 = vld [vmem:[%s2649 + $0x34] sm:$0xf]
      %v2664 = vld [vmem:[%s2649 + $0x38] sm:$0xf]
      %v2665 = vld [vmem:[%s2649 + $0x3c] sm:$0xf]
      %v2682 = vunpack.c.l.b16 %v2650
      %v2683 = vunpack.c.l.b16 %v2651
      %v2684 = vunpack.c.l.b16 %v2652
      %v2685 = vunpack.c.l.b16 %v2653
      %v2686 = vunpack.c.l.b16 %v2654
      %v2687 = vunpack.c.l.b16 %v2655
      %v2688 = vunpack.c.l.b16 %v2656
      %v2689 = vunpack.c.l.b16 %v2657
      %v2690 = vunpack.c.l.b16 %v2658
      %v2691 = vunpack.c.l.b16 %v2659
      %v2692 = vunpack.c.l.b16 %v2660
      %v2693 = vunpack.c.l.b16 %v2661
      %v2694 = vunpack.c.l.b16 %v2662
      %v2695 = vunpack.c.l.b16 %v2663
      %v2696 = vunpack.c.l.b16 %v2664
      %v2697 = vunpack.c.l.b16 %v2665
      %v2698 = vpack.c.b16 %v2683, %v2682
      %v2699 = vpack.c.b16 %v2685, %v2684
      %v2700 = vpack.c.b16 %v2687, %v2686
      %v2701 = vpack.c.b16 %v2689, %v2688
      %v2702 = vpack.c.b16 %v2691, %v2690
      %v2703 = vpack.c.b16 %v2693, %v2692
      %v2704 = vpack.c.b16 %v2695, %v2694
      %v2705 = vpack.c.b16 %v2697, %v2696
      %2714 = vmatprep.subr.bf16.mxu0 0
      %2715 = vmatpush1.bf16.msra.mxu0 %v2698
      %2716 = vmatprep.subr.bf16.mxu0 0
      %2717 = vmatpush1.bf16.msra.mxu0 %v2699
      %2718 = vmatprep.subr.bf16.mxu0 0
      %2719 = vmatpush1.bf16.msra.mxu0 %v2700
      %2720 = vmatprep.subr.bf16.mxu0 0
      %2721 = vmatpush1.bf16.msra.mxu0 %v2701
      %2722 = vmatprep.subr.bf16.mxu0 0
      %2723 = vmatpush1.bf16.msra.mxu0 %v2702
      %2724 = vmatprep.subr.bf16.mxu0 0
      %2725 = vmatpush1.bf16.msra.mxu0 %v2703
      %2726 = vmatprep.subr.bf16.mxu0 0
      %2727 = vmatpush1.bf16.msra.mxu0 %v2704
      %2728 = vmatprep.subr.bf16.mxu0 0
      %2729 = vmatpush1.bf16.msra.mxu0 %v2705
      %2730 = vmatprep.subr.bf16.mxu0 0
      %2731 = vmatpush1.bf16.msra.mxu0 0
      %2732 = vmatprep.subr.bf16.mxu0 0
      %2733 = vmatpush1.bf16.msra.mxu0 0
      %2734 = vmatprep.subr.bf16.mxu0 0
      %2735 = vmatpush1.bf16.msra.mxu0 0
      %2736 = vmatprep.subr.bf16.mxu0 0
      %2737 = vmatpush1.bf16.msra.mxu0 0
      %2738 = vmatprep.subr.bf16.mxu0 0
      %2739 = vmatpush1.bf16.msra.mxu0 0
      %2740 = vmatprep.subr.bf16.mxu0 0
      %2741 = vmatpush1.bf16.msra.mxu0 0
      %2742 = vmatprep.subr.bf16.mxu0 0
      %2743 = vmatpush1.bf16.msra.mxu0 0
      %2744 = vmatprep.subr.bf16.mxu0 0
      %2745 = vmatpush1.bf16.msra.mxu0 0
      %2746 = vmatprep.mubr.bf16.mxu0 0
      %2747 = vmatmul.mubr.bf16.gmra.mrb[0].mxu0 %v2633
      %v2748 = vpop.f32.mrb[0].mxu0
      %v2749 = vadd.f32 0.0, %v2748
      %v2750 = vpop.f32.mrb[0].mxu0
      %v2751 = vpop.f32.mrb[0].mxu0
      %v2752 = vadd.f32 0.0, %v2751
      %v2753 = vpop.f32.mrb[0].mxu0
      %2754 = vmatprep.mubr.bf16.mxu0 0
      %2755 = vmatmul.mubr.bf16.gmra.mrb[0].mxu0 %v2634
      %v2756 = vpop.f32.mrb[0].mxu0
      %v2757 = vadd.f32 0.0, %v2756
      %v2758 = vpop.f32.mrb[0].mxu0
      %v2759 = vpop.f32.mrb[0].mxu0
      %v2760 = vadd.f32 0.0, %v2759
      %v2761 = vpop.f32.mrb[0].mxu0
      %2762 = vmatprep.mubr.bf16.mxu0 0
      %2763 = vmatmul.mubr.bf16.gmra.mrb[0].mxu0 %v2635
      %v2764 = vpop.f32.mrb[0].mxu0
      %v2765 = vadd.f32 0.0, %v2764
      %v2766 = vpop.f32.mrb[0].mxu0
      %v2767 = vpop.f32.mrb[0].mxu0
      %v2768 = vadd.f32 0.0, %v2767
      %v2769 = vpop.f32.mrb[0].mxu0
      %2770 = vmatprep.mubr.bf16.mxu0 0
      %2771 = vmatmul.mubr.bf16.gmra.mrb[0].mxu0 %v2636
      %v2772 = vpop.f32.mrb[0].mxu0
      %v2773 = vadd.f32 0.0, %v2772
      %v2774 = vpop.f32.mrb[0].mxu0
      %v2775 = vpop.f32.mrb[0].mxu0
      %v2776 = vadd.f32 0.0, %v2775
      %v2777 = vpop.f32.mrb[0].mxu0
      %2778 = vmatprep.mubr.bf16.mxu0 0
      %2779 = vmatmul.mubr.bf16.gmra.mrb[0].mxu0 %v2637
      %v2780 = vpop.f32.mrb[0].mxu0
      %v2781 = vadd.f32 0.0, %v2780
      %v2782 = vpop.f32.mrb[0].mxu0
      %v2783 = vpop.f32.mrb[0].mxu0
      %v2784 = vadd.f32 0.0, %v2783
      %v2785 = vpop.f32.mrb[0].mxu0
      %2786 = vmatprep.mubr.bf16.mxu0 0
      %2787 = vmatmul.mubr.bf16.gmra.mrb[0].mxu0 %v2638
      %v2788 = vpop.f32.mrb[0].mxu0
      %v2789 = vadd.f32 0.0, %v2788
      %v2790 = vpop.f32.mrb[0].mxu0
      %v2791 = vpop.f32.mrb[0].mxu0
      %v2792 = vadd.f32 0.0, %v2791
      %v2793 = vpop.f32.mrb[0].mxu0
      %2794 = vmatprep.mubr.bf16.mxu0 0
      %2795 = vmatmul.mubr.bf16.gmra.mrb[0].mxu0 %v2639
      %v2796 = vpop.f32.mrb[0].mxu0
      %v2797 = vadd.f32 0.0, %v2796
      %v2798 = vpop.f32.mrb[0].mxu0
      %v2799 = vpop.f32.mrb[0].mxu0
      %v2800 = vadd.f32 0.0, %v2799
      %v2801 = vpop.f32.mrb[0].mxu0
      %2802 = vmatprep.mubr.bf16.mxu0 0
      %2803 = vmatmul.mubr.bf16.gmra.mrb[0].mxu0 %v2640
      %v2804 = vpop.f32.mrb[0].mxu0
      %v2805 = vadd.f32 0.0, %v2804
      %v2806 = vpop.f32.mrb[0].mxu0
      %v2807 = vpop.f32.mrb[0].mxu0
      %v2808 = vadd.f32 0.0, %v2807
      %v2809 = vpop.f32.mrb[0].mxu0
      %2810 = vmatprep.mubr.bf16.mxu0 0
      %2811 = vmatmul.mubr.bf16.gmra.mrb[0].mxu0 %v2641
      %v2812 = vpop.f32.mrb[0].mxu0
      %v2813 = vadd.f32 0.0, %v2812
      %v2814 = vpop.f32.mrb[0].mxu0
      %v2815 = vpop.f32.mrb[0].mxu0
      %v2816 = vadd.f32 0.0, %v2815
      %v2817 = vpop.f32.mrb[0].mxu0
      %2818 = vmatprep.mubr.bf16.mxu0 0
      %2819 = vmatmul.mubr.bf16.gmra.mrb[0].mxu0 %v2642
      %v2820 = vpop.f32.mrb[0].mxu0
      %v2821 = vadd.f32 0.0, %v2820
      %v2822 = vpop.f32.mrb[0].mxu0
      %v2823 = vpop.f32.mrb[0].mxu0
      %v2824 = vadd.f32 0.0, %v2823
      %v2825 = vpop.f32.mrb[0].mxu0
      %2826 = vmatprep.mubr.bf16.mxu0 0
      %2827 = vmatmul.mubr.bf16.gmra.mrb[0].mxu0 %v2643
      %v2828 = vpop.f32.mrb[0].mxu0
      %v2829 = vadd.f32 0.0, %v2828
      %v2830 = vpop.f32.mrb[0].mxu0
      %v2831 = vpop.f32.mrb[0].mxu0
      %v2832 = vadd.f32 0.0, %v2831
      %v2833 = vpop.f32.mrb[0].mxu0
      %2834 = vmatprep.mubr.bf16.mxu0 0
      %2835 = vmatmul.mubr.bf16.gmra.mrb[0].mxu0 %v2644
      %v2836 = vpop.f32.mrb[0].mxu0
      %v2837 = vadd.f32 0.0, %v2836
      %v2838 = vpop.f32.mrb[0].mxu0
      %v2839 = vpop.f32.mrb[0].mxu0
      %v2840 = vadd.f32 0.0, %v2839
      %v2841 = vpop.f32.mrb[0].mxu0
      %2842 = vmatprep.mubr.bf16.mxu0 0
      %2843 = vmatmul.mubr.bf16.gmra.mrb[0].mxu0 %v2645
      %v2844 = vpop.f32.mrb[0].mxu0
      %v2845 = vadd.f32 0.0, %v2844
      %v2846 = vpop.f32.mrb[0].mxu0
      %v2847 = vpop.f32.mrb[0].mxu0
      %v2848 = vadd.f32 0.0, %v2847
      %v2849 = vpop.f32.mrb[0].mxu0
      %2850 = vmatprep.mubr.bf16.mxu0 0
      %2851 = vmatmul.mubr.bf16.gmra.mrb[0].mxu0 %v2646
      %v2852 = vpop.f32.mrb[0].mxu0
      %v2853 = vadd.f32 0.0, %v2852
      %v2854 = vpop.f32.mrb[0].mxu0
      %v2855 = vpop.f32.mrb[0].mxu0
      %v2856 = vadd.f32 0.0, %v2855
      %v2857 = vpop.f32.mrb[0].mxu0
      %2858 = vmatprep.mubr.bf16.mxu0 0
      %2859 = vmatmul.mubr.bf16.gmra.mrb[0].mxu0 %v2647
      %v2860 = vpop.f32.mrb[0].mxu0
      %v2861 = vadd.f32 0.0, %v2860
      %v2862 = vpop.f32.mrb[0].mxu0
      %v2863 = vpop.f32.mrb[0].mxu0
      %v2864 = vadd.f32 0.0, %v2863
      %v2865 = vpop.f32.mrb[0].mxu0
      %2866 = vmatprep.mubr.bf16.mxu0 0
      %2867 = vmatmul.mubr.bf16.gmra.mrb[0].mxu0 %v2648
      %v2868 = vpop.f32.mrb[0].mxu0
      %v2869 = vadd.f32 0.0, %v2868
      %v2870 = vpop.f32.mrb[0].mxu0
      %v2871 = vpop.f32.mrb[0].mxu0
      %v2872 = vadd.f32 0.0, %v2871
      %v2873 = vpop.f32.mrb[0].mxu0
      %2874 = vdwg.mxu0
      %v2875 = vadd.f32 %v2564, %v2749
      %v2876 = vadd.f32 %v2565, %v2752
      %v2877 = vadd.f32 %v2566, %v2757
      %v2878 = vadd.f32 %v2567, %v2760
      %v2879 = vadd.f32 %v2568, %v2765
      %v2880 = vadd.f32 %v2569, %v2768
      %v2881 = vadd.f32 %v2570, %v2773
      %v2882 = vadd.f32 %v2571, %v2776
      %v2883 = vadd.f32 %v2572, %v2781
      %v2884 = vadd.f32 %v2573, %v2784
      %v2885 = vadd.f32 %v2574, %v2789
      %v2886 = vadd.f32 %v2575, %v2792
      %v2887 = vadd.f32 %v2576, %v2797
      %v2888 = vadd.f32 %v2577, %v2800
      %v2889 = vadd.f32 %v2578, %v2805
      %v2890 = vadd.f32 %v2579, %v2808
      %v2891 = vadd.f32 %v2580, %v2813
      %v2892 = vadd.f32 %v2581, %v2816
      %v2893 = vadd.f32 %v2582, %v2821
      %v2894 = vadd.f32 %v2583, %v2824
      %v2895 = vadd.f32 %v2584, %v2829
      %v2896 = vadd.f32 %v2585, %v2832
      %v2897 = vadd.f32 %v2586, %v2837
      %v2898 = vadd.f32 %v2587, %v2840
      %v2899 = vadd.f32 %v2588, %v2845
      %v2900 = vadd.f32 %v2589, %v2848
      %v2901 = vadd.f32 %v2590, %v2853
      %v2902 = vadd.f32 %v2591, %v2856
      %v2903 = vadd.f32 %v2592, %v2861
      %v2904 = vadd.f32 %v2593, %v2864
      %v2905 = vadd.f32 %v2594, %v2869
      %v2906 = vadd.f32 %v2595, %v2872
      %v2908 = vsel %vm893, %v2027, 0.0
      %v2909 = vsel %vm1016, %v898, 0.0
      %v2910 = vsel %vm1017, %v900, 0.0
      %v2911 = vsel %vm1018, %v902, 0.0
      %v2912 = vsel %vm1019, %v904, 0.0
      %v2913 = vsel %vm1020, %v906, 0.0
      %v2914 = vsel %vm1021, %v908, 0.0
      %v2915 = vsel %vm1022, %v910, 0.0
      %v2916 = vsel %vm1023, %v912, 0.0
      %v2917 = vsel %vm1024, %v914, 0.0
      %v2918 = vsel %vm1025, %v916, 0.0
      %v2919 = vsel %vm1026, %v918, 0.0
      %v2920 = vsel %vm1027, %v920, 0.0
      %v2921 = vsel %vm1028, %v922, 0.0
      %v2922 = vsel %vm1029, %v924, 0.0
      %v2923 = vsel %vm1030, %v926, 0.0
      %v2924 = vsel %vm1031, %v928, 0.0
      %v2925 = vsel %vm1032, %v930, 0.0
      %v2926 = vsel %vm1033, %v932, 0.0
      %v2927 = vsel %vm1034, %v934, 0.0
      %v2928 = vsel %vm1035, %v936, 0.0
      %v2929 = vsel %vm1036, %v938, 0.0
      %v2930 = vsel %vm1037, %v940, 0.0
      %v2931 = vsel %vm1038, %v942, 0.0
      %v2932 = vsel %vm1039, %v944, 0.0
      %v2933 = vsel %vm1040, %v946, 0.0
      %v2934 = vsel %vm1041, %v948, 0.0
      %v2935 = vsel %vm1042, %v950, 0.0
      %v2936 = vsel %vm1043, %v952, 0.0
      %v2937 = vsel %vm1044, %v2026, 0.0
      %v2938 = vsel %vm1045, %v2028, 0.0
      %v2939 = vsel %vm1046, %v2908, 0.0
      %v2940 = vpack.c.bf16 %v2910, %v2909
      %v2941 = vpack.c.bf16 %v2912, %v2911
      %v2942 = vpack.c.bf16 %v2914, %v2913
      %v2943 = vpack.c.bf16 %v2916, %v2915
      %v2944 = vpack.c.bf16 %v2918, %v2917
      %v2945 = vpack.c.bf16 %v2920, %v2919
      %v2946 = vpack.c.bf16 %v2922, %v2921
      %v2947 = vpack.c.bf16 %v2924, %v2923
      %v2948 = vpack.c.bf16 %v2926, %v2925
      %v2949 = vpack.c.bf16 %v2928, %v2927
      %v2950 = vpack.c.bf16 %v2930, %v2929
      %v2951 = vpack.c.bf16 %v2932, %v2931
      %v2952 = vpack.c.bf16 %v2934, %v2933
      %v2953 = vpack.c.bf16 %v2936, %v2935
      %v2954 = vpack.c.bf16 %v2938, %v2937
      %v2955 = vpack.c.bf16 0.0, %v2939
      %s2956 = scalar_lea.vmem %s3, 384
      %v2957 = vld [vmem:[%s2956] sm:$0xf]
      %v2958 = vld [vmem:[%s2956 + $0x4] sm:$0xf]
      %v2959 = vld [vmem:[%s2956 + $0x8] sm:$0xf]
      %v2960 = vld [vmem:[%s2956 + $0xc] sm:$0xf]
      %v2961 = vld [vmem:[%s2956 + $0x10] sm:$0xf]
      %v2962 = vld [vmem:[%s2956 + $0x14] sm:$0xf]
      %v2963 = vld [vmem:[%s2956 + $0x18] sm:$0xf]
      %v2964 = vld [vmem:[%s2956 + $0x1c] sm:$0xf]
      %v2965 = vld [vmem:[%s2956 + $0x20] sm:$0xf]
      %v2966 = vld [vmem:[%s2956 + $0x24] sm:$0xf]
      %v2967 = vld [vmem:[%s2956 + $0x28] sm:$0xf]
      %v2968 = vld [vmem:[%s2956 + $0x2c] sm:$0xf]
      %v2969 = vld [vmem:[%s2956 + $0x30] sm:$0xf]
      %v2970 = vld [vmem:[%s2956 + $0x34] sm:$0xf]
      %v2971 = vld [vmem:[%s2956 + $0x38] sm:$0xf]
      %v2972 = vld [vmem:[%s2956 + $0x3c] sm:$0xf]
      %v2989 = vunpack.c.l.b16 %v2957
      %v2990 = vunpack.c.l.b16 %v2958
      %v2991 = vunpack.c.l.b16 %v2959
      %v2992 = vunpack.c.l.b16 %v2960
      %v2993 = vunpack.c.l.b16 %v2961
      %v2994 = vunpack.c.l.b16 %v2962
      %v2995 = vunpack.c.l.b16 %v2963
      %v2996 = vunpack.c.l.b16 %v2964
      %v2997 = vunpack.c.l.b16 %v2965
      %v2998 = vunpack.c.l.b16 %v2966
      %v2999 = vunpack.c.l.b16 %v2967
      %v3000 = vunpack.c.l.b16 %v2968
      %v3001 = vunpack.c.l.b16 %v2969
      %v3002 = vunpack.c.l.b16 %v2970
      %v3003 = vunpack.c.l.b16 %v2971
      %v3004 = vunpack.c.l.b16 %v2972
      %v3005 = vpack.c.b16 %v2990, %v2989
      %v3006 = vpack.c.b16 %v2992, %v2991
      %v3007 = vpack.c.b16 %v2994, %v2993
      %v3008 = vpack.c.b16 %v2996, %v2995
      %v3009 = vpack.c.b16 %v2998, %v2997
      %v3010 = vpack.c.b16 %v3000, %v2999
      %v3011 = vpack.c.b16 %v3002, %v3001
      %v3012 = vpack.c.b16 %v3004, %v3003
      %3021 = vmatprep.subr.bf16.mxu0 0
      %3022 = vmatpush1.bf16.msra.mxu0 %v3005
      %3023 = vmatprep.subr.bf16.mxu0 0
      %3024 = vmatpush1.bf16.msra.mxu0 %v3006
      %3025 = vmatprep.subr.bf16.mxu0 0
      %3026 = vmatpush1.bf16.msra.mxu0 %v3007
      %3027 = vmatprep.subr.bf16.mxu0 0
      %3028 = vmatpush1.bf16.msra.mxu0 %v3008
      %3029 = vmatprep.subr.bf16.mxu0 0
      %3030 = vmatpush1.bf16.msra.mxu0 %v3009
      %3031 = vmatprep.subr.bf16.mxu0 0
      %3032 = vmatpush1.bf16.msra.mxu0 %v3010
      %3033 = vmatprep.subr.bf16.mxu0 0
      %3034 = vmatpush1.bf16.msra.mxu0 %v3011
      %3035 = vmatprep.subr.bf16.mxu0 0
      %3036 = vmatpush1.bf16.msra.mxu0 %v3012
      %3037 = vmatprep.subr.bf16.mxu0 0
      %3038 = vmatpush1.bf16.msra.mxu0 0
      %3039 = vmatprep.subr.bf16.mxu0 0
      %3040 = vmatpush1.bf16.msra.mxu0 0
      %3041 = vmatprep.subr.bf16.mxu0 0
      %3042 = vmatpush1.bf16.msra.mxu0 0
      %3043 = vmatprep.subr.bf16.mxu0 0
      %3044 = vmatpush1.bf16.msra.mxu0 0
      %3045 = vmatprep.subr.bf16.mxu0 0
      %3046 = vmatpush1.bf16.msra.mxu0 0
      %3047 = vmatprep.subr.bf16.mxu0 0
      %3048 = vmatpush1.bf16.msra.mxu0 0
      %3049 = vmatprep.subr.bf16.mxu0 0
      %3050 = vmatpush1.bf16.msra.mxu0 0
      %3051 = vmatprep.subr.bf16.mxu0 0
      %3052 = vmatpush1.bf16.msra.mxu0 0
      %3053 = vmatprep.mubr.bf16.mxu0 0
      %3054 = vmatmul.mubr.bf16.gmra.mrb[0].mxu0 %v2940
      %v3055 = vpop.f32.mrb[0].mxu0
      %v3056 = vadd.f32 0.0, %v3055
      %v3057 = vpop.f32.mrb[0].mxu0
      %v3058 = vpop.f32.mrb[0].mxu0
      %v3059 = vadd.f32 0.0, %v3058
      %v3060 = vpop.f32.mrb[0].mxu0
      %3061 = vmatprep.mubr.bf16.mxu0 0
      %3062 = vmatmul.mubr.bf16.gmra.mrb[0].mxu0 %v2941
      %v3063 = vpop.f32.mrb[0].mxu0
      %v3064 = vadd.f32 0.0, %v3063
      %v3065 = vpop.f32.mrb[0].mxu0
      %v3066 = vpop.f32.mrb[0].mxu0
      %v3067 = vadd.f32 0.0, %v3066
      %v3068 = vpop.f32.mrb[0].mxu0
      %3069 = vmatprep.mubr.bf16.mxu0 0
      %3070 = vmatmul.mubr.bf16.gmra.mrb[0].mxu0 %v2942
      %v3071 = vpop.f32.mrb[0].mxu0
      %v3072 = vadd.f32 0.0, %v3071
      %v3073 = vpop.f32.mrb[0].mxu0
      %v3074 = vpop.f32.mrb[0].mxu0
      %v3075 = vadd.f32 0.0, %v3074
      %v3076 = vpop.f32.mrb[0].mxu0
      %3077 = vmatprep.mubr.bf16.mxu0 0
      %3078 = vmatmul.mubr.bf16.gmra.mrb[0].mxu0 %v2943
      %v3079 = vpop.f32.mrb[0].mxu0
      %v3080 = vadd.f32 0.0, %v3079
      %v3081 = vpop.f32.mrb[0].mxu0
      %v3082 = vpop.f32.mrb[0].mxu0
      %v3083 = vadd.f32 0.0, %v3082
      %v3084 = vpop.f32.mrb[0].mxu0
      %3085 = vmatprep.mubr.bf16.mxu0 0
      %3086 = vmatmul.mubr.bf16.gmra.mrb[0].mxu0 %v2944
      %v3087 = vpop.f32.mrb[0].mxu0
      %v3088 = vadd.f32 0.0, %v3087
      %v3089 = vpop.f32.mrb[0].mxu0
      %v3090 = vpop.f32.mrb[0].mxu0
      %v3091 = vadd.f32 0.0, %v3090
      %v3092 = vpop.f32.mrb[0].mxu0
      %3093 = vmatprep.mubr.bf16.mxu0 0
      %3094 = vmatmul.mubr.bf16.gmra.mrb[0].mxu0 %v2945
      %v3095 = vpop.f32.mrb[0].mxu0
      %v3096 = vadd.f32 0.0, %v3095
      %v3097 = vpop.f32.mrb[0].mxu0
      %v3098 = vpop.f32.mrb[0].mxu0
      %v3099 = vadd.f32 0.0, %v3098
      %v3100 = vpop.f32.mrb[0].mxu0
      %3101 = vmatprep.mubr.bf16.mxu0 0
      %3102 = vmatmul.mubr.bf16.gmra.mrb[0].mxu0 %v2946
      %v3103 = vpop.f32.mrb[0].mxu0
      %v3104 = vadd.f32 0.0, %v3103
      %v3105 = vpop.f32.mrb[0].mxu0
      %v3106 = vpop.f32.mrb[0].mxu0
      %v3107 = vadd.f32 0.0, %v3106
      %v3108 = vpop.f32.mrb[0].mxu0
      %3109 = vmatprep.mubr.bf16.mxu0 0
      %3110 = vmatmul.mubr.bf16.gmra.mrb[0].mxu0 %v2947
      %v3111 = vpop.f32.mrb[0].mxu0
      %v3112 = vadd.f32 0.0, %v3111
      %v3113 = vpop.f32.mrb[0].mxu0
      %v3114 = vpop.f32.mrb[0].mxu0
      %v3115 = vadd.f32 0.0, %v3114
      %v3116 = vpop.f32.mrb[0].mxu0
      %3117 = vmatprep.mubr.bf16.mxu0 0
      %3118 = vmatmul.mubr.bf16.gmra.mrb[0].mxu0 %v2948
      %v3119 = vpop.f32.mrb[0].mxu0
      %v3120 = vadd.f32 0.0, %v3119
      %v3121 = vpop.f32.mrb[0].mxu0
      %v3122 = vpop.f32.mrb[0].mxu0
      %v3123 = vadd.f32 0.0, %v3122
      %v3124 = vpop.f32.mrb[0].mxu0
      %3125 = vmatprep.mubr.bf16.mxu0 0
      %3126 = vmatmul.mubr.bf16.gmra.mrb[0].mxu0 %v2949
      %v3127 = vpop.f32.mrb[0].mxu0
      %v3128 = vadd.f32 0.0, %v3127
      %v3129 = vpop.f32.mrb[0].mxu0
      %v3130 = vpop.f32.mrb[0].mxu0
      %v3131 = vadd.f32 0.0, %v3130
      %v3132 = vpop.f32.mrb[0].mxu0
      %3133 = vmatprep.mubr.bf16.mxu0 0
      %3134 = vmatmul.mubr.bf16.gmra.mrb[0].mxu0 %v2950
      %v3135 = vpop.f32.mrb[0].mxu0
      %v3136 = vadd.f32 0.0, %v3135
      %v3137 = vpop.f32.mrb[0].mxu0
      %v3138 = vpop.f32.mrb[0].mxu0
      %v3139 = vadd.f32 0.0, %v3138
      %v3140 = vpop.f32.mrb[0].mxu0
      %3141 = vmatprep.mubr.bf16.mxu0 0
      %3142 = vmatmul.mubr.bf16.gmra.mrb[0].mxu0 %v2951
      %v3143 = vpop.f32.mrb[0].mxu0
      %v3144 = vadd.f32 0.0, %v3143
      %v3145 = vpop.f32.mrb[0].mxu0
      %v3146 = vpop.f32.mrb[0].mxu0
      %v3147 = vadd.f32 0.0, %v3146
      %v3148 = vpop.f32.mrb[0].mxu0
      %3149 = vmatprep.mubr.bf16.mxu0 0
      %3150 = vmatmul.mubr.bf16.gmra.mrb[0].mxu0 %v2952
      %v3151 = vpop.f32.mrb[0].mxu0
      %v3152 = vadd.f32 0.0, %v3151
      %v3153 = vpop.f32.mrb[0].mxu0
      %v3154 = vpop.f32.mrb[0].mxu0
      %v3155 = vadd.f32 0.0, %v3154
      %v3156 = vpop.f32.mrb[0].mxu0
      %3157 = vmatprep.mubr.bf16.mxu0 0
      %3158 = vmatmul.mubr.bf16.gmra.mrb[0].mxu0 %v2953
      %v3159 = vpop.f32.mrb[0].mxu0
      %v3160 = vadd.f32 0.0, %v3159
      %v3161 = vpop.f32.mrb[0].mxu0
      %v3162 = vpop.f32.mrb[0].mxu0
      %v3163 = vadd.f32 0.0, %v3162
      %v3164 = vpop.f32.mrb[0].mxu0
      %3165 = vmatprep.mubr.bf16.mxu0 0
      %3166 = vmatmul.mubr.bf16.gmra.mrb[0].mxu0 %v2954
      %v3167 = vpop.f32.mrb[0].mxu0
      %v3168 = vadd.f32 0.0, %v3167
      %v3169 = vpop.f32.mrb[0].mxu0
      %v3170 = vpop.f32.mrb[0].mxu0
      %v3171 = vadd.f32 0.0, %v3170
      %v3172 = vpop.f32.mrb[0].mxu0
      %3173 = vmatprep.mubr.bf16.mxu0 0
      %3174 = vmatmul.mubr.bf16.gmra.mrb[0].mxu0 %v2955
      %v3175 = vpop.f32.mrb[0].mxu0
      %v3176 = vadd.f32 0.0, %v3175
      %v3177 = vpop.f32.mrb[0].mxu0
      %v3178 = vpop.f32.mrb[0].mxu0
      %v3179 = vadd.f32 0.0, %v3178
      %v3180 = vpop.f32.mrb[0].mxu0
      %3181 = vdwg.mxu0
      %v3182 = vadd.f32 %v2875, %v3056
      %v3183 = vadd.f32 %v2876, %v3059
      %v3184 = vadd.f32 %v2877, %v3064
      %v3185 = vadd.f32 %v2878, %v3067
      %v3186 = vadd.f32 %v2879, %v3072
      %v3187 = vadd.f32 %v2880, %v3075
      %v3188 = vadd.f32 %v2881, %v3080
      %v3189 = vadd.f32 %v2882, %v3083
      %v3190 = vadd.f32 %v2883, %v3088
      %v3191 = vadd.f32 %v2884, %v3091
      %v3192 = vadd.f32 %v2885, %v3096
      %v3193 = vadd.f32 %v2886, %v3099
      %v3194 = vadd.f32 %v2887, %v3104
      %v3195 = vadd.f32 %v2888, %v3107
      %v3196 = vadd.f32 %v2889, %v3112
      %v3197 = vadd.f32 %v2890, %v3115
      %v3198 = vadd.f32 %v2891, %v3120
      %v3199 = vadd.f32 %v2892, %v3123
      %v3200 = vadd.f32 %v2893, %v3128
      %v3201 = vadd.f32 %v2894, %v3131
      %v3202 = vadd.f32 %v2895, %v3136
      %v3203 = vadd.f32 %v2896, %v3139
      %v3204 = vadd.f32 %v2897, %v3144
      %v3205 = vadd.f32 %v2898, %v3147
      %v3206 = vadd.f32 %v2899, %v3152
      %v3207 = vadd.f32 %v2900, %v3155
      %v3208 = vadd.f32 %v2901, %v3160
      %v3209 = vadd.f32 %v2902, %v3163
      %v3210 = vadd.f32 %v2903, %v3168
      %v3211 = vadd.f32 %v2904, %v3171
      %v3212 = vadd.f32 %v2905, %v3176
      %v3213 = vadd.f32 %v2906, %v3179
      %s3214 = scalar_lea.vmem %s3, 448
      %v3215 = vld [vmem:[%s3214] sm:$0xf]
      %v3216 = vld [vmem:[%s3214 + $0x4] sm:$0xf]
      %v3217 = vld [vmem:[%s3214 + $0x8] sm:$0xf]
      %v3218 = vld [vmem:[%s3214 + $0xc] sm:$0xf]
      %v3219 = vld [vmem:[%s3214 + $0x10] sm:$0xf]
      %v3220 = vld [vmem:[%s3214 + $0x14] sm:$0xf]
      %v3221 = vld [vmem:[%s3214 + $0x18] sm:$0xf]
      %v3222 = vld [vmem:[%s3214 + $0x1c] sm:$0xf]
      %v3223 = vld [vmem:[%s3214 + $0x20] sm:$0xf]
      %v3224 = vld [vmem:[%s3214 + $0x24] sm:$0xf]
      %v3225 = vld [vmem:[%s3214 + $0x28] sm:$0xf]
      %v3226 = vld [vmem:[%s3214 + $0x2c] sm:$0xf]
      %v3227 = vld [vmem:[%s3214 + $0x30] sm:$0xf]
      %v3228 = vld [vmem:[%s3214 + $0x34] sm:$0xf]
      %v3229 = vld [vmem:[%s3214 + $0x38] sm:$0xf]
      %v3230 = vld [vmem:[%s3214 + $0x3c] sm:$0xf]
      %v3247 = vunpack.c.l.b16 %v3215
      %v3248 = vunpack.c.l.b16 %v3216
      %v3249 = vunpack.c.l.b16 %v3217
      %v3250 = vunpack.c.l.b16 %v3218
      %v3251 = vunpack.c.l.b16 %v3219
      %v3252 = vunpack.c.l.b16 %v3220
      %v3253 = vunpack.c.l.b16 %v3221
      %v3254 = vunpack.c.l.b16 %v3222
      %v3255 = vunpack.c.l.b16 %v3223
      %v3256 = vunpack.c.l.b16 %v3224
      %v3257 = vunpack.c.l.b16 %v3225
      %v3258 = vunpack.c.l.b16 %v3226
      %v3259 = vunpack.c.l.b16 %v3227
      %v3260 = vunpack.c.l.b16 %v3228
      %v3261 = vunpack.c.l.b16 %v3229
      %v3262 = vunpack.c.l.b16 %v3230
      %v3263 = vpack.c.b16 %v3248, %v3247
      %v3264 = vpack.c.b16 %v3250, %v3249
      %v3265 = vpack.c.b16 %v3252, %v3251
      %v3266 = vpack.c.b16 %v3254, %v3253
      %v3267 = vpack.c.b16 %v3256, %v3255
      %v3268 = vpack.c.b16 %v3258, %v3257
      %v3269 = vpack.c.b16 %v3260, %v3259
      %v3270 = vpack.c.b16 %v3262, %v3261
      %3279 = vmatprep.subr.bf16.mxu0 0
      %3280 = vmatpush1.bf16.msra.mxu0 %v3263
      %3281 = vmatprep.subr.bf16.mxu0 0
      %3282 = vmatpush1.bf16.msra.mxu0 %v3264
      %3283 = vmatprep.subr.bf16.mxu0 0
      %3284 = vmatpush1.bf16.msra.mxu0 %v3265
      %3285 = vmatprep.subr.bf16.mxu0 0
      %3286 = vmatpush1.bf16.msra.mxu0 %v3266
      %3287 = vmatprep.subr.bf16.mxu0 0
      %3288 = vmatpush1.bf16.msra.mxu0 %v3267
      %3289 = vmatprep.subr.bf16.mxu0 0
      %3290 = vmatpush1.bf16.msra.mxu0 %v3268
      %3291 = vmatprep.subr.bf16.mxu0 0
      %3292 = vmatpush1.bf16.msra.mxu0 %v3269
      %3293 = vmatprep.subr.bf16.mxu0 0
      %3294 = vmatpush1.bf16.msra.mxu0 %v3270
      %3295 = vmatprep.subr.bf16.mxu0 0
      %3296 = vmatpush1.bf16.msra.mxu0 0
      %3297 = vmatprep.subr.bf16.mxu0 0
      %3298 = vmatpush1.bf16.msra.mxu0 0
      %3299 = vmatprep.subr.bf16.mxu0 0
      %3300 = vmatpush1.bf16.msra.mxu0 0
      %3301 = vmatprep.subr.bf16.mxu0 0
      %3302 = vmatpush1.bf16.msra.mxu0 0
      %3303 = vmatprep.subr.bf16.mxu0 0
      %3304 = vmatpush1.bf16.msra.mxu0 0
      %3305 = vmatprep.subr.bf16.mxu0 0
      %3306 = vmatpush1.bf16.msra.mxu0 0
      %3307 = vmatprep.subr.bf16.mxu0 0
      %3308 = vmatpush1.bf16.msra.mxu0 0
      %3309 = vmatprep.subr.bf16.mxu0 0
      %3310 = vmatpush1.bf16.msra.mxu0 0
      %3311 = vmatprep.mubr.bf16.mxu0 0
      %3312 = vmatmul.mubr.bf16.gmra.mrb[0].mxu0 %v1111
      %v3313 = vpop.f32.mrb[0].mxu0
      %v3314 = vadd.f32 0.0, %v3313
      %v3315 = vpop.f32.mrb[0].mxu0
      %v3316 = vpop.f32.mrb[0].mxu0
      %v3317 = vadd.f32 0.0, %v3316
      %v3318 = vpop.f32.mrb[0].mxu0
      %3319 = vmatprep.mubr.bf16.mxu0 0
      %3320 = vmatmul.mubr.bf16.gmra.mrb[0].mxu0 %v1112
      %v3321 = vpop.f32.mrb[0].mxu0
      %v3322 = vadd.f32 0.0, %v3321
      %v3323 = vpop.f32.mrb[0].mxu0
      %v3324 = vpop.f32.mrb[0].mxu0
      %v3325 = vadd.f32 0.0, %v3324
      %v3326 = vpop.f32.mrb[0].mxu0
      %3327 = vmatprep.mubr.bf16.mxu0 0
      %3328 = vmatmul.mubr.bf16.gmra.mrb[0].mxu0 %v1113
      %v3329 = vpop.f32.mrb[0].mxu0
      %v3330 = vadd.f32 0.0, %v3329
      %v3331 = vpop.f32.mrb[0].mxu0
      %v3332 = vpop.f32.mrb[0].mxu0
      %v3333 = vadd.f32 0.0, %v3332
      %v3334 = vpop.f32.mrb[0].mxu0
      %3335 = vmatprep.mubr.bf16.mxu0 0
      %3336 = vmatmul.mubr.bf16.gmra.mrb[0].mxu0 %v1114
      %v3337 = vpop.f32.mrb[0].mxu0
      %v3338 = vadd.f32 0.0, %v3337
      %v3339 = vpop.f32.mrb[0].mxu0
      %v3340 = vpop.f32.mrb[0].mxu0
      %v3341 = vadd.f32 0.0, %v3340
      %v3342 = vpop.f32.mrb[0].mxu0
      %3343 = vmatprep.mubr.bf16.mxu0 0
      %3344 = vmatmul.mubr.bf16.gmra.mrb[0].mxu0 %v1115
      %v3345 = vpop.f32.mrb[0].mxu0
      %v3346 = vadd.f32 0.0, %v3345
      %v3347 = vpop.f32.mrb[0].mxu0
      %v3348 = vpop.f32.mrb[0].mxu0
      %v3349 = vadd.f32 0.0, %v3348
      %v3350 = vpop.f32.mrb[0].mxu0
      %3351 = vmatprep.mubr.bf16.mxu0 0
      %3352 = vmatmul.mubr.bf16.gmra.mrb[0].mxu0 %v1116
      %v3353 = vpop.f32.mrb[0].mxu0
      %v3354 = vadd.f32 0.0, %v3353
      %v3355 = vpop.f32.mrb[0].mxu0
      %v3356 = vpop.f32.mrb[0].mxu0
      %v3357 = vadd.f32 0.0, %v3356
      %v3358 = vpop.f32.mrb[0].mxu0
      %3359 = vmatprep.mubr.bf16.mxu0 0
      %3360 = vmatmul.mubr.bf16.gmra.mrb[0].mxu0 %v1117
      %v3361 = vpop.f32.mrb[0].mxu0
      %v3362 = vadd.f32 0.0, %v3361
      %v3363 = vpop.f32.mrb[0].mxu0
      %v3364 = vpop.f32.mrb[0].mxu0
      %v3365 = vadd.f32 0.0, %v3364
      %v3366 = vpop.f32.mrb[0].mxu0
      %3367 = vmatprep.mubr.bf16.mxu0 0
      %3368 = vmatmul.mubr.bf16.gmra.mrb[0].mxu0 %v1118
      %v3369 = vpop.f32.mrb[0].mxu0
      %v3370 = vadd.f32 0.0, %v3369
      %v3371 = vpop.f32.mrb[0].mxu0
      %v3372 = vpop.f32.mrb[0].mxu0
      %v3373 = vadd.f32 0.0, %v3372
      %v3374 = vpop.f32.mrb[0].mxu0
      %3375 = vmatprep.mubr.bf16.mxu0 0
      %3376 = vmatmul.mubr.bf16.gmra.mrb[0].mxu0 %v1119
      %v3377 = vpop.f32.mrb[0].mxu0
      %v3378 = vadd.f32 0.0, %v3377
      %v3379 = vpop.f32.mrb[0].mxu0
      %v3380 = vpop.f32.mrb[0].mxu0
      %v3381 = vadd.f32 0.0, %v3380
      %v3382 = vpop.f32.mrb[0].mxu0
      %3383 = vmatprep.mubr.bf16.mxu0 0
      %3384 = vmatmul.mubr.bf16.gmra.mrb[0].mxu0 %v1120
      %v3385 = vpop.f32.mrb[0].mxu0
      %v3386 = vadd.f32 0.0, %v3385
      %v3387 = vpop.f32.mrb[0].mxu0
      %v3388 = vpop.f32.mrb[0].mxu0
      %v3389 = vadd.f32 0.0, %v3388
      %v3390 = vpop.f32.mrb[0].mxu0
      %3391 = vmatprep.mubr.bf16.mxu0 0
      %3392 = vmatmul.mubr.bf16.gmra.mrb[0].mxu0 %v1121
      %v3393 = vpop.f32.mrb[0].mxu0
      %v3394 = vadd.f32 0.0, %v3393
      %v3395 = vpop.f32.mrb[0].mxu0
      %v3396 = vpop.f32.mrb[0].mxu0
      %v3397 = vadd.f32 0.0, %v3396
      %v3398 = vpop.f32.mrb[0].mxu0
      %3399 = vmatprep.mubr.bf16.mxu0 0
      %3400 = vmatmul.mubr.bf16.gmra.mrb[0].mxu0 %v1122
      %v3401 = vpop.f32.mrb[0].mxu0
      %v3402 = vadd.f32 0.0, %v3401
      %v3403 = vpop.f32.mrb[0].mxu0
      %v3404 = vpop.f32.mrb[0].mxu0
      %v3405 = vadd.f32 0.0, %v3404
      %v3406 = vpop.f32.mrb[0].mxu0
      %3407 = vmatprep.mubr.bf16.mxu0 0
      %3408 = vmatmul.mubr.bf16.gmra.mrb[0].mxu0 %v1123
      %v3409 = vpop.f32.mrb[0].mxu0
      %v3410 = vadd.f32 0.0, %v3409
      %v3411 = vpop.f32.mrb[0].mxu0
      %v3412 = vpop.f32.mrb[0].mxu0
      %v3413 = vadd.f32 0.0, %v3412
      %v3414 = vpop.f32.mrb[0].mxu0
      %3415 = vmatprep.mubr.bf16.mxu0 0
      %3416 = vmatmul.mubr.bf16.gmra.mrb[0].mxu0 %v1124
      %v3417 = vpop.f32.mrb[0].mxu0
      %v3418 = vadd.f32 0.0, %v3417
      %v3419 = vpop.f32.mrb[0].mxu0
      %v3420 = vpop.f32.mrb[0].mxu0
      %v3421 = vadd.f32 0.0, %v3420
      %v3422 = vpop.f32.mrb[0].mxu0
      %3423 = vmatprep.mubr.bf16.mxu0 0
      %3424 = vmatmul.mubr.bf16.gmra.mrb[0].mxu0 %v2337
      %v3425 = vpop.f32.mrb[0].mxu0
      %v3426 = vadd.f32 0.0, %v3425
      %v3427 = vpop.f32.mrb[0].mxu0
      %v3428 = vpop.f32.mrb[0].mxu0
      %v3429 = vadd.f32 0.0, %v3428
      %v3430 = vpop.f32.mrb[0].mxu0
      %3431 = vmatprep.mubr.bf16.mxu0 0
      %3432 = vmatmul.mubr.bf16.gmra.mrb[0].mxu0 %v1078
      %v3433 = vpop.f32.mrb[0].mxu0
      %v3434 = vadd.f32 0.0, %v3433
      %v3435 = vpop.f32.mrb[0].mxu0
      %v3436 = vpop.f32.mrb[0].mxu0
      %v3437 = vadd.f32 0.0, %v3436
      %v3438 = vpop.f32.mrb[0].mxu0
      %3439 = vdwg.mxu0
      %v3440 = vadd.f32 %v3182, %v3314
      %v3441 = vadd.f32 %v3183, %v3317
      %v3442 = vadd.f32 %v3184, %v3322
      %v3443 = vadd.f32 %v3185, %v3325
      %v3444 = vadd.f32 %v3186, %v3330
      %v3445 = vadd.f32 %v3187, %v3333
      %v3446 = vadd.f32 %v3188, %v3338
      %v3447 = vadd.f32 %v3189, %v3341
      %v3448 = vadd.f32 %v3190, %v3346
      %v3449 = vadd.f32 %v3191, %v3349
      %v3450 = vadd.f32 %v3192, %v3354
      %v3451 = vadd.f32 %v3193, %v3357
      %v3452 = vadd.f32 %v3194, %v3362
      %v3453 = vadd.f32 %v3195, %v3365
      %v3454 = vadd.f32 %v3196, %v3370
      %v3455 = vadd.f32 %v3197, %v3373
      %v3456 = vadd.f32 %v3198, %v3378
      %v3457 = vadd.f32 %v3199, %v3381
      %v3458 = vadd.f32 %v3200, %v3386
      %v3459 = vadd.f32 %v3201, %v3389
      %v3460 = vadd.f32 %v3202, %v3394
      %v3461 = vadd.f32 %v3203, %v3397
      %v3462 = vadd.f32 %v3204, %v3402
      %v3463 = vadd.f32 %v3205, %v3405
      %v3464 = vadd.f32 %v3206, %v3410
      %v3465 = vadd.f32 %v3207, %v3413
      %v3466 = vadd.f32 %v3208, %v3418
      %v3467 = vadd.f32 %v3209, %v3421
      %v3468 = vadd.f32 %v3210, %v3426
      %v3469 = vadd.f32 %v3211, %v3429
      %v3470 = vadd.f32 %v3212, %v3434
      %v3471 = vadd.f32 %v3213, %v3437
      %v3472 = vsel %vm1687, %v1568, 0.0
      %v3473 = vsel %vm1688, %v1570, 0.0
      %v3474 = vsel %vm1689, %v1572, 0.0
      %v3475 = vsel %vm1690, %v1574, 0.0
      %v3476 = vsel %vm1691, %v1576, 0.0
      %v3477 = vsel %vm1692, %v1578, 0.0
      %v3478 = vsel %vm1693, %v1580, 0.0
      %v3479 = vsel %vm1694, %v1582, 0.0
      %v3480 = vsel %vm1695, %v1584, 0.0
      %v3481 = vsel %vm1696, %v1586, 0.0
      %v3482 = vsel %vm1697, %v1588, 0.0
      %v3483 = vsel %vm1698, %v1590, 0.0
      %v3484 = vsel %vm1699, %v1592, 0.0
      %v3485 = vsel %vm1700, %v1594, 0.0
      %v3486 = vsel %vm1701, %v1596, 0.0
      %v3487 = vsel %vm1702, %v1598, 0.0
      %v3488 = vsel %vm1703, %v1600, 0.0
      %v3489 = vsel %vm1704, %v1602, 0.0
      %v3490 = vsel %vm1705, %v1604, 0.0
      %v3491 = vsel %vm1706, %v1606, 0.0
      %v3492 = vsel %vm1707, %v1608, 0.0
      %v3493 = vsel %vm1708, %v1610, 0.0
      %v3494 = vsel %vm1709, %v1612, 0.0
      %v3495 = vsel %vm1710, %v1614, 0.0
      %v3496 = vsel %vm1711, %v1616, 0.0
      %v3497 = vsel %vm1712, %v1618, 0.0
      %v3498 = vsel %vm1713, %v1620, 0.0
      %v3499 = vsel %vm1714, %v1622, 0.0
      %v3500 = vsel %vm1715, %v2597, 0.0
      %v3501 = vsel %vm1716, %v2600, 0.0
      %v3502 = vpack.c.bf16 %v3473, %v3472
      %v3503 = vpack.c.bf16 %v3475, %v3474
      %v3504 = vpack.c.bf16 %v3477, %v3476
      %v3505 = vpack.c.bf16 %v3479, %v3478
      %v3506 = vpack.c.bf16 %v3481, %v3480
      %v3507 = vpack.c.bf16 %v3483, %v3482
      %v3508 = vpack.c.bf16 %v3485, %v3484
      %v3509 = vpack.c.bf16 %v3487, %v3486
      %v3510 = vpack.c.bf16 %v3489, %v3488
      %v3511 = vpack.c.bf16 %v3491, %v3490
      %v3512 = vpack.c.bf16 %v3493, %v3492
      %v3513 = vpack.c.bf16 %v3495, %v3494
      %v3514 = vpack.c.bf16 %v3497, %v3496
      %v3515 = vpack.c.bf16 %v3499, %v3498
      %v3516 = vpack.c.bf16 %v3501, %v3500
      %s3517 = scalar_lea.vmem %s3, 512
      %v3518 = vld [vmem:[%s3517] sm:$0xf]
      %v3519 = vld [vmem:[%s3517 + $0x4] sm:$0xf]
      %v3520 = vld [vmem:[%s3517 + $0x8] sm:$0xf]
      %v3521 = vld [vmem:[%s3517 + $0xc] sm:$0xf]
      %v3522 = vld [vmem:[%s3517 + $0x10] sm:$0xf]
      %v3523 = vld [vmem:[%s3517 + $0x14] sm:$0xf]
      %v3524 = vld [vmem:[%s3517 + $0x18] sm:$0xf]
      %v3525 = vld [vmem:[%s3517 + $0x1c] sm:$0xf]
      %v3526 = vld [vmem:[%s3517 + $0x20] sm:$0xf]
      %v3527 = vld [vmem:[%s3517 + $0x24] sm:$0xf]
      %v3528 = vld [vmem:[%s3517 + $0x28] sm:$0xf]
      %v3529 = vld [vmem:[%s3517 + $0x2c] sm:$0xf]
      %v3530 = vld [vmem:[%s3517 + $0x30] sm:$0xf]
      %v3531 = vld [vmem:[%s3517 + $0x34] sm:$0xf]
      %v3532 = vld [vmem:[%s3517 + $0x38] sm:$0xf]
      %v3533 = vld [vmem:[%s3517 + $0x3c] sm:$0xf]
      %v3550 = vunpack.c.l.b16 %v3518
      %v3551 = vunpack.c.l.b16 %v3519
      %v3552 = vunpack.c.l.b16 %v3520
      %v3553 = vunpack.c.l.b16 %v3521
      %v3554 = vunpack.c.l.b16 %v3522
      %v3555 = vunpack.c.l.b16 %v3523
      %v3556 = vunpack.c.l.b16 %v3524
      %v3557 = vunpack.c.l.b16 %v3525
      %v3558 = vunpack.c.l.b16 %v3526
      %v3559 = vunpack.c.l.b16 %v3527
      %v3560 = vunpack.c.l.b16 %v3528
      %v3561 = vunpack.c.l.b16 %v3529
      %v3562 = vunpack.c.l.b16 %v3530
      %v3563 = vunpack.c.l.b16 %v3531
      %v3564 = vunpack.c.l.b16 %v3532
      %v3565 = vunpack.c.l.b16 %v3533
      %v3566 = vpack.c.b16 %v3551, %v3550
      %v3567 = vpack.c.b16 %v3553, %v3552
      %v3568 = vpack.c.b16 %v3555, %v3554
      %v3569 = vpack.c.b16 %v3557, %v3556
      %v3570 = vpack.c.b16 %v3559, %v3558
      %v3571 = vpack.c.b16 %v3561, %v3560
      %v3572 = vpack.c.b16 %v3563, %v3562
      %v3573 = vpack.c.b16 %v3565, %v3564
      %3582 = vmatprep.subr.bf16.mxu0 0
      %3583 = vmatpush1.bf16.msra.mxu0 %v3566
      %3584 = vmatprep.subr.bf16.mxu0 0
      %3585 = vmatpush1.bf16.msra.mxu0 %v3567
      %3586 = vmatprep.subr.bf16.mxu0 0
      %3587 = vmatpush1.bf16.msra.mxu0 %v3568
      %3588 = vmatprep.subr.bf16.mxu0 0
      %3589 = vmatpush1.bf16.msra.mxu0 %v3569
      %3590 = vmatprep.subr.bf16.mxu0 0
      %3591 = vmatpush1.bf16.msra.mxu0 %v3570
      %3592 = vmatprep.subr.bf16.mxu0 0
      %3593 = vmatpush1.bf16.msra.mxu0 %v3571
      %3594 = vmatprep.subr.bf16.mxu0 0
      %3595 = vmatpush1.bf16.msra.mxu0 %v3572
      %3596 = vmatprep.subr.bf16.mxu0 0
      %3597 = vmatpush1.bf16.msra.mxu0 %v3573
      %3598 = vmatprep.subr.bf16.mxu0 0
      %3599 = vmatpush1.bf16.msra.mxu0 0
      %3600 = vmatprep.subr.bf16.mxu0 0
      %3601 = vmatpush1.bf16.msra.mxu0 0
      %3602 = vmatprep.subr.bf16.mxu0 0
      %3603 = vmatpush1.bf16.msra.mxu0 0
      %3604 = vmatprep.subr.bf16.mxu0 0
      %3605 = vmatpush1.bf16.msra.mxu0 0
      %3606 = vmatprep.subr.bf16.mxu0 0
      %3607 = vmatpush1.bf16.msra.mxu0 0
      %3608 = vmatprep.subr.bf16.mxu0 0
      %3609 = vmatpush1.bf16.msra.mxu0 0
      %3610 = vmatprep.subr.bf16.mxu0 0
      %3611 = vmatpush1.bf16.msra.mxu0 0
      %3612 = vmatprep.subr.bf16.mxu0 0
      %3613 = vmatpush1.bf16.msra.mxu0 0
      %3614 = vmatprep.mubr.bf16.mxu0 0
      %3615 = vmatmul.mubr.bf16.gmra.mrb[0].mxu0 %v3502
      %v3616 = vpop.f32.mrb[0].mxu0
      %v3617 = vadd.f32 0.0, %v3616
      %v3618 = vpop.f32.mrb[0].mxu0
      %v3619 = vpop.f32.mrb[0].mxu0
      %v3620 = vadd.f32 0.0, %v3619
      %v3621 = vpop.f32.mrb[0].mxu0
      %3622 = vmatprep.mubr.bf16.mxu0 0
      %3623 = vmatmul.mubr.bf16.gmra.mrb[0].mxu0 %v3503
      %v3624 = vpop.f32.mrb[0].mxu0
      %v3625 = vadd.f32 0.0, %v3624
      %v3626 = vpop.f32.mrb[0].mxu0
      %v3627 = vpop.f32.mrb[0].mxu0
      %v3628 = vadd.f32 0.0, %v3627
      %v3629 = vpop.f32.mrb[0].mxu0
      %3630 = vmatprep.mubr.bf16.mxu0 0
      %3631 = vmatmul.mubr.bf16.gmra.mrb[0].mxu0 %v3504
      %v3632 = vpop.f32.mrb[0].mxu0
      %v3633 = vadd.f32 0.0, %v3632
      %v3634 = vpop.f32.mrb[0].mxu0
      %v3635 = vpop.f32.mrb[0].mxu0
      %v3636 = vadd.f32 0.0, %v3635
      %v3637 = vpop.f32.mrb[0].mxu0
      %3638 = vmatprep.mubr.bf16.mxu0 0
      %3639 = vmatmul.mubr.bf16.gmra.mrb[0].mxu0 %v3505
      %v3640 = vpop.f32.mrb[0].mxu0
      %v3641 = vadd.f32 0.0, %v3640
      %v3642 = vpop.f32.mrb[0].mxu0
      %v3643 = vpop.f32.mrb[0].mxu0
      %v3644 = vadd.f32 0.0, %v3643
      %v3645 = vpop.f32.mrb[0].mxu0
      %3646 = vmatprep.mubr.bf16.mxu0 0
      %3647 = vmatmul.mubr.bf16.gmra.mrb[0].mxu0 %v3506
      %v3648 = vpop.f32.mrb[0].mxu0
      %v3649 = vadd.f32 0.0, %v3648
      %v3650 = vpop.f32.mrb[0].mxu0
      %v3651 = vpop.f32.mrb[0].mxu0
      %v3652 = vadd.f32 0.0, %v3651
      %v3653 = vpop.f32.mrb[0].mxu0
      %3654 = vmatprep.mubr.bf16.mxu0 0
      %3655 = vmatmul.mubr.bf16.gmra.mrb[0].mxu0 %v3507
      %v3656 = vpop.f32.mrb[0].mxu0
      %v3657 = vadd.f32 0.0, %v3656
      %v3658 = vpop.f32.mrb[0].mxu0
      %v3659 = vpop.f32.mrb[0].mxu0
      %v3660 = vadd.f32 0.0, %v3659
      %v3661 = vpop.f32.mrb[0].mxu0
      %3662 = vmatprep.mubr.bf16.mxu0 0
      %3663 = vmatmul.mubr.bf16.gmra.mrb[0].mxu0 %v3508
      %v3664 = vpop.f32.mrb[0].mxu0
      %v3665 = vadd.f32 0.0, %v3664
      %v3666 = vpop.f32.mrb[0].mxu0
      %v3667 = vpop.f32.mrb[0].mxu0
      %v3668 = vadd.f32 0.0, %v3667
      %v3669 = vpop.f32.mrb[0].mxu0
      %3670 = vmatprep.mubr.bf16.mxu0 0
      %3671 = vmatmul.mubr.bf16.gmra.mrb[0].mxu0 %v3509
      %v3672 = vpop.f32.mrb[0].mxu0
      %v3673 = vadd.f32 0.0, %v3672
      %v3674 = vpop.f32.mrb[0].mxu0
      %v3675 = vpop.f32.mrb[0].mxu0
      %v3676 = vadd.f32 0.0, %v3675
      %v3677 = vpop.f32.mrb[0].mxu0
      %3678 = vmatprep.mubr.bf16.mxu0 0
      %3679 = vmatmul.mubr.bf16.gmra.mrb[0].mxu0 %v3510
      %v3680 = vpop.f32.mrb[0].mxu0
      %v3681 = vadd.f32 0.0, %v3680
      %v3682 = vpop.f32.mrb[0].mxu0
      %v3683 = vpop.f32.mrb[0].mxu0
      %v3684 = vadd.f32 0.0, %v3683
      %v3685 = vpop.f32.mrb[0].mxu0
      %3686 = vmatprep.mubr.bf16.mxu0 0
      %3687 = vmatmul.mubr.bf16.gmra.mrb[0].mxu0 %v3511
      %v3688 = vpop.f32.mrb[0].mxu0
      %v3689 = vadd.f32 0.0, %v3688
      %v3690 = vpop.f32.mrb[0].mxu0
      %v3691 = vpop.f32.mrb[0].mxu0
      %v3692 = vadd.f32 0.0, %v3691
      %v3693 = vpop.f32.mrb[0].mxu0
      %3694 = vmatprep.mubr.bf16.mxu0 0
      %3695 = vmatmul.mubr.bf16.gmra.mrb[0].mxu0 %v3512
      %v3696 = vpop.f32.mrb[0].mxu0
      %v3697 = vadd.f32 0.0, %v3696
      %v3698 = vpop.f32.mrb[0].mxu0
      %v3699 = vpop.f32.mrb[0].mxu0
      %v3700 = vadd.f32 0.0, %v3699
      %v3701 = vpop.f32.mrb[0].mxu0
      %3702 = vmatprep.mubr.bf16.mxu0 0
      %3703 = vmatmul.mubr.bf16.gmra.mrb[0].mxu0 %v3513
      %v3704 = vpop.f32.mrb[0].mxu0
      %v3705 = vadd.f32 0.0, %v3704
      %v3706 = vpop.f32.mrb[0].mxu0
      %v3707 = vpop.f32.mrb[0].mxu0
      %v3708 = vadd.f32 0.0, %v3707
      %v3709 = vpop.f32.mrb[0].mxu0
      %3710 = vmatprep.mubr.bf16.mxu0 0
      %3711 = vmatmul.mubr.bf16.gmra.mrb[0].mxu0 %v3514
      %v3712 = vpop.f32.mrb[0].mxu0
      %v3713 = vadd.f32 0.0, %v3712
      %v3714 = vpop.f32.mrb[0].mxu0
      %v3715 = vpop.f32.mrb[0].mxu0
      %v3716 = vadd.f32 0.0, %v3715
      %v3717 = vpop.f32.mrb[0].mxu0
      %3718 = vmatprep.mubr.bf16.mxu0 0
      %3719 = vmatmul.mubr.bf16.gmra.mrb[0].mxu0 %v3515
      %v3720 = vpop.f32.mrb[0].mxu0
      %v3721 = vadd.f32 0.0, %v3720
      %v3722 = vpop.f32.mrb[0].mxu0
      %v3723 = vpop.f32.mrb[0].mxu0
      %v3724 = vadd.f32 0.0, %v3723
      %v3725 = vpop.f32.mrb[0].mxu0
      %3726 = vmatprep.mubr.bf16.mxu0 0
      %3727 = vmatmul.mubr.bf16.gmra.mrb[0].mxu0 %v3516
      %v3728 = vpop.f32.mrb[0].mxu0
      %v3729 = vadd.f32 0.0, %v3728
      %v3730 = vpop.f32.mrb[0].mxu0
      %v3731 = vpop.f32.mrb[0].mxu0
      %v3732 = vadd.f32 0.0, %v3731
      %v3733 = vpop.f32.mrb[0].mxu0
      %3734 = vmatprep.mubr.bf16.mxu0 0
      %3735 = vmatmul.mubr.bf16.gmra.mrb[0].mxu0 %v1078
      %v3736 = vpop.f32.mrb[0].mxu0
      %v3737 = vadd.f32 0.0, %v3736
      %v3738 = vpop.f32.mrb[0].mxu0
      %v3739 = vpop.f32.mrb[0].mxu0
      %v3740 = vadd.f32 0.0, %v3739
      %v3741 = vpop.f32.mrb[0].mxu0
      %3742 = vdwg.mxu0
      %v3743 = vadd.f32 %v3440, %v3617
      %v3744 = vadd.f32 %v3441, %v3620
      %v3745 = vadd.f32 %v3442, %v3625
      %v3746 = vadd.f32 %v3443, %v3628
      %v3747 = vadd.f32 %v3444, %v3633
      %v3748 = vadd.f32 %v3445, %v3636
      %v3749 = vadd.f32 %v3446, %v3641
      %v3750 = vadd.f32 %v3447, %v3644
      %v3751 = vadd.f32 %v3448, %v3649
      %v3752 = vadd.f32 %v3449, %v3652
      %v3753 = vadd.f32 %v3450, %v3657
      %v3754 = vadd.f32 %v3451, %v3660
      %v3755 = vadd.f32 %v3452, %v3665
      %v3756 = vadd.f32 %v3453, %v3668
      %v3757 = vadd.f32 %v3454, %v3673
      %v3758 = vadd.f32 %v3455, %v3676
      %v3759 = vadd.f32 %v3456, %v3681
      %v3760 = vadd.f32 %v3457, %v3684
      %v3761 = vadd.f32 %v3458, %v3689
      %v3762 = vadd.f32 %v3459, %v3692
      %v3763 = vadd.f32 %v3460, %v3697
      %v3764 = vadd.f32 %v3461, %v3700
      %v3765 = vadd.f32 %v3462, %v3705
      %v3766 = vadd.f32 %v3463, %v3708
      %v3767 = vadd.f32 %v3464, %v3713
      %v3768 = vadd.f32 %v3465, %v3716
      %v3769 = vadd.f32 %v3466, %v3721
      %v3770 = vadd.f32 %v3467, %v3724
      %v3771 = vadd.f32 %v3468, %v3729
      %v3772 = vadd.f32 %v3469, %v3732
      %v3773 = vadd.f32 %v3470, %v3737
      %v3774 = vadd.f32 %v3471, %v3740
      %3775 = vst [vmem:[%s233] sm:$0xff] %v3743
      %3776 = vst [vmem:[%s233 + $0x8] sm:$0xff] %v3744
      %3777 = vst [vmem:[%s233 + $0x10] sm:$0xff] %v3745
      %3778 = vst [vmem:[%s233 + $0x18] sm:$0xff] %v3746
      %3779 = vst [vmem:[%s233 + $0x20] sm:$0xff] %v3747
      %3780 = vst [vmem:[%s233 + $0x28] sm:$0xff] %v3748
      %3781 = vst [vmem:[%s233 + $0x30] sm:$0xff] %v3749
      %3782 = vst [vmem:[%s233 + $0x38] sm:$0xff] %v3750
      %3783 = vst [vmem:[%s233 + $0x40] sm:$0xff] %v3751
      %3784 = vst [vmem:[%s233 + $0x48] sm:$0xff] %v3752
      %3785 = vst [vmem:[%s233 + $0x50] sm:$0xff] %v3753
      %3786 = vst [vmem:[%s233 + $0x58] sm:$0xff] %v3754
      %3787 = vst [vmem:[%s233 + $0x60] sm:$0xff] %v3755
      %3788 = vst [vmem:[%s233 + $0x68] sm:$0xff] %v3756
      %3789 = vst [vmem:[%s233 + $0x70] sm:$0xff] %v3757
      %3790 = vst [vmem:[%s233 + $0x78] sm:$0xff] %v3758
      %3791 = vst [vmem:[%s233 + $0x80] sm:$0xff] %v3759
      %3792 = vst [vmem:[%s233 + $0x88] sm:$0xff] %v3760
      %3793 = vst [vmem:[%s233 + $0x90] sm:$0xff] %v3761
      %3794 = vst [vmem:[%s233 + $0x98] sm:$0xff] %v3762
      %3795 = vst [vmem:[%s233 + $0xa0] sm:$0xff] %v3763
      %3796 = vst [vmem:[%s233 + $0xa8] sm:$0xff] %v3764
      %3797 = vst [vmem:[%s233 + $0xb0] sm:$0xff] %v3765
      %3798 = vst [vmem:[%s233 + $0xb8] sm:$0xff] %v3766
      %3799 = vst [vmem:[%s233 + $0xc0] sm:$0xff] %v3767
      %3800 = vst [vmem:[%s233 + $0xc8] sm:$0xff] %v3768
      %3801 = vst [vmem:[%s233 + $0xd0] sm:$0xff] %v3769
      %3802 = vst [vmem:[%s233 + $0xd8] sm:$0xff] %v3770
      %3803 = vst [vmem:[%s233 + $0xe0] sm:$0xff] %v3771
      %3804 = vst [vmem:[%s233 + $0xe8] sm:$0xff] %v3772
      %3805 = vst [vmem:[%s233 + $0xf0] sm:$0xff] %v3773
      %3806 = vst [vmem:[%s233 + $0xf8] sm:$0xff] %v3774
      %v3807 = vadd.f32 %v3743, %v3744
      %v3808 = vadd.f32 %v3807, %v3745
      %v3809 = vadd.f32 %v3808, %v3746
      %v3810 = vadd.f32 %v3809, %v3747
      %v3811 = vadd.f32 %v3810, %v3748
      %v3812 = vadd.f32 %v3811, %v3749
      %v3813 = vadd.f32 %v3812, %v3750
      %v3814 = vadd.f32 %v3813, %v3751
      %v3815 = vadd.f32 %v3814, %v3752
      %v3816 = vadd.f32 %v3815, %v3753
      %v3817 = vadd.f32 %v3816, %v3754
      %v3818 = vadd.f32 %v3817, %v3755
      %v3819 = vadd.f32 %v3818, %v3756
      %v3820 = vadd.f32 %v3819, %v3757
      %v3821 = vadd.f32 %v3820, %v3758
      %v3822 = vadd.f32 %v3821, %v3759
      %v3823 = vadd.f32 %v3822, %v3760
      %v3824 = vadd.f32 %v3823, %v3761
      %v3825 = vadd.f32 %v3824, %v3762
      %v3826 = vadd.f32 %v3825, %v3763
      %v3827 = vadd.f32 %v3826, %v3764
      %v3828 = vadd.f32 %v3827, %v3765
      %v3829 = vadd.f32 %v3828, %v3766
      %v3830 = vadd.f32 %v3829, %v3767
      %v3831 = vadd.f32 %v3830, %v3768
      %v3832 = vadd.f32 %v3831, %v3769
      %v3833 = vadd.f32 %v3832, %v3770
      %v3834 = vadd.f32 %v3833, %v3771
      %v3835 = vadd.f32 %v3834, %v3772
      %v3836 = vadd.f32 %v3835, %v3773
      %v3837 = vadd.f32 %v3836, %v3774
      %v3838 = vrot.slane %v3837, 4
      %v3839 = vadd.f32 %v3837, %v3838
      %v3840 = vrot.slane %v3839, 2
      %v3841 = vadd.f32 %v3839, %v3840
      %v3842 = vrot.slane %v3841, 1
      %v3843 = vadd.f32 %v3841, %v3842
      %v3844 = vmul.f32 %v3743, %v3743
      %v3845 = vmul.f32 %v3744, %v3744
      %v3846 = vmul.f32 %v3745, %v3745
      %v3847 = vmul.f32 %v3746, %v3746
      %v3848 = vmul.f32 %v3747, %v3747
      %v3849 = vmul.f32 %v3748, %v3748
      %v3850 = vmul.f32 %v3749, %v3749
      %v3851 = vmul.f32 %v3750, %v3750
      %v3852 = vmul.f32 %v3751, %v3751
      %v3853 = vmul.f32 %v3752, %v3752
      %v3854 = vmul.f32 %v3753, %v3753
      %v3855 = vmul.f32 %v3754, %v3754
      %v3856 = vmul.f32 %v3755, %v3755
      %v3857 = vmul.f32 %v3756, %v3756
      %v3858 = vmul.f32 %v3757, %v3757
      %v3859 = vmul.f32 %v3758, %v3758
      %v3860 = vmul.f32 %v3759, %v3759
      %v3861 = vmul.f32 %v3760, %v3760
      %v3862 = vmul.f32 %v3761, %v3761
      %v3863 = vmul.f32 %v3762, %v3762
      %v3864 = vmul.f32 %v3763, %v3763
      %v3865 = vmul.f32 %v3764, %v3764
      %v3866 = vmul.f32 %v3765, %v3765
      %v3867 = vmul.f32 %v3766, %v3766
      %v3868 = vmul.f32 %v3767, %v3767
      %v3869 = vmul.f32 %v3768, %v3768
      %v3870 = vmul.f32 %v3769, %v3769
      %v3871 = vmul.f32 %v3770, %v3770
      %v3872 = vmul.f32 %v3771, %v3771
      %v3873 = vmul.f32 %v3772, %v3772
      %v3874 = vmul.f32 %v3773, %v3773
      %v3875 = vmul.f32 %v3774, %v3774
      %v3876 = vadd.f32 %v3844, %v3845
      %v3877 = vadd.f32 %v3876, %v3846
      %v3878 = vadd.f32 %v3877, %v3847
      %v3879 = vadd.f32 %v3878, %v3848
      %v3880 = vadd.f32 %v3879, %v3849
      %v3881 = vadd.f32 %v3880, %v3850
      %v3882 = vadd.f32 %v3881, %v3851
      %v3883 = vadd.f32 %v3882, %v3852
      %v3884 = vadd.f32 %v3883, %v3853
      %v3885 = vadd.f32 %v3884, %v3854
      %v3886 = vadd.f32 %v3885, %v3855
      %v3887 = vadd.f32 %v3886, %v3856
      %v3888 = vadd.f32 %v3887, %v3857
      %v3889 = vadd.f32 %v3888, %v3858
      %v3890 = vadd.f32 %v3889, %v3859
      %v3891 = vadd.f32 %v3890, %v3860
      %v3892 = vadd.f32 %v3891, %v3861
      %v3893 = vadd.f32 %v3892, %v3862
      %v3894 = vadd.f32 %v3893, %v3863
      %v3895 = vadd.f32 %v3894, %v3864
      %v3896 = vadd.f32 %v3895, %v3865
      %v3897 = vadd.f32 %v3896, %v3866
      %v3898 = vadd.f32 %v3897, %v3867
      %v3899 = vadd.f32 %v3898, %v3868
      %v3900 = vadd.f32 %v3899, %v3869
      %v3901 = vadd.f32 %v3900, %v3870
      %v3902 = vadd.f32 %v3901, %v3871
      %v3903 = vadd.f32 %v3902, %v3872
      %v3904 = vadd.f32 %v3903, %v3873
      %v3905 = vadd.f32 %v3904, %v3874
      %v3906 = vadd.f32 %v3905, %v3875
      %v3907 = vrot.slane %v3906, 4
      %v3908 = vadd.f32 %v3906, %v3907
      %v3909 = vrot.slane %v3908, 2
      %v3910 = vadd.f32 %v3908, %v3909
      %v3911 = vrot.slane %v3910, 1
      %v3912 = vadd.f32 %v3910, %v3911
      %v3913 = vsel %vm893, %v3843, %v3912
      %3914 = vst [vmem:[%s238] sm:$0x3] %v3913
      %s3915 = smul.u32 32, %s17
      %p3916 = scmp.lt.s32.totalorder %s3915, 63
      %s3917 = scalar_select %p3916, %s3915, 63
      %s3918 = smul.addr %s3917, 8
      %s3919 = scalar_lea.vmem %s4, %s3918
      %p3920 = scmp.lt.s32.totalorder %s17, 1
      %s3921 = scalar_select %p3920, %s17, 1
      %s3922 = smul.addr %s3921, 2
      %s3923 = scalar_lea.vmem %s5, %s3922
      // Predicated region
      $region37: #{preact_bottleneck_forward.6} parent=35 // pred_check
        %p3924 = pneg %p124
      $region38: #{preact_bottleneck_forward.6} parent=35 // pred_check_branch
        %3926 = sbr.rel (%p3924) target = $region40
      $region39: #{preact_bottleneck_forward.6} parent=35 // pred_region
        %s3927 = smul.u32 32, %s17
      $region40: #{preact_bottleneck_forward.6} parent=35 // pred_fallthru
        _
      // Predicated region
      $region41: #{preact_bottleneck_forward.6} parent=35 // pred_check
        %p3928 = pneg %p150
      $region42: #{preact_bottleneck_forward.6} parent=35 // pred_check_branch
        %3930 = sbr.rel (%p3928) target = $region44
      $region43: #{preact_bottleneck_forward.6} parent=35 // pred_region
        _
      $region44: #{preact_bottleneck_forward.6} parent=35 // pred_fallthru
        _
    $region36: #{preact_bottleneck_forward.6} parent=5 // pred_fallthru
      _
    %p3931 = scmp.le.s32.totalorder 2, %s12
    // Predicated region
    $region45: #{preact_bottleneck_forward.6} parent=5 // pred_check
      %p3932 = pneg %p3931
    $region46: #{preact_bottleneck_forward.6} parent=5 // pred_check_branch
      %3934 = sbr.rel (%p3932) target = $region48
    $region47: #{preact_bottleneck_forward.6} parent=5 // pred_region
      %s3935 = ssub.s32 %s12, 2
      // Predicated region
      $region49: #{preact_bottleneck_forward.6} parent=47 // pred_check
        %p3936 = pneg %p130
      $region50: #{preact_bottleneck_forward.6} parent=47 // pred_check_branch
        %3938 = sbr.rel (%p3936) target = $region52
      $region51: #{preact_bottleneck_forward.6} parent=47 // pred_region
        %s3939 = smul.u32 32, %s18
        %p3940 = scmp.lt.s32.totalorder %s3939, 63
        %s3941 = scalar_select %p3940, %s3939, 63
        %s3942 = smul.addr %s3941, 8
        %s3943 = scalar_lea.vmem %s4, %s3942
      $region52: #{preact_bottleneck_forward.6} parent=47 // pred_fallthru
        _
      // Predicated region
      $region53: #{preact_bottleneck_forward.6} parent=47 // pred_check
        %p3944 = pneg %p156
      $region54: #{preact_bottleneck_forward.6} parent=47 // pred_check_branch
        %3946 = sbr.rel (%p3944) target = $region56
      $region55: #{preact_bottleneck_forward.6} parent=47 // pred_region
        %p3947 = scmp.lt.s32.totalorder %s18, 1
        %s3948 = scalar_select %p3947, %s18, 1
        %s3949 = smul.addr %s3948, 2
        %s3950 = scalar_lea.vmem %s5, %s3949
      $region56: #{preact_bottleneck_forward.6} parent=47 // pred_fallthru
        _
    $region48: #{preact_bottleneck_forward.6} parent=5 // pred_fallthru
      _
  $region6: #{preact_bottleneck_forward.6} parent=0 // loop_footer
    %s16 = sadd.s32 1, %s12
  $region7: #{preact_bottleneck_forward.6} parent=0 // loop_footer_branch
    %11 = sbr.rel target = $region3
  $region8: #{preact_bottleneck_forward.6} parent=0 // loop_exit
    _

</llo_original>
